<compile_context>
chip_gen: v7x
topology: tpu7x:2x2x1
jax: 0.10.0
libtpu: 0.0.40
codegen_flags: <defaults>
</compile_context>

<pallas_src>
import math

import jax
import jax.numpy as jnp
import numpy as np
from jax import lax
from jax.experimental import pallas as pl
from jax.experimental.pallas import tpu as pltpu

# ----------------------- model config (small, self-consistent) -----------------------
BATCH       = 2
SEQ         = 16
FEATURE_DIM = 32     # feature_dimension
D_MODEL     = 64     # hidden_size
NUM_HEADS   = 8
HEAD_DIM    = D_MODEL // NUM_HEADS
DFF         = 128    # dim_feedforward of TransformerEncoderLayer
NUM_LAYERS  = 2
LN_EPS      = 1e-5
SQRT_D      = math.sqrt(D_MODEL)
INV_SQRT_DH = 1.0 / math.sqrt(HEAD_DIM)

BS      = BATCH * SEQ          # batch folded into rows            (32)
HB      = NUM_HEADS * BS       # heads folded into score rows      (256)
OUT_PAD = 128                  # lane-dense padded output width (multiple of 128 >= FEATURE_DIM)

for _v in (SEQ, BS, HEAD_DIM):
    assert _v & (_v - 1) == 0, "power-of-two sizes required for the shift-based masks"
LOG2_SEQ = SEQ.bit_length() - 1
LOG2_BS  = BS.bit_length() - 1
LOG2_HD  = HEAD_DIM.bit_length() - 1

# ---- packed weight-slab column layout: w_big[l] = [ w_qkv | w_o | w_ff1 ]  (64 x 384) ----
COL_QKV    = 0
COL_WO     = 3 * D_MODEL       # 192
COL_FF1    = 4 * D_MODEL       # 256
W_BIG_COLS = COL_FF1 + DFF     # 384

# ---- packed vector-operand row layout (width 3*D_MODEL = 192 lanes) ----
#   rows [0, BS)              : positional encoding, tiled per batch
#   row  BS                   : b_in
#   per layer l (6 rows each) : b_o, ln1_g, ln1_b, ln2_g, ln2_b, b_ff2
#   then per layer            : b_qkv (192 lanes), then b_ff1 (128 lanes), then padded b_out
ROW_B_IN       = BS
ROW_L0         = BS + 1
ROWS_PER_LAYER = 6
ROW_BQKV       = ROW_L0 + ROWS_PER_LAYER * NUM_LAYERS
ROW_BFF1       = ROW_BQKV + NUM_LAYERS
ROW_BOUT       = ROW_BFF1 + NUM_LAYERS
N_VEC_ROWS     = ROW_BOUT + 1
VEC_COLS       = 3 * D_MODEL


def _layer_norm_fused(x, g, b):
    # var = E[x^2] - mu^2: the two lane reductions are independent (overlap in the XLU slot).
    mu  = jnp.mean(x, axis=-1, keepdims=True)
    ms  = jnp.mean(x * x, axis=-1, keepdims=True)
    var = ms - mu * mu
    return (x - mu) * lax.rsqrt(var + LN_EPS) * g + b


# ----------------------------------- Pallas kernel -----------------------------------
def transformer_kernel(x_ref,      # [BS, F]
                       w_big_ref,  # [L, D, 384] = [ w_qkv | w_o | w_ff1 ] per layer
                       w_ff2_ref,  # [L, DFF, D]
                       w_io_ref,   # [F + D, OUT_PAD]: rows [0,F)=w_in, rows [F,F+D)=w_out (padded)
                       vecs_ref,   # [N_VEC_ROWS, VEC_COLS] packed PE / biases / LN params
                       out_ref):   # [BS, OUT_PAD]
    f32 = jnp.float32

    # --- masks built once (hoisted out of the layer loop) ---
    # head selector: score/context row r = h*BS + i keeps only head h's HEAD_DIM columns.
    r_head = lax.broadcasted_iota(jnp.int32, (HB, D_MODEL), 0) >> LOG2_BS
    c_head = lax.broadcasted_iota(jnp.int32, (HB, D_MODEL), 1) >> LOG2_HD
    head_mask = jnp.where(r_head == c_head, 1.0, 0.0).astype(f32)        # [HB, D]

    # additive cross-batch mask on the [HB, BS] score matrix.
    r_b = (lax.broadcasted_iota(jnp.int32, (HB, BS), 0) & (BS - 1)) >> LOG2_SEQ
    c_b = lax.broadcasted_iota(jnp.int32, (HB, BS), 1) >> LOG2_SEQ
    attn_mask = jnp.where(r_b == c_b, 0.0, -1e9).astype(f32)             # [HB, BS]

    x = x_ref[...]                                                       # [BS, F]

    # 1) input linear mapping * sqrt(d_model), 2) + positional encoding (dropout = identity)
    w_in = w_io_ref[0:FEATURE_DIM, 0:D_MODEL]
    h = (jnp.dot(x, w_in, preferred_element_type=f32)
         + vecs_ref[ROW_B_IN:ROW_B_IN + 1, 0:D_MODEL]) * SQRT_D          # [BS, D]
    h = h + vecs_ref[0:BS, 0:D_MODEL]                                    # PE (pre-tiled per batch)

    # 3) NUM_LAYERS post-norm TransformerEncoderLayers
    for l in range(NUM_LAYERS):
        base = ROW_L0 + ROWS_PER_LAYER * l

        # --- multi-head self-attention, all heads fused ---
        qkv = (jnp.dot(h, w_big_ref[l, :, COL_QKV:COL_QKV + 3 * D_MODEL],
                       preferred_element_type=f32)
               + vecs_ref[ROW_BQKV + l:ROW_BQKV + l + 1, 0:3 * D_MODEL])  # [BS, 3D]

        q = qkv[:, 0:D_MODEL] * INV_SQRT_DH      # scale folded into Q (not the score matrix)
        k = qkv[:, D_MODEL:2 * D_MODEL]
        v = qkv[:, 2 * D_MODEL:3 * D_MODEL]

        # heads live in the sublane dim: q_blk[h*BS + i, :] = q[i, :] masked to head h's columns,
        # so one [HB, D] x [BS, D]^T matmul yields every head's scores at once.
        q_blk = jnp.concatenate([q] * NUM_HEADS, axis=0) * head_mask      # [HB, D]
        s = lax.dot_general(q_blk, k, (((1,), (1,)), ((), ())),
                            preferred_element_type=f32)                   # [HB, BS]
        s = s + attn_mask
        s = s - jnp.max(s, axis=-1, keepdims=True)
        e = jnp.exp(s)
        denom = jnp.sum(e, axis=-1, keepdims=True)                        # [HB, 1]

        # P@V first, normalization deferred (EUP reciprocal off the MXU critical path).
        o2 = jnp.dot(e, v, preferred_element_type=f32)                    # [HB, D]
        o2 = o2 * head_mask * pl.reciprocal(denom, approx=True)

        # fold the H row-blocks back to [BS, D]: ctx[i, c] = o2[head(c)*BS + i, c]
        parts = [o2[hh * BS:(hh + 1) * BS, :] for hh in range(NUM_HEADS)]
        while len(parts) > 1:
            parts = [parts[i] + parts[i + 1] for i in range(0, len(parts), 2)]
        ctx = parts[0]                                                    # [BS, D]

        attn = (jnp.dot(ctx, w_big_ref[l, :, COL_WO:COL_WO + D_MODEL],
                        preferred_element_type=f32)
                + vecs_ref[base + 0:base + 1, 0:D_MODEL])                 # + b_o

        h = _layer_norm_fused(h + attn,
                              vecs_ref[base + 1:base + 2, 0:D_MODEL],
                              vecs_ref[base + 2:base + 3, 0:D_MODEL])

        # --- feed-forward (ReLU) ---
        ff = (jnp.dot(h, w_big_ref[l, :, COL_FF1:COL_FF1 + DFF],
                      preferred_element_type=f32)
              + vecs_ref[ROW_BFF1 + l:ROW_BFF1 + l + 1, 0:DFF])
        ff = jnp.maximum(ff, 0.0)
        ff = (jnp.dot(ff, w_ff2_ref[l], preferred_element_type=f32)
              + vecs_ref[base + 5:base + 6, 0:D_MODEL])                   # + b_ff2

        h = _layer_norm_fused(h + ff,
                              vecs_ref[base + 3:base + 4, 0:D_MODEL],
                              vecs_ref[base + 4:base + 5, 0:D_MODEL])

    # 4) output linear — padded to 128 lanes so the final store is unmasked / lane-dense
    w_out = w_io_ref[FEATURE_DIM:FEATURE_DIM + D_MODEL, :]
    out = (jnp.dot(h, w_out, preferred_element_type=f32)
           + vecs_ref[ROW_BOUT:ROW_BOUT + 1, 0:OUT_PAD])
    out_ref[...] = out


# ----------------------------------- wrapper -----------------------------------------
def _pad_cols(a, width):
    a = jnp.asarray(a, jnp.float32)
    if a.ndim == 1:
        a = a[None, :]
    return jnp.pad(a, ((0, 0), (0, width - a.shape[1])))


@jax.jit
def transformer_forward(x, params):
    L, D, F = NUM_LAYERS, D_MODEL, FEATURE_DIM

    # one slab per layer for every [D, *] weight: [ w_qkv | w_o | w_ff1 ]  -> [L, 64, 384]
    w_big = jnp.concatenate([params["w_qkv"], params["w_o"], params["w_ff1"]], axis=2)

    # w_in and (lane-padded) w_out stacked row-wise into one operand  -> [F+D, 128]
    w_io = jnp.concatenate([_pad_cols(params["w_in"], OUT_PAD),
                            _pad_cols(params["w_out"], OUT_PAD)], axis=0)

    # every small vector operand packed into one [N_VEC_ROWS, 192] array
    rows = [_pad_cols(jnp.tile(params["pe"], (BATCH, 1)), VEC_COLS),     # PE per batch [BS, 192]
            _pad_cols(params["b_in"], VEC_COLS)]                         # b_in
    for l in range(L):
        rows.append(_pad_cols(jnp.stack([params["b_o"][l],
                                         params["ln1_g"][l], params["ln1_b"][l],
                                         params["ln2_g"][l], params["ln2_b"][l],
                                         params["b_ff2"][l]], axis=0), VEC_COLS))
    rows.append(_pad_cols(params["b_qkv"], VEC_COLS))                    # [L, 192]
    rows.append(_pad_cols(params["b_ff1"], VEC_COLS))                    # [L, 192]
    rows.append(_pad_cols(params["b_out"], VEC_COLS))                    # padded b_out
    vecs = jnp.concatenate(rows, axis=0)                                 # [N_VEC_ROWS, 192]
    assert vecs.shape == (N_VEC_ROWS, VEC_COLS)

    x2d = x.reshape(BS, F)                                               # fold batch into rows

    vmem = pl.BlockSpec(memory_space=pltpu.MemorySpace.VMEM)
    res = pl.pallas_call(                       # no grid: single step, everything VMEM-resident
        transformer_kernel,
        out_shape=jax.ShapeDtypeStruct((BS, OUT_PAD), jnp.float32),
        in_specs=[vmem] * 5,
        out_specs=vmem,
    )(x2d, w_big, params["w_ff2"], w_io, vecs)

    return res[:, :F].reshape(BATCH, SEQ, F)


# -------------------------- pure-JAX reference (for checking) ------------------------
def _layer_norm_ref(x, g, b):
    mu = jnp.mean(x, axis=-1, keepdims=True)
    xc = x - mu
    var = jnp.mean(xc * xc, axis=-1, keepdims=True)
    return xc * lax.rsqrt(var + LN_EPS) * g + b


def reference_forward(x, params):
    B, S, _ = x.shape
    h = (x @ params["w_in"] + params["b_in"]) * SQRT_D
    h = h + params["pe"][None]
    for l in range(NUM_LAYERS):
        qkv = h @ params["w_qkv"][l] + params["b_qkv"][l]
        q = qkv[..., :D_MODEL]
        k = qkv[..., D_MODEL:2 * D_MODEL]
        v = qkv[..., 2 * D_MODEL:]
        q = q.reshape(B, S, NUM_HEADS, HEAD_DIM).transpose(0, 2, 1, 3)
        k = k.reshape(B, S, NUM_HEADS, HEAD_DIM).transpose(0, 2, 1, 3)
        v = v.reshape(B, S, NUM_HEADS, HEAD_DIM).transpose(0, 2, 1, 3)
        s = jnp.einsum("bhqd,bhkd->bhqk", q, k) / math.sqrt(HEAD_DIM)
        p = jax.nn.softmax(s, axis=-1)
        attn = jnp.einsum("bhqk,bhkd->bhqd", p, v).transpose(0, 2, 1, 3).reshape(B, S, D_MODEL)
        attn = attn @ params["w_o"][l] + params["b_o"][l]
        h = _layer_norm_ref(h + attn, params["ln1_g"][l], params["ln1_b"][l])
        ff = jnp.maximum(h @ params["w_ff1"][l] + params["b_ff1"][l], 0.0)
        ff = ff @ params["w_ff2"][l] + params["b_ff2"][l]
        h = _layer_norm_ref(h + ff, params["ln2_g"][l], params["ln2_b"][l])
    return h @ params["w_out"] + params["b_out"]


# ----------------------------- deterministic parameter init --------------------------
def init_params(key):
    def nrm(k, shape, scale=0.05):
        return (scale * jax.random.normal(k, shape)).astype(jnp.float32)

    ks = jax.random.split(key, 12)
    L, D, F, DF = NUM_LAYERS, D_MODEL, FEATURE_DIM, DFF

    # sinusoidal positional encoding
    pos = jnp.arange(SEQ, dtype=jnp.float32)[:, None]
    div = jnp.exp(jnp.arange(0, D, 2, dtype=jnp.float32) * (-math.log(10000.0) / D))
    pe = jnp.zeros((SEQ, D), jnp.float32)
    pe = pe.at[:, 0::2].set(jnp.sin(pos * div))
    pe = pe.at[:, 1::2].set(jnp.cos(pos * div))

    # NOTE: kernel computes x @ W; real PyTorch nn.Linear weights ([out,in]) would need transposing.
    return {
        "pe":    pe,
        "w_in":  nrm(ks[0], (F, D)),         "b_in":  nrm(ks[1], (D,)),
        "w_qkv": nrm(ks[2], (L, D, 3 * D)),  "b_qkv": nrm(ks[3], (L, 3 * D)),
        "w_o":   nrm(ks[4], (L, D, D)),      "b_o":   nrm(ks[5], (L, D)),
        "ln1_g": jnp.ones((L, D), jnp.float32),  "ln1_b": jnp.zeros((L, D), jnp.float32),
        "ln2_g": jnp.ones((L, D), jnp.float32),  "ln2_b": jnp.zeros((L, D), jnp.float32),
        "w_ff1": nrm(ks[6], (L, D, DF)),     "b_ff1": nrm(ks[7], (L, DF)),
        "w_ff2": nrm(ks[8], (L, DF, D)),     "b_ff2": nrm(ks[9], (L, D)),
        "w_out": nrm(ks[10], (D, F)),        "b_out": nrm(ks[11], (F,)),
    }


if __name__ == "__main__":
    key = jax.random.PRNGKey(0)
    kx, kp = jax.random.split(key)
    x = jax.random.normal(kx, (BATCH, SEQ, FEATURE_DIM), dtype=jnp.float32)
    params = init_params(kp)

    out = jax.block_until_ready(transformer_forward(x, params))
    ref = jax.block_until_ready(reference_forward(x, params))

    assert out.shape == (BATCH, SEQ, FEATURE_DIM)
    np.testing.assert_allclose(np.asarray(out), np.asarray(ref), atol=2e-3, rtol=2e-3)
    print("KERNEL_OK")
</pallas_src>

<mosaic_0001>
module attributes {stable_mosaic.version = 11 : i64} {
  func.func @transformer_kernel(%arg0: memref<32x32xf32, #tpu.memory_space<vmem>>, %arg1: memref<2x64x384xf32, #tpu.memory_space<vmem>>, %arg2: memref<2x128x64xf32, #tpu.memory_space<vmem>>, %arg3: memref<96x128xf32, #tpu.memory_space<vmem>>, %arg4: memref<50x192xf32, #tpu.memory_space<vmem>>, %arg5: memref<32x128xf32, #tpu.memory_space<vmem>>) attributes {dimension_semantics = [], scalar_prefetch = 0 : i64, scratch_operands = 0 : i64, tpu.core_type = #tpu.core_type<tc>} {
    %0 = tpu.iota {dimensions = array<i32: 0>} : vector<256x64xi32>
    %c5_i32 = arith.constant 5 : i32
    %1 = vector.broadcast %c5_i32 : i32 to vector<256x64xi32>
    %2 = arith.shrsi %0, %1 : vector<256x64xi32>
    %3 = tpu.iota {dimensions = array<i32: 1>} : vector<256x64xi32>
    %c3_i32 = arith.constant 3 : i32
    %4 = vector.broadcast %c3_i32 : i32 to vector<256x64xi32>
    %5 = arith.shrsi %3, %4 : vector<256x64xi32>
    %6 = arith.cmpi eq, %2, %5 : vector<256x64xi32>
    %cst = arith.constant 1.000000e+00 : f32
    %cst_0 = arith.constant 0.000000e+00 : f32
    %7 = vector.broadcast %cst : f32 to vector<256x64xf32>
    %8 = vector.broadcast %cst_0 : f32 to vector<256x64xf32>
    %9 = arith.select %6, %7, %8 : vector<256x64xi1>, vector<256x64xf32>
    %10 = tpu.iota {dimensions = array<i32: 0>} : vector<256x32xi32>
    %c31_i32 = arith.constant 31 : i32
    %11 = vector.broadcast %c31_i32 : i32 to vector<256x32xi32>
    %12 = arith.andi %10, %11 : vector<256x32xi32>
    %c4_i32 = arith.constant 4 : i32
    %13 = vector.broadcast %c4_i32 : i32 to vector<256x32xi32>
    %14 = arith.shrsi %12, %13 : vector<256x32xi32>
    %15 = tpu.iota {dimensions = array<i32: 1>} : vector<256x32xi32>
    %c4_i32_1 = arith.constant 4 : i32
    %16 = vector.broadcast %c4_i32_1 : i32 to vector<256x32xi32>
    %17 = arith.shrsi %15, %16 : vector<256x32xi32>
    %18 = arith.cmpi eq, %14, %17 : vector<256x32xi32>
    %cst_2 = arith.constant 0.000000e+00 : f32
    %cst_3 = arith.constant -1.000000e+09 : f32
    %19 = vector.broadcast %cst_2 : f32 to vector<256x32xf32>
    %20 = vector.broadcast %cst_3 : f32 to vector<256x32xf32>
    %21 = arith.select %18, %19, %20 : vector<256x32xi1>, vector<256x32xf32>
    %c0 = arith.constant 0 : index
    %c0_4 = arith.constant 0 : index
    %22 = vector.load %arg0[%c0, %c0_4] : memref<32x32xf32, #tpu.memory_space<vmem>>, vector<32x32xf32>
    %c0_5 = arith.constant 0 : index
    %c0_6 = arith.constant 0 : index
    %23 = vector.load %arg3[%c0_5, %c0_6] : memref<96x128xf32, #tpu.memory_space<vmem>>, vector<32x64xf32>
    %cst_7 = arith.constant dense<0.000000e+00> : vector<32x64xf32>
    %24 = tpu.matmul %22, %23, %cst_7 {dimension_numbers = #tpu.dot_dimension_numbers<[1], [0], [0], [1], [0, 0, 1, 1], [], []>} : vector<32x32xf32>, vector<32x64xf32>, vector<32x64xf32> -> vector<32x64xf32>
    %c32 = arith.constant 32 : index
    %c0_8 = arith.constant 0 : index
    %25 = vector.load %arg4[%c32, %c0_8] : memref<50x192xf32, #tpu.memory_space<vmem>>, vector<1x64xf32>
    %26 = vector.broadcast %25 : vector<1x64xf32> to vector<32x64xf32>
    %27 = arith.addf %24, %26 : vector<32x64xf32>
    %cst_9 = arith.constant 8.000000e+00 : f32
    %28 = vector.broadcast %cst_9 : f32 to vector<32x64xf32>
    %29 = arith.mulf %27, %28 : vector<32x64xf32>
    %c0_10 = arith.constant 0 : index
    %c0_11 = arith.constant 0 : index
    %30 = vector.load %arg4[%c0_10, %c0_11] : memref<50x192xf32, #tpu.memory_space<vmem>>, vector<32x64xf32>
    %31 = arith.addf %29, %30 : vector<32x64xf32>
    %c0_12 = arith.constant 0 : index
    %c0_13 = arith.constant 0 : index
    %c0_14 = arith.constant 0 : index
    %32 = vector.load %arg1[%c0_12, %c0_13, %c0_14] : memref<2x64x384xf32, #tpu.memory_space<vmem>>, vector<1x64x192xf32>
    %33 = vector.shape_cast %32 : vector<1x64x192xf32> to vector<64x192xf32>
    %cst_15 = arith.constant dense<0.000000e+00> : vector<32x192xf32>
    %34 = tpu.matmul %31, %33, %cst_15 {dimension_numbers = #tpu.dot_dimension_numbers<[1], [0], [0], [1], [0, 0, 1, 1], [], []>} : vector<32x64xf32>, vector<64x192xf32>, vector<32x192xf32> -> vector<32x192xf32>
    %c45 = arith.constant 45 : index
    %c0_16 = arith.constant 0 : index
    %35 = vector.load %arg4[%c45, %c0_16] : memref<50x192xf32, #tpu.memory_space<vmem>>, vector<1x192xf32>
    %36 = vector.broadcast %35 : vector<1x192xf32> to vector<32x192xf32>
    %37 = arith.addf %34, %36 : vector<32x192xf32>
    %38 = vector.extract_strided_slice %37 {offsets = [0, 0], sizes = [32, 64], strides = [1, 1]} : vector<32x192xf32> to vector<32x64xf32>
    %cst_17 = arith.constant 0.353553385 : f32
    %39 = vector.broadcast %cst_17 : f32 to vector<32x64xf32>
    %40 = arith.mulf %38, %39 : vector<32x64xf32>
    %41 = vector.extract_strided_slice %37 {offsets = [0, 64], sizes = [32, 64], strides = [1, 1]} : vector<32x192xf32> to vector<32x64xf32>
    %42 = vector.extract_strided_slice %37 {offsets = [0, 128], sizes = [32, 64], strides = [1, 1]} : vector<32x192xf32> to vector<32x64xf32>
    %43 = tpu.concatenate %40, %40, %40, %40, %40, %40, %40, %40 in 0 : vector<32x64xf32>, vector<32x64xf32>, vector<32x64xf32>, vector<32x64xf32>, vector<32x64xf32>, vector<32x64xf32>, vector<32x64xf32>, vector<32x64xf32> -> vector<256x64xf32>
    %44 = arith.mulf %43, %9 : vector<256x64xf32>
    %cst_18 = arith.constant dense<0.000000e+00> : vector<256x32xf32>
    %45 = tpu.matmul %44, %41, %cst_18 {dimension_numbers = #tpu.dot_dimension_numbers<[1], [1], [0], [0], [0, 0, 1, 0], [], []>} : vector<256x64xf32>, vector<32x64xf32>, vector<256x32xf32> -> vector<256x32xf32>
    %46 = arith.addf %45, %21 : vector<256x32xf32>
    %cst_19 = arith.constant dense<0xFF800000> : vector<256xf32>
    %47 = vector.multi_reduction <maximumf>, %46, %cst_19 [1] : vector<256x32xf32> to vector<256xf32>
    %48 = vector.shape_cast %47 : vector<256xf32> to vector<256x1xf32>
    %49 = vector.broadcast %48 : vector<256x1xf32> to vector<256x32xf32>
    %50 = arith.subf %46, %49 : vector<256x32xf32>
    %51 = math.exp %50 : vector<256x32xf32>
    %cst_20 = arith.constant dense<0.000000e+00> : vector<256xf32>
    %52 = vector.multi_reduction <add>, %51, %cst_20 [1] : vector<256x32xf32> to vector<256xf32>
    %53 = vector.shape_cast %52 : vector<256xf32> to vector<256x1xf32>
    %cst_21 = arith.constant dense<0.000000e+00> : vector<256x64xf32>
    %54 = tpu.matmul %51, %42, %cst_21 {dimension_numbers = #tpu.dot_dimension_numbers<[1], [0], [0], [1], [0, 0, 1, 1], [], []>} : vector<256x32xf32>, vector<32x64xf32>, vector<256x64xf32> -> vector<256x64xf32>
    %55 = arith.mulf %54, %9 : vector<256x64xf32>
    %56 = tpu.reciprocal %53 {approx = true} : vector<256x1xf32> -> vector<256x1xf32>
    %57 = vector.broadcast %56 : vector<256x1xf32> to vector<256x64xf32>
    %58 = arith.mulf %55, %57 : vector<256x64xf32>
    %59 = vector.extract_strided_slice %58 {offsets = [0, 0], sizes = [32, 64], strides = [1, 1]} : vector<256x64xf32> to vector<32x64xf32>
    %60 = vector.extract_strided_slice %58 {offsets = [32, 0], sizes = [32, 64], strides = [1, 1]} : vector<256x64xf32> to vector<32x64xf32>
    %61 = vector.extract_strided_slice %58 {offsets = [64, 0], sizes = [32, 64], strides = [1, 1]} : vector<256x64xf32> to vector<32x64xf32>
    %62 = vector.extract_strided_slice %58 {offsets = [96, 0], sizes = [32, 64], strides = [1, 1]} : vector<256x64xf32> to vector<32x64xf32>
    %63 = vector.extract_strided_slice %58 {offsets = [128, 0], sizes = [32, 64], strides = [1, 1]} : vector<256x64xf32> to vector<32x64xf32>
    %64 = vector.extract_strided_slice %58 {offsets = [160, 0], sizes = [32, 64], strides = [1, 1]} : vector<256x64xf32> to vector<32x64xf32>
    %65 = vector.extract_strided_slice %58 {offsets = [192, 0], sizes = [32, 64], strides = [1, 1]} : vector<256x64xf32> to vector<32x64xf32>
    %66 = vector.extract_strided_slice %58 {offsets = [224, 0], sizes = [32, 64], strides = [1, 1]} : vector<256x64xf32> to vector<32x64xf32>
    %67 = arith.addf %59, %60 : vector<32x64xf32>
    %68 = arith.addf %61, %62 : vector<32x64xf32>
    %69 = arith.addf %63, %64 : vector<32x64xf32>
    %70 = arith.addf %65, %66 : vector<32x64xf32>
    %71 = arith.addf %67, %68 : vector<32x64xf32>
    %72 = arith.addf %69, %70 : vector<32x64xf32>
    %73 = arith.addf %71, %72 : vector<32x64xf32>
    %c0_22 = arith.constant 0 : index
    %c0_23 = arith.constant 0 : index
    %c192 = arith.constant 192 : index
    %74 = vector.load %arg1[%c0_22, %c0_23, %c192] : memref<2x64x384xf32, #tpu.memory_space<vmem>>, vector<1x64x64xf32>
    %75 = vector.shape_cast %74 : vector<1x64x64xf32> to vector<64x64xf32>
    %cst_24 = arith.constant dense<0.000000e+00> : vector<32x64xf32>
    %76 = tpu.matmul %73, %75, %cst_24 {dimension_numbers = #tpu.dot_dimension_numbers<[1], [0], [0], [1], [0, 0, 1, 1], [], []>} : vector<32x64xf32>, vector<64x64xf32>, vector<32x64xf32> -> vector<32x64xf32>
    %c33 = arith.constant 33 : index
    %c0_25 = arith.constant 0 : index
    %77 = vector.load %arg4[%c33, %c0_25] : memref<50x192xf32, #tpu.memory_space<vmem>>, vector<1x64xf32>
    %78 = vector.broadcast %77 : vector<1x64xf32> to vector<32x64xf32>
    %79 = arith.addf %76, %78 : vector<32x64xf32>
    %80 = arith.addf %31, %79 : vector<32x64xf32>
    %c34 = arith.constant 34 : index
    %c0_26 = arith.constant 0 : index
    %81 = vector.load %arg4[%c34, %c0_26] : memref<50x192xf32, #tpu.memory_space<vmem>>, vector<1x64xf32>
    %c35 = arith.constant 35 : index
    %c0_27 = arith.constant 0 : index
    %82 = vector.load %arg4[%c35, %c0_27] : memref<50x192xf32, #tpu.memory_space<vmem>>, vector<1x64xf32>
    %cst_28 = arith.constant dense<0.000000e+00> : vector<32xf32>
    %83 = vector.multi_reduction <add>, %80, %cst_28 [1] : vector<32x64xf32> to vector<32xf32>
    %84 = vector.shape_cast %83 : vector<32xf32> to vector<32x1xf32>
    %cst_29 = arith.constant 6.400000e+01 : f32
    %85 = vector.broadcast %cst_29 : f32 to vector<32x1xf32>
    %86 = arith.divf %84, %85 : vector<32x1xf32>
    %87 = arith.mulf %80, %80 : vector<32x64xf32>
    %cst_30 = arith.constant dense<0.000000e+00> : vector<32xf32>
    %88 = vector.multi_reduction <add>, %87, %cst_30 [1] : vector<32x64xf32> to vector<32xf32>
    %89 = vector.shape_cast %88 : vector<32xf32> to vector<32x1xf32>
    %cst_31 = arith.constant 6.400000e+01 : f32
    %90 = vector.broadcast %cst_31 : f32 to vector<32x1xf32>
    %91 = arith.divf %89, %90 : vector<32x1xf32>
    %92 = arith.mulf %86, %86 : vector<32x1xf32>
    %93 = arith.subf %91, %92 : vector<32x1xf32>
    %94 = vector.broadcast %86 : vector<32x1xf32> to vector<32x64xf32>
    %95 = arith.subf %80, %94 : vector<32x64xf32>
    %cst_32 = arith.constant 9.99999974E-6 : f32
    %96 = vector.broadcast %cst_32 : f32 to vector<32x1xf32>
    %97 = arith.addf %93, %96 : vector<32x1xf32>
    %98 = math.rsqrt %97 : vector<32x1xf32>
    %99 = vector.broadcast %98 : vector<32x1xf32> to vector<32x64xf32>
    %100 = arith.mulf %95, %99 : vector<32x64xf32>
    %101 = vector.broadcast %81 : vector<1x64xf32> to vector<32x64xf32>
    %102 = arith.mulf %100, %101 : vector<32x64xf32>
    %103 = vector.broadcast %82 : vector<1x64xf32> to vector<32x64xf32>
    %104 = arith.addf %102, %103 : vector<32x64xf32>
    %c0_33 = arith.constant 0 : index
    %c0_34 = arith.constant 0 : index
    %c256 = arith.constant 256 : index
    %105 = vector.load %arg1[%c0_33, %c0_34, %c256] : memref<2x64x384xf32, #tpu.memory_space<vmem>>, vector<1x64x128xf32>
    %106 = vector.shape_cast %105 : vector<1x64x128xf32> to vector<64x128xf32>
    %cst_35 = arith.constant dense<0.000000e+00> : vector<32x128xf32>
    %107 = tpu.matmul %104, %106, %cst_35 {dimension_numbers = #tpu.dot_dimension_numbers<[1], [0], [0], [1], [0, 0, 1, 1], [], []>} : vector<32x64xf32>, vector<64x128xf32>, vector<32x128xf32> -> vector<32x128xf32>
    %c47 = arith.constant 47 : index
    %c0_36 = arith.constant 0 : index
    %108 = vector.load %arg4[%c47, %c0_36] : memref<50x192xf32, #tpu.memory_space<vmem>>, vector<1x128xf32>
    %109 = vector.broadcast %108 : vector<1x128xf32> to vector<32x128xf32>
    %110 = arith.addf %107, %109 : vector<32x128xf32>
    %cst_37 = arith.constant 0.000000e+00 : f32
    %111 = vector.broadcast %cst_37 : f32 to vector<32x128xf32>
    %112 = arith.maximumf %110, %111 : vector<32x128xf32>
    %c0_38 = arith.constant 0 : index
    %c0_39 = arith.constant 0 : index
    %c0_40 = arith.constant 0 : index
    %113 = vector.load %arg2[%c0_38, %c0_39, %c0_40] : memref<2x128x64xf32, #tpu.memory_space<vmem>>, vector<1x128x64xf32>
    %114 = vector.shape_cast %113 : vector<1x128x64xf32> to vector<128x64xf32>
    %cst_41 = arith.constant dense<0.000000e+00> : vector<32x64xf32>
    %115 = tpu.matmul %112, %114, %cst_41 {dimension_numbers = #tpu.dot_dimension_numbers<[1], [0], [0], [1], [0, 0, 1, 1], [], []>} : vector<32x128xf32>, vector<128x64xf32>, vector<32x64xf32> -> vector<32x64xf32>
    %c38 = arith.constant 38 : index
    %c0_42 = arith.constant 0 : index
    %116 = vector.load %arg4[%c38, %c0_42] : memref<50x192xf32, #tpu.memory_space<vmem>>, vector<1x64xf32>
    %117 = vector.broadcast %116 : vector<1x64xf32> to vector<32x64xf32>
    %118 = arith.addf %115, %117 : vector<32x64xf32>
    %119 = arith.addf %104, %118 : vector<32x64xf32>
    %c36 = arith.constant 36 : index
    %c0_43 = arith.constant 0 : index
    %120 = vector.load %arg4[%c36, %c0_43] : memref<50x192xf32, #tpu.memory_space<vmem>>, vector<1x64xf32>
    %c37 = arith.constant 37 : index
    %c0_44 = arith.constant 0 : index
    %121 = vector.load %arg4[%c37, %c0_44] : memref<50x192xf32, #tpu.memory_space<vmem>>, vector<1x64xf32>
    %cst_45 = arith.constant dense<0.000000e+00> : vector<32xf32>
    %122 = vector.multi_reduction <add>, %119, %cst_45 [1] : vector<32x64xf32> to vector<32xf32>
    %123 = vector.shape_cast %122 : vector<32xf32> to vector<32x1xf32>
    %cst_46 = arith.constant 6.400000e+01 : f32
    %124 = vector.broadcast %cst_46 : f32 to vector<32x1xf32>
    %125 = arith.divf %123, %124 : vector<32x1xf32>
    %126 = arith.mulf %119, %119 : vector<32x64xf32>
    %cst_47 = arith.constant dense<0.000000e+00> : vector<32xf32>
    %127 = vector.multi_reduction <add>, %126, %cst_47 [1] : vector<32x64xf32> to vector<32xf32>
    %128 = vector.shape_cast %127 : vector<32xf32> to vector<32x1xf32>
    %cst_48 = arith.constant 6.400000e+01 : f32
    %129 = vector.broadcast %cst_48 : f32 to vector<32x1xf32>
    %130 = arith.divf %128, %129 : vector<32x1xf32>
    %131 = arith.mulf %125, %125 : vector<32x1xf32>
    %132 = arith.subf %130, %131 : vector<32x1xf32>
    %133 = vector.broadcast %125 : vector<32x1xf32> to vector<32x64xf32>
    %134 = arith.subf %119, %133 : vector<32x64xf32>
    %cst_49 = arith.constant 9.99999974E-6 : f32
    %135 = vector.broadcast %cst_49 : f32 to vector<32x1xf32>
    %136 = arith.addf %132, %135 : vector<32x1xf32>
    %137 = math.rsqrt %136 : vector<32x1xf32>
    %138 = vector.broadcast %137 : vector<32x1xf32> to vector<32x64xf32>
    %139 = arith.mulf %134, %138 : vector<32x64xf32>
    %140 = vector.broadcast %120 : vector<1x64xf32> to vector<32x64xf32>
    %141 = arith.mulf %139, %140 : vector<32x64xf32>
    %142 = vector.broadcast %121 : vector<1x64xf32> to vector<32x64xf32>
    %143 = arith.addf %141, %142 : vector<32x64xf32>
    %c1 = arith.constant 1 : index
    %c0_50 = arith.constant 0 : index
    %c0_51 = arith.constant 0 : index
    %144 = vector.load %arg1[%c1, %c0_50, %c0_51] : memref<2x64x384xf32, #tpu.memory_space<vmem>>, vector<1x64x192xf32>
    %145 = vector.shape_cast %144 : vector<1x64x192xf32> to vector<64x192xf32>
    %cst_52 = arith.constant dense<0.000000e+00> : vector<32x192xf32>
    %146 = tpu.matmul %143, %145, %cst_52 {dimension_numbers = #tpu.dot_dimension_numbers<[1], [0], [0], [1], [0, 0, 1, 1], [], []>} : vector<32x64xf32>, vector<64x192xf32>, vector<32x192xf32> -> vector<32x192xf32>
    %c46 = arith.constant 46 : index
    %c0_53 = arith.constant 0 : index
    %147 = vector.load %arg4[%c46, %c0_53] : memref<50x192xf32, #tpu.memory_space<vmem>>, vector<1x192xf32>
    %148 = vector.broadcast %147 : vector<1x192xf32> to vector<32x192xf32>
    %149 = arith.addf %146, %148 : vector<32x192xf32>
    %150 = vector.extract_strided_slice %149 {offsets = [0, 0], sizes = [32, 64], strides = [1, 1]} : vector<32x192xf32> to vector<32x64xf32>
    %cst_54 = arith.constant 0.353553385 : f32
    %151 = vector.broadcast %cst_54 : f32 to vector<32x64xf32>
    %152 = arith.mulf %150, %151 : vector<32x64xf32>
    %153 = vector.extract_strided_slice %149 {offsets = [0, 64], sizes = [32, 64], strides = [1, 1]} : vector<32x192xf32> to vector<32x64xf32>
    %154 = vector.extract_strided_slice %149 {offsets = [0, 128], sizes = [32, 64], strides = [1, 1]} : vector<32x192xf32> to vector<32x64xf32>
    %155 = tpu.concatenate %152, %152, %152, %152, %152, %152, %152, %152 in 0 : vector<32x64xf32>, vector<32x64xf32>, vector<32x64xf32>, vector<32x64xf32>, vector<32x64xf32>, vector<32x64xf32>, vector<32x64xf32>, vector<32x64xf32> -> vector<256x64xf32>
    %156 = arith.mulf %155, %9 : vector<256x64xf32>
    %cst_55 = arith.constant dense<0.000000e+00> : vector<256x32xf32>
    %157 = tpu.matmul %156, %153, %cst_55 {dimension_numbers = #tpu.dot_dimension_numbers<[1], [1], [0], [0], [0, 0, 1, 0], [], []>} : vector<256x64xf32>, vector<32x64xf32>, vector<256x32xf32> -> vector<256x32xf32>
    %158 = arith.addf %157, %21 : vector<256x32xf32>
    %cst_56 = arith.constant dense<0xFF800000> : vector<256xf32>
    %159 = vector.multi_reduction <maximumf>, %158, %cst_56 [1] : vector<256x32xf32> to vector<256xf32>
    %160 = vector.shape_cast %159 : vector<256xf32> to vector<256x1xf32>
    %161 = vector.broadcast %160 : vector<256x1xf32> to vector<256x32xf32>
    %162 = arith.subf %158, %161 : vector<256x32xf32>
    %163 = math.exp %162 : vector<256x32xf32>
    %cst_57 = arith.constant dense<0.000000e+00> : vector<256xf32>
    %164 = vector.multi_reduction <add>, %163, %cst_57 [1] : vector<256x32xf32> to vector<256xf32>
    %165 = vector.shape_cast %164 : vector<256xf32> to vector<256x1xf32>
    %cst_58 = arith.constant dense<0.000000e+00> : vector<256x64xf32>
    %166 = tpu.matmul %163, %154, %cst_58 {dimension_numbers = #tpu.dot_dimension_numbers<[1], [0], [0], [1], [0, 0, 1, 1], [], []>} : vector<256x32xf32>, vector<32x64xf32>, vector<256x64xf32> -> vector<256x64xf32>
    %167 = arith.mulf %166, %9 : vector<256x64xf32>
    %168 = tpu.reciprocal %165 {approx = true} : vector<256x1xf32> -> vector<256x1xf32>
    %169 = vector.broadcast %168 : vector<256x1xf32> to vector<256x64xf32>
    %170 = arith.mulf %167, %169 : vector<256x64xf32>
    %171 = vector.extract_strided_slice %170 {offsets = [0, 0], sizes = [32, 64], strides = [1, 1]} : vector<256x64xf32> to vector<32x64xf32>
    %172 = vector.extract_strided_slice %170 {offsets = [32, 0], sizes = [32, 64], strides = [1, 1]} : vector<256x64xf32> to vector<32x64xf32>
    %173 = vector.extract_strided_slice %170 {offsets = [64, 0], sizes = [32, 64], strides = [1, 1]} : vector<256x64xf32> to vector<32x64xf32>
    %174 = vector.extract_strided_slice %170 {offsets = [96, 0], sizes = [32, 64], strides = [1, 1]} : vector<256x64xf32> to vector<32x64xf32>
    %175 = vector.extract_strided_slice %170 {offsets = [128, 0], sizes = [32, 64], strides = [1, 1]} : vector<256x64xf32> to vector<32x64xf32>
    %176 = vector.extract_strided_slice %170 {offsets = [160, 0], sizes = [32, 64], strides = [1, 1]} : vector<256x64xf32> to vector<32x64xf32>
    %177 = vector.extract_strided_slice %170 {offsets = [192, 0], sizes = [32, 64], strides = [1, 1]} : vector<256x64xf32> to vector<32x64xf32>
    %178 = vector.extract_strided_slice %170 {offsets = [224, 0], sizes = [32, 64], strides = [1, 1]} : vector<256x64xf32> to vector<32x64xf32>
    %179 = arith.addf %171, %172 : vector<32x64xf32>
    %180 = arith.addf %173, %174 : vector<32x64xf32>
    %181 = arith.addf %175, %176 : vector<32x64xf32>
    %182 = arith.addf %177, %178 : vector<32x64xf32>
    %183 = arith.addf %179, %180 : vector<32x64xf32>
    %184 = arith.addf %181, %182 : vector<32x64xf32>
    %185 = arith.addf %183, %184 : vector<32x64xf32>
    %c1_59 = arith.constant 1 : index
    %c0_60 = arith.constant 0 : index
    %c192_61 = arith.constant 192 : index
    %186 = vector.load %arg1[%c1_59, %c0_60, %c192_61] : memref<2x64x384xf32, #tpu.memory_space<vmem>>, vector<1x64x64xf32>
    %187 = vector.shape_cast %186 : vector<1x64x64xf32> to vector<64x64xf32>
    %cst_62 = arith.constant dense<0.000000e+00> : vector<32x64xf32>
    %188 = tpu.matmul %185, %187, %cst_62 {dimension_numbers = #tpu.dot_dimension_numbers<[1], [0], [0], [1], [0, 0, 1, 1], [], []>} : vector<32x64xf32>, vector<64x64xf32>, vector<32x64xf32> -> vector<32x64xf32>
    %c39 = arith.constant 39 : index
    %c0_63 = arith.constant 0 : index
    %189 = vector.load %arg4[%c39, %c0_63] : memref<50x192xf32, #tpu.memory_space<vmem>>, vector<1x64xf32>
    %190 = vector.broadcast %189 : vector<1x64xf32> to vector<32x64xf32>
    %191 = arith.addf %188, %190 : vector<32x64xf32>
    %192 = arith.addf %143, %191 : vector<32x64xf32>
    %c40 = arith.constant 40 : index
    %c0_64 = arith.constant 0 : index
    %193 = vector.load %arg4[%c40, %c0_64] : memref<50x192xf32, #tpu.memory_space<vmem>>, vector<1x64xf32>
    %c41 = arith.constant 41 : index
    %c0_65 = arith.constant 0 : index
    %194 = vector.load %arg4[%c41, %c0_65] : memref<50x192xf32, #tpu.memory_space<vmem>>, vector<1x64xf32>
    %cst_66 = arith.constant dense<0.000000e+00> : vector<32xf32>
    %195 = vector.multi_reduction <add>, %192, %cst_66 [1] : vector<32x64xf32> to vector<32xf32>
    %196 = vector.shape_cast %195 : vector<32xf32> to vector<32x1xf32>
    %cst_67 = arith.constant 6.400000e+01 : f32
    %197 = vector.broadcast %cst_67 : f32 to vector<32x1xf32>
    %198 = arith.divf %196, %197 : vector<32x1xf32>
    %199 = arith.mulf %192, %192 : vector<32x64xf32>
    %cst_68 = arith.constant dense<0.000000e+00> : vector<32xf32>
    %200 = vector.multi_reduction <add>, %199, %cst_68 [1] : vector<32x64xf32> to vector<32xf32>
    %201 = vector.shape_cast %200 : vector<32xf32> to vector<32x1xf32>
    %cst_69 = arith.constant 6.400000e+01 : f32
    %202 = vector.broadcast %cst_69 : f32 to vector<32x1xf32>
    %203 = arith.divf %201, %202 : vector<32x1xf32>
    %204 = arith.mulf %198, %198 : vector<32x1xf32>
    %205 = arith.subf %203, %204 : vector<32x1xf32>
    %206 = vector.broadcast %198 : vector<32x1xf32> to vector<32x64xf32>
    %207 = arith.subf %192, %206 : vector<32x64xf32>
    %cst_70 = arith.constant 9.99999974E-6 : f32
    %208 = vector.broadcast %cst_70 : f32 to vector<32x1xf32>
    %209 = arith.addf %205, %208 : vector<32x1xf32>
    %210 = math.rsqrt %209 : vector<32x1xf32>
    %211 = vector.broadcast %210 : vector<32x1xf32> to vector<32x64xf32>
    %212 = arith.mulf %207, %211 : vector<32x64xf32>
    %213 = vector.broadcast %193 : vector<1x64xf32> to vector<32x64xf32>
    %214 = arith.mulf %212, %213 : vector<32x64xf32>
    %215 = vector.broadcast %194 : vector<1x64xf32> to vector<32x64xf32>
    %216 = arith.addf %214, %215 : vector<32x64xf32>
    %c1_71 = arith.constant 1 : index
    %c0_72 = arith.constant 0 : index
    %c256_73 = arith.constant 256 : index
    %217 = vector.load %arg1[%c1_71, %c0_72, %c256_73] : memref<2x64x384xf32, #tpu.memory_space<vmem>>, vector<1x64x128xf32>
    %218 = vector.shape_cast %217 : vector<1x64x128xf32> to vector<64x128xf32>
    %cst_74 = arith.constant dense<0.000000e+00> : vector<32x128xf32>
    %219 = tpu.matmul %216, %218, %cst_74 {dimension_numbers = #tpu.dot_dimension_numbers<[1], [0], [0], [1], [0, 0, 1, 1], [], []>} : vector<32x64xf32>, vector<64x128xf32>, vector<32x128xf32> -> vector<32x128xf32>
    %c48 = arith.constant 48 : index
    %c0_75 = arith.constant 0 : index
    %220 = vector.load %arg4[%c48, %c0_75] : memref<50x192xf32, #tpu.memory_space<vmem>>, vector<1x128xf32>
    %221 = vector.broadcast %220 : vector<1x128xf32> to vector<32x128xf32>
    %222 = arith.addf %219, %221 : vector<32x128xf32>
    %cst_76 = arith.constant 0.000000e+00 : f32
    %223 = vector.broadcast %cst_76 : f32 to vector<32x128xf32>
    %224 = arith.maximumf %222, %223 : vector<32x128xf32>
    %c1_77 = arith.constant 1 : index
    %c0_78 = arith.constant 0 : index
    %c0_79 = arith.constant 0 : index
    %225 = vector.load %arg2[%c1_77, %c0_78, %c0_79] : memref<2x128x64xf32, #tpu.memory_space<vmem>>, vector<1x128x64xf32>
    %226 = vector.shape_cast %225 : vector<1x128x64xf32> to vector<128x64xf32>
    %cst_80 = arith.constant dense<0.000000e+00> : vector<32x64xf32>
    %227 = tpu.matmul %224, %226, %cst_80 {dimension_numbers = #tpu.dot_dimension_numbers<[1], [0], [0], [1], [0, 0, 1, 1], [], []>} : vector<32x128xf32>, vector<128x64xf32>, vector<32x64xf32> -> vector<32x64xf32>
    %c44 = arith.constant 44 : index
    %c0_81 = arith.constant 0 : index
    %228 = vector.load %arg4[%c44, %c0_81] : memref<50x192xf32, #tpu.memory_space<vmem>>, vector<1x64xf32>
    %229 = vector.broadcast %228 : vector<1x64xf32> to vector<32x64xf32>
    %230 = arith.addf %227, %229 : vector<32x64xf32>
    %231 = arith.addf %216, %230 : vector<32x64xf32>
    %c42 = arith.constant 42 : index
    %c0_82 = arith.constant 0 : index
    %232 = vector.load %arg4[%c42, %c0_82] : memref<50x192xf32, #tpu.memory_space<vmem>>, vector<1x64xf32>
    %c43 = arith.constant 43 : index
    %c0_83 = arith.constant 0 : index
    %233 = vector.load %arg4[%c43, %c0_83] : memref<50x192xf32, #tpu.memory_space<vmem>>, vector<1x64xf32>
    %cst_84 = arith.constant dense<0.000000e+00> : vector<32xf32>
    %234 = vector.multi_reduction <add>, %231, %cst_84 [1] : vector<32x64xf32> to vector<32xf32>
    %235 = vector.shape_cast %234 : vector<32xf32> to vector<32x1xf32>
    %cst_85 = arith.constant 6.400000e+01 : f32
    %236 = vector.broadcast %cst_85 : f32 to vector<32x1xf32>
    %237 = arith.divf %235, %236 : vector<32x1xf32>
    %238 = arith.mulf %231, %231 : vector<32x64xf32>
    %cst_86 = arith.constant dense<0.000000e+00> : vector<32xf32>
    %239 = vector.multi_reduction <add>, %238, %cst_86 [1] : vector<32x64xf32> to vector<32xf32>
    %240 = vector.shape_cast %239 : vector<32xf32> to vector<32x1xf32>
    %cst_87 = arith.constant 6.400000e+01 : f32
    %241 = vector.broadcast %cst_87 : f32 to vector<32x1xf32>
    %242 = arith.divf %240, %241 : vector<32x1xf32>
    %243 = arith.mulf %237, %237 : vector<32x1xf32>
    %244 = arith.subf %242, %243 : vector<32x1xf32>
    %245 = vector.broadcast %237 : vector<32x1xf32> to vector<32x64xf32>
    %246 = arith.subf %231, %245 : vector<32x64xf32>
    %cst_88 = arith.constant 9.99999974E-6 : f32
    %247 = vector.broadcast %cst_88 : f32 to vector<32x1xf32>
    %248 = arith.addf %244, %247 : vector<32x1xf32>
    %249 = math.rsqrt %248 : vector<32x1xf32>
    %250 = vector.broadcast %249 : vector<32x1xf32> to vector<32x64xf32>
    %251 = arith.mulf %246, %250 : vector<32x64xf32>
    %252 = vector.broadcast %232 : vector<1x64xf32> to vector<32x64xf32>
    %253 = arith.mulf %251, %252 : vector<32x64xf32>
    %254 = vector.broadcast %233 : vector<1x64xf32> to vector<32x64xf32>
    %255 = arith.addf %253, %254 : vector<32x64xf32>
    %c32_89 = arith.constant 32 : index
    %c0_90 = arith.constant 0 : index
    %256 = vector.load %arg3[%c32_89, %c0_90] : memref<96x128xf32, #tpu.memory_space<vmem>>, vector<64x128xf32>
    %cst_91 = arith.constant dense<0.000000e+00> : vector<32x128xf32>
    %257 = tpu.matmul %255, %256, %cst_91 {dimension_numbers = #tpu.dot_dimension_numbers<[1], [0], [0], [1], [0, 0, 1, 1], [], []>} : vector<32x64xf32>, vector<64x128xf32>, vector<32x128xf32> -> vector<32x128xf32>
    %c49 = arith.constant 49 : index
    %c0_92 = arith.constant 0 : index
    %258 = vector.load %arg4[%c49, %c0_92] : memref<50x192xf32, #tpu.memory_space<vmem>>, vector<1x128xf32>
    %259 = vector.broadcast %258 : vector<1x128xf32> to vector<32x128xf32>
    %260 = arith.addf %257, %259 : vector<32x128xf32>
    %c0_93 = arith.constant 0 : index
    %c0_94 = arith.constant 0 : index
    %261 = vector.load %arg5[%c0_93, %c0_94] : memref<32x128xf32, #tpu.memory_space<vmem>>, vector<32x128xf32>
    tpu.vector_store %arg5[%c0_93, %c0_94], %260 {strides = array<i32>} : memref<32x128xf32, #tpu.memory_space<vmem>>, vector<32x128xf32>,
    return
  }
}

</mosaic_0001>

<llo_original>
// kernel: transformer_forward.1
$region0: #{transformer_forward.1}
  #allocation0 [shape = 'u32[]', space=smem, size = 0x4, offset = 0x4, fixed_abs, tag = 'smem constant byte address 0x4 - core index']
  #allocation1 [shape = 'u32[144,128]{1,0:T(1,128)}', space=vmem, size = 0x12000, scoped, tag = 'internal scratch']
  %s0 = inlined_call_operand.vmem [shape: f32[32,32], index: 0, kind: input, shape index: {}]
  %s1 = inlined_call_operand.vmem [shape: f32[2,64,384], index: 1, kind: input, shape index: {}]
  %s2 = inlined_call_operand.vmem [shape: f32[2,128,64], index: 2, kind: input, shape index: {}]
  %s3 = inlined_call_operand.vmem [shape: f32[96,128], index: 3, kind: input, shape index: {}]
  %s4 = inlined_call_operand.vmem [shape: f32[50,192], index: 4, kind: input, shape index: {}]
  %s5 = inlined_call_operand.hbm [shape: f32[32,128], index: 5, kind: output, shape index: {}]
  %s6 = sld [smem:[#allocation0]]
  $region30: #{transformer_forward.1} parent=0
    _
  %s8 = ssub.s32 1, %s6
  %s9 = scalar_select 0, %s8, %s6
  $region1: #{transformer_forward.1} parent=0
    #allocation2 [shape = 'u8[16384]{0}', space=vmem, size = 0x4000, scoped, tag = 'output window, operand 0, single buffered']
    #allocation3 [shape = 's32[1]{0}', space=sflag, size = 0x4, scoped, tag = 'scoped memory for transformer_forward.1']
    %10 = vsyncpa [#allocation3], 0
    // Predicated region
    $region2: #{transformer_forward.1} parent=1 // pred_check
      _
    $region3: #{transformer_forward.1} parent=1 // pred_check_branch
      %12 = sbr.rel (0) target = $region5
    $region4: #{transformer_forward.1} parent=1 // pred_region
      _
    $region5: #{transformer_forward.1} parent=1 // pred_fallthru
      _
    // Predicated region
    $region6: #{transformer_forward.1} parent=1 // pred_check
      _
    $region7: #{transformer_forward.1} parent=1 // pred_check_branch
      %14 = sbr.rel (0) target = $region9
    $region8: #{transformer_forward.1} parent=1 // pred_region
      _
    $region9: #{transformer_forward.1} parent=1 // pred_fallthru
      _
    // Predicated region
    $region10: #{transformer_forward.1} parent=1 // pred_check
      _
    $region11: #{transformer_forward.1} parent=1 // pred_check_branch
      %16 = sbr.rel (0) target = $region13
    $region12: #{transformer_forward.1} parent=1 // pred_region
      _
    $region13: #{transformer_forward.1} parent=1 // pred_fallthru
      _
    // Predicated region
    $region14: #{transformer_forward.1} parent=1 // pred_check
      _
    $region15: #{transformer_forward.1} parent=1 // pred_check_branch
      %18 = sbr.rel (0) target = $region17
    $region16: #{transformer_forward.1} parent=1 // pred_region
      _
    $region17: #{transformer_forward.1} parent=1 // pred_fallthru
      _
    // Predicated region
    $region18: #{transformer_forward.1} parent=1 // pred_check
      _
    $region19: #{transformer_forward.1} parent=1 // pred_check_branch
      %20 = sbr.rel (0) target = $region21
    $region20: #{transformer_forward.1} parent=1 // pred_region
      _
    $region21: #{transformer_forward.1} parent=1 // pred_fallthru
      _
    %v21 = vlaneseq
    %v22 = vshrl.u32 %v21, 7
    %v23 = vadd.s32 %v22, 8
    %v24 = vadd.s32 %v22, 16
    %v25 = vadd.s32 %v22, 24
    %v26 = vadd.s32 %v22, 32
    %v27 = vadd.s32 %v22, 40
    %v28 = vadd.s32 %v22, 48
    %v29 = vadd.s32 %v22, 56
    %v30 = vadd.s32 %v22, 64
    %v31 = vadd.s32 %v22, 72
    %v32 = vadd.s32 %v22, 80
    %v33 = vadd.s32 %v22, 88
    %v34 = vadd.s32 %v22, 96
    %v35 = vadd.s32 %v22, 104
    %v36 = vadd.s32 %v22, 112
    %v37 = vadd.s32 %v22, 120
    %v38 = vadd.s32 %v22, 128
    %v39 = vadd.s32 %v22, 136
    %v40 = vadd.s32 %v22, 144
    %v41 = vadd.s32 %v22, 152
    %v42 = vadd.s32 %v22, 160
    %v43 = vadd.s32 %v22, 168
    %v44 = vadd.s32 %v22, 176
    %v45 = vadd.s32 %v22, 184
    %v46 = vadd.s32 %v22, 192
    %v47 = vadd.s32 %v22, 200
    %v48 = vadd.s32 %v22, 208
    %v49 = vadd.s32 %v22, 216
    %v50 = vadd.s32 %v22, 224
    %v51 = vadd.s32 %v22, 232
    %v52 = vadd.s32 %v22, 240
    %v53 = vadd.s32 %v22, 248
    %v54 = vshra.s32 %v22, 5
    %v55 = vshra.s32 %v23, 5
    %v56 = vshra.s32 %v24, 5
    %v57 = vshra.s32 %v25, 5
    %v58 = vshra.s32 %v26, 5
    %v59 = vshra.s32 %v27, 5
    %v60 = vshra.s32 %v28, 5
    %v61 = vshra.s32 %v29, 5
    %v62 = vshra.s32 %v30, 5
    %v63 = vshra.s32 %v31, 5
    %v64 = vshra.s32 %v32, 5
    %v65 = vshra.s32 %v33, 5
    %v66 = vshra.s32 %v34, 5
    %v67 = vshra.s32 %v35, 5
    %v68 = vshra.s32 %v36, 5
    %v69 = vshra.s32 %v37, 5
    %v70 = vshra.s32 %v38, 5
    %v71 = vshra.s32 %v39, 5
    %v72 = vshra.s32 %v40, 5
    %v73 = vshra.s32 %v41, 5
    %v74 = vshra.s32 %v42, 5
    %v75 = vshra.s32 %v43, 5
    %v76 = vshra.s32 %v44, 5
    %v77 = vshra.s32 %v45, 5
    %v78 = vshra.s32 %v46, 5
    %v79 = vshra.s32 %v47, 5
    %v80 = vshra.s32 %v48, 5
    %v81 = vshra.s32 %v49, 5
    %v82 = vshra.s32 %v50, 5
    %v83 = vshra.s32 %v51, 5
    %v84 = vshra.s32 %v52, 5
    %v85 = vshra.s32 %v53, 5
    %v86 = vlaneseq
    %v87 = vand.u32 %v86, 127
    %v88 = vshra.s32 %v87, 3
    %vm89 = vcmp.eq.s32.totalorder %v54, %v88
    %vm90 = vcmp.eq.s32.totalorder %v55, %v88
    %vm91 = vcmp.eq.s32.totalorder %v56, %v88
    %vm92 = vcmp.eq.s32.totalorder %v57, %v88
    %vm93 = vcmp.eq.s32.totalorder %v58, %v88
    %vm94 = vcmp.eq.s32.totalorder %v59, %v88
    %vm95 = vcmp.eq.s32.totalorder %v60, %v88
    %vm96 = vcmp.eq.s32.totalorder %v61, %v88
    %vm97 = vcmp.eq.s32.totalorder %v62, %v88
    %vm98 = vcmp.eq.s32.totalorder %v63, %v88
    %vm99 = vcmp.eq.s32.totalorder %v64, %v88
    %vm100 = vcmp.eq.s32.totalorder %v65, %v88
    %vm101 = vcmp.eq.s32.totalorder %v66, %v88
    %vm102 = vcmp.eq.s32.totalorder %v67, %v88
    %vm103 = vcmp.eq.s32.totalorder %v68, %v88
    %vm104 = vcmp.eq.s32.totalorder %v69, %v88
    %vm105 = vcmp.eq.s32.totalorder %v70, %v88
    %vm106 = vcmp.eq.s32.totalorder %v71, %v88
    %vm107 = vcmp.eq.s32.totalorder %v72, %v88
    %vm108 = vcmp.eq.s32.totalorder %v73, %v88
    %vm109 = vcmp.eq.s32.totalorder %v74, %v88
    %vm110 = vcmp.eq.s32.totalorder %v75, %v88
    %vm111 = vcmp.eq.s32.totalorder %v76, %v88
    %vm112 = vcmp.eq.s32.totalorder %v77, %v88
    %vm113 = vcmp.eq.s32.totalorder %v78, %v88
    %vm114 = vcmp.eq.s32.totalorder %v79, %v88
    %vm115 = vcmp.eq.s32.totalorder %v80, %v88
    %vm116 = vcmp.eq.s32.totalorder %v81, %v88
    %vm117 = vcmp.eq.s32.totalorder %v82, %v88
    %vm118 = vcmp.eq.s32.totalorder %v83, %v88
    %vm119 = vcmp.eq.s32.totalorder %v84, %v88
    %vm120 = vcmp.eq.s32.totalorder %v85, %v88
    %v121 = vsel %vm89, 1.0, 0.0
    %v122 = vsel %vm90, 1.0, 0.0
    %v123 = vsel %vm91, 1.0, 0.0
    %v124 = vsel %vm92, 1.0, 0.0
    %v125 = vsel %vm93, 1.0, 0.0
    %v126 = vsel %vm94, 1.0, 0.0
    %v127 = vsel %vm95, 1.0, 0.0
    %v128 = vsel %vm96, 1.0, 0.0
    %v129 = vsel %vm97, 1.0, 0.0
    %v130 = vsel %vm98, 1.0, 0.0
    %v131 = vsel %vm99, 1.0, 0.0
    %v132 = vsel %vm100, 1.0, 0.0
    %v133 = vsel %vm101, 1.0, 0.0
    %v134 = vsel %vm102, 1.0, 0.0
    %v135 = vsel %vm103, 1.0, 0.0
    %v136 = vsel %vm104, 1.0, 0.0
    %v137 = vsel %vm105, 1.0, 0.0
    %v138 = vsel %vm106, 1.0, 0.0
    %v139 = vsel %vm107, 1.0, 0.0
    %v140 = vsel %vm108, 1.0, 0.0
    %v141 = vsel %vm109, 1.0, 0.0
    %v142 = vsel %vm110, 1.0, 0.0
    %v143 = vsel %vm111, 1.0, 0.0
    %v144 = vsel %vm112, 1.0, 0.0
    %v145 = vsel %vm113, 1.0, 0.0
    %v146 = vsel %vm114, 1.0, 0.0
    %v147 = vsel %vm115, 1.0, 0.0
    %v148 = vsel %vm116, 1.0, 0.0
    %v149 = vsel %vm117, 1.0, 0.0
    %v150 = vsel %vm118, 1.0, 0.0
    %v151 = vsel %vm119, 1.0, 0.0
    %v152 = vsel %vm120, 1.0, 0.0
    %v153 = vand.u32 %v22, 31
    %v154 = vand.u32 %v23, 31
    %v155 = vand.u32 %v24, 31
    %v156 = vand.u32 %v25, 31
    %v157 = vand.u32 %v26, 31
    %v158 = vand.u32 %v27, 31
    %v159 = vand.u32 %v28, 31
    %v160 = vand.u32 %v29, 31
    %v161 = vand.u32 %v30, 31
    %v162 = vand.u32 %v31, 31
    %v163 = vand.u32 %v32, 31
    %v164 = vand.u32 %v33, 31
    %v165 = vand.u32 %v34, 31
    %v166 = vand.u32 %v35, 31
    %v167 = vand.u32 %v36, 31
    %v168 = vand.u32 %v37, 31
    %v169 = vand.u32 %v38, 31
    %v170 = vand.u32 %v39, 31
    %v171 = vand.u32 %v40, 31
    %v172 = vand.u32 %v41, 31
    %v173 = vand.u32 %v42, 31
    %v174 = vand.u32 %v43, 31
    %v175 = vand.u32 %v44, 31
    %v176 = vand.u32 %v45, 31
    %v177 = vand.u32 %v46, 31
    %v178 = vand.u32 %v47, 31
    %v179 = vand.u32 %v48, 31
    %v180 = vand.u32 %v49, 31
    %v181 = vand.u32 %v50, 31
    %v182 = vand.u32 %v51, 31
    %v183 = vand.u32 %v52, 31
    %v184 = vand.u32 %v53, 31
    %v185 = vshra.s32 %v153, 4
    %v186 = vshra.s32 %v154, 4
    %v187 = vshra.s32 %v155, 4
    %v188 = vshra.s32 %v156, 4
    %v189 = vshra.s32 %v157, 4
    %v190 = vshra.s32 %v158, 4
    %v191 = vshra.s32 %v159, 4
    %v192 = vshra.s32 %v160, 4
    %v193 = vshra.s32 %v161, 4
    %v194 = vshra.s32 %v162, 4
    %v195 = vshra.s32 %v163, 4
    %v196 = vshra.s32 %v164, 4
    %v197 = vshra.s32 %v165, 4
    %v198 = vshra.s32 %v166, 4
    %v199 = vshra.s32 %v167, 4
    %v200 = vshra.s32 %v168, 4
    %v201 = vshra.s32 %v169, 4
    %v202 = vshra.s32 %v170, 4
    %v203 = vshra.s32 %v171, 4
    %v204 = vshra.s32 %v172, 4
    %v205 = vshra.s32 %v173, 4
    %v206 = vshra.s32 %v174, 4
    %v207 = vshra.s32 %v175, 4
    %v208 = vshra.s32 %v176, 4
    %v209 = vshra.s32 %v177, 4
    %v210 = vshra.s32 %v178, 4
    %v211 = vshra.s32 %v179, 4
    %v212 = vshra.s32 %v180, 4
    %v213 = vshra.s32 %v181, 4
    %v214 = vshra.s32 %v182, 4
    %v215 = vshra.s32 %v183, 4
    %v216 = vshra.s32 %v184, 4
    %v217 = vshra.s32 %v87, 4
    %vm218 = vcmp.eq.s32.totalorder %v185, %v217
    %vm219 = vcmp.eq.s32.totalorder %v186, %v217
    %vm220 = vcmp.eq.s32.totalorder %v187, %v217
    %vm221 = vcmp.eq.s32.totalorder %v188, %v217
    %vm222 = vcmp.eq.s32.totalorder %v189, %v217
    %vm223 = vcmp.eq.s32.totalorder %v190, %v217
    %vm224 = vcmp.eq.s32.totalorder %v191, %v217
    %vm225 = vcmp.eq.s32.totalorder %v192, %v217
    %vm226 = vcmp.eq.s32.totalorder %v193, %v217
    %vm227 = vcmp.eq.s32.totalorder %v194, %v217
    %vm228 = vcmp.eq.s32.totalorder %v195, %v217
    %vm229 = vcmp.eq.s32.totalorder %v196, %v217
    %vm230 = vcmp.eq.s32.totalorder %v197, %v217
    %vm231 = vcmp.eq.s32.totalorder %v198, %v217
    %vm232 = vcmp.eq.s32.totalorder %v199, %v217
    %vm233 = vcmp.eq.s32.totalorder %v200, %v217
    %vm234 = vcmp.eq.s32.totalorder %v201, %v217
    %vm235 = vcmp.eq.s32.totalorder %v202, %v217
    %vm236 = vcmp.eq.s32.totalorder %v203, %v217
    %vm237 = vcmp.eq.s32.totalorder %v204, %v217
    %vm238 = vcmp.eq.s32.totalorder %v205, %v217
    %vm239 = vcmp.eq.s32.totalorder %v206, %v217
    %vm240 = vcmp.eq.s32.totalorder %v207, %v217
    %vm241 = vcmp.eq.s32.totalorder %v208, %v217
    %vm242 = vcmp.eq.s32.totalorder %v209, %v217
    %vm243 = vcmp.eq.s32.totalorder %v210, %v217
    %vm244 = vcmp.eq.s32.totalorder %v211, %v217
    %vm245 = vcmp.eq.s32.totalorder %v212, %v217
    %vm246 = vcmp.eq.s32.totalorder %v213, %v217
    %vm247 = vcmp.eq.s32.totalorder %v214, %v217
    %vm248 = vcmp.eq.s32.totalorder %v215, %v217
    %vm249 = vcmp.eq.s32.totalorder %v216, %v217
    %v250 = vsel %vm218, 0.0, -1e+09
    %v251 = vsel %vm219, 0.0, -1e+09
    %v252 = vsel %vm220, 0.0, -1e+09
    %v253 = vsel %vm221, 0.0, -1e+09
    %v254 = vsel %vm222, 0.0, -1e+09
    %v255 = vsel %vm223, 0.0, -1e+09
    %v256 = vsel %vm224, 0.0, -1e+09
    %v257 = vsel %vm225, 0.0, -1e+09
    %v258 = vsel %vm226, 0.0, -1e+09
    %v259 = vsel %vm227, 0.0, -1e+09
    %v260 = vsel %vm228, 0.0, -1e+09
    %v261 = vsel %vm229, 0.0, -1e+09
    %v262 = vsel %vm230, 0.0, -1e+09
    %v263 = vsel %vm231, 0.0, -1e+09
    %v264 = vsel %vm232, 0.0, -1e+09
    %v265 = vsel %vm233, 0.0, -1e+09
    %v266 = vsel %vm234, 0.0, -1e+09
    %v267 = vsel %vm235, 0.0, -1e+09
    %v268 = vsel %vm236, 0.0, -1e+09
    %v269 = vsel %vm237, 0.0, -1e+09
    %v270 = vsel %vm238, 0.0, -1e+09
    %v271 = vsel %vm239, 0.0, -1e+09
    %v272 = vsel %vm240, 0.0, -1e+09
    %v273 = vsel %vm241, 0.0, -1e+09
    %v274 = vsel %vm242, 0.0, -1e+09
    %v275 = vsel %vm243, 0.0, -1e+09
    %v276 = vsel %vm244, 0.0, -1e+09
    %v277 = vsel %vm245, 0.0, -1e+09
    %v278 = vsel %vm246, 0.0, -1e+09
    %v279 = vsel %vm247, 0.0, -1e+09
    %v280 = vsel %vm248, 0.0, -1e+09
    %v281 = vsel %vm249, 0.0, -1e+09
    %v282 = vld [vmem:[%s0] sm:$0xff]
    %v283 = vld [vmem:[%s0 + $0x8] sm:$0xff]
    %v284 = vld [vmem:[%s0 + $0x10] sm:$0xff]
    %v285 = vld [vmem:[%s0 + $0x18] sm:$0xff]
    %v286 = vld [vmem:[%s3] sm:$0xff]
    %v287 = vld [vmem:[%s3 + $0x8] sm:$0xff]
    %v288 = vld [vmem:[%s3 + $0x10] sm:$0xff]
    %v289 = vld [vmem:[%s3 + $0x18] sm:$0xff]
    %v290 = vld [vmem:[%s4 + $0x40] ss:$0 sm:$0xff]
    %vm291 = vcmask 261120
    %v293 = vsel %vm291, %v282, 0
    %v296 = vsel %vm291, %v283, 0
    %v299 = vsel %vm291, %v284, 0
    %v302 = vsel %vm291, %v285, 0
    %304 = vmatprep.subr.mxu0 0.0
    %305 = vmatpush1.msra.mxu0 %v286
    %306 = vmatprep.subr.mxu0 0.0
    %307 = vmatpush1.msra.mxu0 %v287
    %308 = vmatprep.subr.mxu0 0.0
    %309 = vmatpush1.msra.mxu0 %v288
    %310 = vmatprep.subr.mxu0 0.0
    %311 = vmatpush1.msra.mxu0 %v289
    %312 = vmatprep.subr.mxu0 0.0
    %313 = vmatpush1.msra.mxu0 0.0
    %314 = vmatprep.subr.mxu0 0.0
    %315 = vmatpush1.msra.mxu0 0.0
    %316 = vmatprep.subr.mxu0 0.0
    %317 = vmatpush1.msra.mxu0 0.0
    %318 = vmatprep.subr.mxu0 0.0
    %319 = vmatpush1.msra.mxu0 0.0
    %320 = vmatprep.subr.mxu0 0.0
    %321 = vmatpush1.msra.mxu0 0.0
    %322 = vmatprep.subr.mxu0 0.0
    %323 = vmatpush1.msra.mxu0 0.0
    %324 = vmatprep.subr.mxu0 0.0
    %325 = vmatpush1.msra.mxu0 0.0
    %326 = vmatprep.subr.mxu0 0.0
    %327 = vmatpush1.msra.mxu0 0.0
    %328 = vmatprep.subr.mxu0 0.0
    %329 = vmatpush1.msra.mxu0 0.0
    %330 = vmatprep.subr.mxu0 0.0
    %331 = vmatpush1.msra.mxu0 0.0
    %332 = vmatprep.subr.mxu0 0.0
    %333 = vmatpush1.msra.mxu0 0.0
    %334 = vmatprep.subr.mxu0 0.0
    %335 = vmatpush1.msra.mxu0 0.0
    %336 = vmatprep.subr.mxu0 0.0
    %337 = vmatpush1.msra.mxu0 0.0
    %338 = vmatprep.subr.mxu0 0.0
    %339 = vmatpush1.msra.mxu0 0.0
    %340 = vmatprep.subr.mxu0 0.0
    %341 = vmatpush1.msra.mxu0 0.0
    %342 = vmatprep.subr.mxu0 0.0
    %343 = vmatpush1.msra.mxu0 0.0
    %344 = vmatprep.subr.mxu0 0.0
    %345 = vmatpush1.msra.mxu0 0.0
    %346 = vmatprep.subr.mxu0 0.0
    %347 = vmatpush1.msra.mxu0 0.0
    %348 = vmatprep.subr.mxu0 0.0
    %349 = vmatpush1.msra.mxu0 0.0
    %350 = vmatprep.subr.mxu0 0.0
    %351 = vmatpush1.msra.mxu0 0.0
    %352 = vmatprep.subr.mxu0 0.0
    %353 = vmatpush1.msra.mxu0 0.0
    %354 = vmatprep.subr.mxu0 0.0
    %355 = vmatpush1.msra.mxu0 0.0
    %356 = vmatprep.subr.mxu0 0.0
    %357 = vmatpush1.msra.mxu0 0.0
    %358 = vmatprep.subr.mxu0 0.0
    %359 = vmatpush1.msra.mxu0 0.0
    %360 = vmatprep.subr.mxu0 0.0
    %361 = vmatpush1.msra.mxu0 0.0
    %362 = vmatprep.subr.mxu0 0.0
    %363 = vmatpush1.msra.mxu0 0.0
    %364 = vmatprep.subr.mxu0 0.0
    %365 = vmatpush1.msra.mxu0 0.0
    %366 = vmatprep.subr.mxu0 0.0
    %367 = vmatpush1.msra.mxu0 0.0
    %368 = vmatprep.mubr.f32.mxu0 0.0
    %369 = vmatmul.mubr.f32.gmra.mrb[0].mxu0 %v293
    %v370 = vpop.f32.mrb[0].mxu0
    %v371 = vadd.f32 %v290, %v370
    %v372 = vpop.f32.mrb[0].mxu0
    %373 = vmatprep.mubr.f32.mxu0 0.0
    %374 = vmatmul.mubr.f32.gmra.mrb[0].mxu0 %v296
    %v375 = vpop.f32.mrb[0].mxu0
    %v376 = vadd.f32 %v290, %v375
    %v377 = vpop.f32.mrb[0].mxu0
    %378 = vmatprep.mubr.f32.mxu0 0.0
    %379 = vmatmul.mubr.f32.gmra.mrb[0].mxu0 %v299
    %v380 = vpop.f32.mrb[0].mxu0
    %v381 = vadd.f32 %v290, %v380
    %v382 = vpop.f32.mrb[0].mxu0
    %383 = vmatprep.mubr.f32.mxu0 0.0
    %384 = vmatmul.mubr.f32.gmra.mrb[0].mxu0 %v302
    %v385 = vpop.f32.mrb[0].mxu0
    %v386 = vadd.f32 %v290, %v385
    %v387 = vpop.f32.mrb[0].mxu0
    %388 = vdwg.mxu0
    %v389 = vmul.f32 %v371, 8.0
    %v390 = vmul.f32 %v376, 8.0
    %v391 = vmul.f32 %v381, 8.0
    %v392 = vmul.f32 %v386, 8.0
    %v393 = vld [vmem:[%s4] sm:$0xff]
    %v394 = vld [vmem:[%s4 + $0x10] sm:$0xff]
    %v395 = vld [vmem:[%s4 + $0x20] sm:$0xff]
    %v396 = vld [vmem:[%s4 + $0x30] sm:$0xff]
    %v397 = vadd.f32 %v389, %v393
    %v398 = vadd.f32 %v390, %v394
    %v399 = vadd.f32 %v391, %v395
    %v400 = vadd.f32 %v392, %v396
    %v401 = vld [vmem:[%s1] sm:$0xff]
    %v402 = vld [vmem:[%s1 + $0x8] sm:$0xff]
    %v403 = vld [vmem:[%s1 + $0x18] sm:$0xff]
    %v404 = vld [vmem:[%s1 + $0x20] sm:$0xff]
    %v405 = vld [vmem:[%s1 + $0x30] sm:$0xff]
    %v406 = vld [vmem:[%s1 + $0x38] sm:$0xff]
    %v407 = vld [vmem:[%s1 + $0x48] sm:$0xff]
    %v408 = vld [vmem:[%s1 + $0x50] sm:$0xff]
    %v409 = vld [vmem:[%s1 + $0x60] sm:$0xff]
    %v410 = vld [vmem:[%s1 + $0x68] sm:$0xff]
    %v411 = vld [vmem:[%s1 + $0x78] sm:$0xff]
    %v412 = vld [vmem:[%s1 + $0x80] sm:$0xff]
    %v413 = vld [vmem:[%s1 + $0x90] sm:$0xff]
    %v414 = vld [vmem:[%s1 + $0x98] sm:$0xff]
    %v415 = vld [vmem:[%s1 + $0xa8] sm:$0xff]
    %v416 = vld [vmem:[%s1 + $0xb0] sm:$0xff]
    %s417 = scalar_lea.vmem %s4, 85
    %v418 = vld [vmem:[%s417] ss:$8 sm:$0x3]
    %v420 = vlaneseq
    %v421 = vshrl.u32 %v420, 7
    %v422 = vsub.s32 0, %v421
    %v423 = vrot.slane %v418, %v422
    %v424 = vlaneseq
    %v425 = vshrl.u32 %v424, 7
    %v426 = vsub.s32 1, %v425
    %v427 = vrot.slane %v418, %v426
    %vm430 = vcmask 523264
    %v432 = vsel %vm430, %v397, 0
    %v435 = vsel %vm430, %v398, 0
    %v438 = vsel %vm430, %v399, 0
    %v441 = vsel %vm430, %v400, 0
    %443 = vmatprep.subr.mxu0 %v402
    %444 = vmatpush1.msra.mxu0 %v401
    %445 = vmatprep.subr.mxu0 %v404
    %446 = vmatpush1.msra.mxu0 %v403
    %447 = vmatprep.subr.mxu0 %v406
    %448 = vmatpush1.msra.mxu0 %v405
    %449 = vmatprep.subr.mxu0 %v408
    %450 = vmatpush1.msra.mxu0 %v407
    %451 = vmatprep.subr.mxu0 %v410
    %452 = vmatpush1.msra.mxu0 %v409
    %453 = vmatprep.subr.mxu0 %v412
    %454 = vmatpush1.msra.mxu0 %v411
    %455 = vmatprep.subr.mxu0 %v414
    %456 = vmatpush1.msra.mxu0 %v413
    %457 = vmatprep.subr.mxu0 %v416
    %458 = vmatpush1.msra.mxu0 %v415
    %459 = vmatprep.subr.mxu0 0.0
    %460 = vmatpush1.msra.mxu0 0.0
    %461 = vmatprep.subr.mxu0 0.0
    %462 = vmatpush1.msra.mxu0 0.0
    %463 = vmatprep.subr.mxu0 0.0
    %464 = vmatpush1.msra.mxu0 0.0
    %465 = vmatprep.subr.mxu0 0.0
    %466 = vmatpush1.msra.mxu0 0.0
    %467 = vmatprep.subr.mxu0 0.0
    %468 = vmatpush1.msra.mxu0 0.0
    %469 = vmatprep.subr.mxu0 0.0
    %470 = vmatpush1.msra.mxu0 0.0
    %471 = vmatprep.subr.mxu0 0.0
    %472 = vmatpush1.msra.mxu0 0.0
    %473 = vmatprep.subr.mxu0 0.0
    %474 = vmatpush1.msra.mxu0 0.0
    %475 = vmatprep.subr.mxu0 0.0
    %476 = vmatpush1.msra.mxu0 0.0
    %477 = vmatprep.subr.mxu0 0.0
    %478 = vmatpush1.msra.mxu0 0.0
    %479 = vmatprep.subr.mxu0 0.0
    %480 = vmatpush1.msra.mxu0 0.0
    %481 = vmatprep.subr.mxu0 0.0
    %482 = vmatpush1.msra.mxu0 0.0
    %483 = vmatprep.subr.mxu0 0.0
    %484 = vmatpush1.msra.mxu0 0.0
    %485 = vmatprep.subr.mxu0 0.0
    %486 = vmatpush1.msra.mxu0 0.0
    %487 = vmatprep.subr.mxu0 0.0
    %488 = vmatpush1.msra.mxu0 0.0
    %489 = vmatprep.subr.mxu0 0.0
    %490 = vmatpush1.msra.mxu0 0.0
    %491 = vmatprep.subr.mxu0 0.0
    %492 = vmatpush1.msra.mxu0 0.0
    %493 = vmatprep.subr.mxu0 0.0
    %494 = vmatpush1.msra.mxu0 0.0
    %495 = vmatprep.subr.mxu0 0.0
    %496 = vmatpush1.msra.mxu0 0.0
    %497 = vmatprep.subr.mxu0 0.0
    %498 = vmatpush1.msra.mxu0 0.0
    %499 = vmatprep.subr.mxu0 0.0
    %500 = vmatpush1.msra.mxu0 0.0
    %501 = vmatprep.subr.mxu0 0.0
    %502 = vmatpush1.msra.mxu0 0.0
    %503 = vmatprep.subr.mxu0 0.0
    %504 = vmatpush1.msra.mxu0 0.0
    %505 = vmatprep.subr.mxu0 0.0
    %506 = vmatpush1.msra.mxu0 0.0
    %507 = vmatprep.mubr.f32.mxu0 0.0
    %508 = vmatmul.mubr.f32.gmra.mrb[0].mxu0 %v432
    %v509 = vpop.f32.mrb[0].mxu0
    %v510 = vadd.f32 %v423, %v509
    %v511 = vpop.f32.mrb[0].mxu0
    %v512 = vadd.f32 %v427, %v511
    %513 = vmatprep.mubr.f32.mxu0 0.0
    %514 = vmatmul.mubr.f32.gmra.mrb[0].mxu0 %v435
    %v515 = vpop.f32.mrb[0].mxu0
    %v516 = vadd.f32 %v423, %v515
    %v517 = vpop.f32.mrb[0].mxu0
    %v518 = vadd.f32 %v427, %v517
    %519 = vmatprep.mubr.f32.mxu0 0.0
    %520 = vmatmul.mubr.f32.gmra.mrb[0].mxu0 %v438
    %v521 = vpop.f32.mrb[0].mxu0
    %v522 = vadd.f32 %v423, %v521
    %v523 = vpop.f32.mrb[0].mxu0
    %v524 = vadd.f32 %v427, %v523
    %525 = vmatprep.mubr.f32.mxu0 0.0
    %526 = vmatmul.mubr.f32.gmra.mrb[0].mxu0 %v441
    %v527 = vpop.f32.mrb[0].mxu0
    %v528 = vadd.f32 %v423, %v527
    %v529 = vpop.f32.mrb[0].mxu0
    %v530 = vadd.f32 %v427, %v529
    %531 = vdwg.mxu0
    %v532 = vmul.f32 %v510, 0.35355338
    %v533 = vmul.f32 %v516, 0.35355338
    %v534 = vmul.f32 %v522, 0.35355338
    %v535 = vmul.f32 %v528, 0.35355338
    %v536 = vmul.f32 %v532, %v121
    %v537 = vmul.f32 %v533, %v122
    %v538 = vmul.f32 %v534, %v123
    %v539 = vmul.f32 %v535, %v124
    %v540 = vmul.f32 %v532, %v125
    %v541 = vmul.f32 %v533, %v126
    %v542 = vmul.f32 %v534, %v127
    %v543 = vmul.f32 %v535, %v128
    %v544 = vmul.f32 %v532, %v129
    %v545 = vmul.f32 %v533, %v130
    %v546 = vmul.f32 %v534, %v131
    %v547 = vmul.f32 %v535, %v132
    %v548 = vmul.f32 %v532, %v133
    %v549 = vmul.f32 %v533, %v134
    %v550 = vmul.f32 %v534, %v135
    %v551 = vmul.f32 %v535, %v136
    %v552 = vmul.f32 %v532, %v137
    %v553 = vmul.f32 %v533, %v138
    %v554 = vmul.f32 %v534, %v139
    %v555 = vmul.f32 %v535, %v140
    %v556 = vmul.f32 %v532, %v141
    %v557 = vmul.f32 %v533, %v142
    %v558 = vmul.f32 %v534, %v143
    %v559 = vmul.f32 %v535, %v144
    %v560 = vmul.f32 %v532, %v145
    %v561 = vmul.f32 %v533, %v146
    %v562 = vmul.f32 %v534, %v147
    %v563 = vmul.f32 %v535, %v148
    %v564 = vmul.f32 %v532, %v149
    %v565 = vmul.f32 %v533, %v150
    %v566 = vmul.f32 %v534, %v151
    %v567 = vmul.f32 %v535, %v152
    %572 = vrot.lane.b32.xlu0 %v510, 64
    %v573 = vpop.permute.xlu0 %572
    %574 = vrot.lane.b32.xlu0 %v516, 64
    %v575 = vpop.permute.xlu0 %574
    %576 = vrot.lane.b32.xlu0 %v522, 64
    %v577 = vpop.permute.xlu0 %576
    %578 = vrot.lane.b32.xlu0 %v528, 64
    %v579 = vpop.permute.xlu0 %578
    %v581 = vsel %vm430, %v536, 0
    %v584 = vsel %vm430, %v537, 0
    %v587 = vsel %vm430, %v538, 0
    %v590 = vsel %vm430, %v539, 0
    %v593 = vsel %vm430, %v540, 0
    %v596 = vsel %vm430, %v541, 0
    %v599 = vsel %vm430, %v542, 0
    %v602 = vsel %vm430, %v543, 0
    %v605 = vsel %vm430, %v544, 0
    %v608 = vsel %vm430, %v545, 0
    %v611 = vsel %vm430, %v546, 0
    %v614 = vsel %vm430, %v547, 0
    %v617 = vsel %vm430, %v548, 0
    %v620 = vsel %vm430, %v549, 0
    %v623 = vsel %vm430, %v550, 0
    %v626 = vsel %vm430, %v551, 0
    %v629 = vsel %vm430, %v552, 0
    %v632 = vsel %vm430, %v553, 0
    %v635 = vsel %vm430, %v554, 0
    %v638 = vsel %vm430, %v555, 0
    %v641 = vsel %vm430, %v556, 0
    %v644 = vsel %vm430, %v557, 0
    %v647 = vsel %vm430, %v558, 0
    %v650 = vsel %vm430, %v559, 0
    %v653 = vsel %vm430, %v560, 0
    %v656 = vsel %vm430, %v561, 0
    %v659 = vsel %vm430, %v562, 0
    %v662 = vsel %vm430, %v563, 0
    %v665 = vsel %vm430, %v564, 0
    %v668 = vsel %vm430, %v565, 0
    %v671 = vsel %vm430, %v566, 0
    %v674 = vsel %vm430, %v567, 0
    %v676 = vsel %vm430, %v573, 0
    %v678 = vsel %vm430, %v575, 0
    %v680 = vsel %vm430, %v577, 0
    %v682 = vsel %vm430, %v579, 0
    %684 = vmatprep.subr.mxu0 0.0
    %685 = vmatpush1.xpose.msra.mxu0 %v676
    %686 = vmatprep.subr.mxu0 0.0
    %687 = vmatpush1.xpose.msra.mxu0 %v678
    %688 = vmatprep.subr.mxu0 0.0
    %689 = vmatpush1.xpose.msra.mxu0 %v680
    %690 = vmatprep.subr.mxu0 0.0
    %691 = vmatpush1.xpose.msra.mxu0 %v682
    %692 = vmatprep.subr.mxu0 0.0
    %693 = vmatpush1.xpose.msra.mxu0 0.0
    %694 = vmatprep.subr.mxu0 0.0
    %695 = vmatpush1.xpose.msra.mxu0 0.0
    %696 = vmatprep.subr.mxu0 0.0
    %697 = vmatpush1.xpose.msra.mxu0 0.0
    %698 = vmatprep.subr.mxu0 0.0
    %699 = vmatpush1.xpose.msra.mxu0 0.0
    %700 = vmatprep.subr.mxu0 0.0
    %701 = vmatpush1.xpose.msra.mxu0 0.0
    %702 = vmatprep.subr.mxu0 0.0
    %703 = vmatpush1.xpose.msra.mxu0 0.0
    %704 = vmatprep.subr.mxu0 0.0
    %705 = vmatpush1.xpose.msra.mxu0 0.0
    %706 = vmatprep.subr.mxu0 0.0
    %707 = vmatpush1.xpose.msra.mxu0 0.0
    %708 = vmatprep.subr.mxu0 0.0
    %709 = vmatpush1.xpose.msra.mxu0 0.0
    %710 = vmatprep.subr.mxu0 0.0
    %711 = vmatpush1.xpose.msra.mxu0 0.0
    %712 = vmatprep.subr.mxu0 0.0
    %713 = vmatpush1.xpose.msra.mxu0 0.0
    %714 = vmatprep.subr.mxu0 0.0
    %715 = vmatpush1.xpose.msra.mxu0 0.0
    %716 = vmatprep.subr.mxu0 0.0
    %717 = vmatpush1.xpose.msra.mxu0 0.0
    %718 = vmatprep.subr.mxu0 0.0
    %719 = vmatpush1.xpose.msra.mxu0 0.0
    %720 = vmatprep.subr.mxu0 0.0
    %721 = vmatpush1.xpose.msra.mxu0 0.0
    %722 = vmatprep.subr.mxu0 0.0
    %723 = vmatpush1.xpose.msra.mxu0 0.0
    %724 = vmatprep.subr.mxu0 0.0
    %725 = vmatpush1.xpose.msra.mxu0 0.0
    %726 = vmatprep.subr.mxu0 0.0
    %727 = vmatpush1.xpose.msra.mxu0 0.0
    %728 = vmatprep.subr.mxu0 0.0
    %729 = vmatpush1.xpose.msra.mxu0 0.0
    %730 = vmatprep.subr.mxu0 0.0
    %731 = vmatpush1.xpose.msra.mxu0 0.0
    %732 = vmatprep.subr.mxu0 0.0
    %733 = vmatpush1.xpose.msra.mxu0 0.0
    %734 = vmatprep.subr.mxu0 0.0
    %735 = vmatpush1.xpose.msra.mxu0 0.0
    %736 = vmatprep.subr.mxu0 0.0
    %737 = vmatpush1.xpose.msra.mxu0 0.0
    %738 = vmatprep.subr.mxu0 0.0
    %739 = vmatpush1.xpose.msra.mxu0 0.0
    %740 = vmatprep.subr.mxu0 0.0
    %741 = vmatpush1.xpose.msra.mxu0 0.0
    %742 = vmatprep.subr.mxu0 0.0
    %743 = vmatpush1.xpose.msra.mxu0 0.0
    %744 = vmatprep.subr.mxu0 0.0
    %745 = vmatpush1.xpose.msra.mxu0 0.0
    %746 = vmatprep.subr.mxu0 0.0
    %747 = vmatpush1.xpose.msra.mxu0 0.0
    %748 = vmatprep.mubr.f32.mxu0 0.0
    %749 = vmatmul.mubr.f32.gmra.mrb[0].mxu0 %v581
    %v750 = vpop.f32.mrb[0].mxu0
    %v751 = vadd.f32 %v250, %v750
    %v752 = vpop.f32.mrb[0].mxu0
    %753 = vmatprep.mubr.f32.mxu0 0.0
    %754 = vmatmul.mubr.f32.gmra.mrb[0].mxu0 %v584
    %v755 = vpop.f32.mrb[0].mxu0
    %v756 = vadd.f32 %v251, %v755
    %v757 = vpop.f32.mrb[0].mxu0
    %758 = vmatprep.mubr.f32.mxu0 0.0
    %759 = vmatmul.mubr.f32.gmra.mrb[0].mxu0 %v587
    %v760 = vpop.f32.mrb[0].mxu0
    %v761 = vadd.f32 %v252, %v760
    %v762 = vpop.f32.mrb[0].mxu0
    %763 = vmatprep.mubr.f32.mxu0 0.0
    %764 = vmatmul.mubr.f32.gmra.mrb[0].mxu0 %v590
    %v765 = vpop.f32.mrb[0].mxu0
    %v766 = vadd.f32 %v253, %v765
    %v767 = vpop.f32.mrb[0].mxu0
    %768 = vmatprep.mubr.f32.mxu0 0.0
    %769 = vmatmul.mubr.f32.gmra.mrb[0].mxu0 %v593
    %v770 = vpop.f32.mrb[0].mxu0
    %v771 = vadd.f32 %v254, %v770
    %v772 = vpop.f32.mrb[0].mxu0
    %773 = vmatprep.mubr.f32.mxu0 0.0
    %774 = vmatmul.mubr.f32.gmra.mrb[0].mxu0 %v596
    %v775 = vpop.f32.mrb[0].mxu0
    %v776 = vadd.f32 %v255, %v775
    %v777 = vpop.f32.mrb[0].mxu0
    %778 = vmatprep.mubr.f32.mxu0 0.0
    %779 = vmatmul.mubr.f32.gmra.mrb[0].mxu0 %v599
    %v780 = vpop.f32.mrb[0].mxu0
    %v781 = vadd.f32 %v256, %v780
    %v782 = vpop.f32.mrb[0].mxu0
    %783 = vmatprep.mubr.f32.mxu0 0.0
    %784 = vmatmul.mubr.f32.gmra.mrb[0].mxu0 %v602
    %v785 = vpop.f32.mrb[0].mxu0
    %v786 = vadd.f32 %v257, %v785
    %v787 = vpop.f32.mrb[0].mxu0
    %788 = vmatprep.mubr.f32.mxu0 0.0
    %789 = vmatmul.mubr.f32.gmra.mrb[0].mxu0 %v605
    %v790 = vpop.f32.mrb[0].mxu0
    %v791 = vadd.f32 %v258, %v790
    %v792 = vpop.f32.mrb[0].mxu0
    %793 = vmatprep.mubr.f32.mxu0 0.0
    %794 = vmatmul.mubr.f32.gmra.mrb[0].mxu0 %v608
    %v795 = vpop.f32.mrb[0].mxu0
    %v796 = vadd.f32 %v259, %v795
    %v797 = vpop.f32.mrb[0].mxu0
    %798 = vmatprep.mubr.f32.mxu0 0.0
    %799 = vmatmul.mubr.f32.gmra.mrb[0].mxu0 %v611
    %v800 = vpop.f32.mrb[0].mxu0
    %v801 = vadd.f32 %v260, %v800
    %v802 = vpop.f32.mrb[0].mxu0
    %803 = vmatprep.mubr.f32.mxu0 0.0
    %804 = vmatmul.mubr.f32.gmra.mrb[0].mxu0 %v614
    %v805 = vpop.f32.mrb[0].mxu0
    %v806 = vadd.f32 %v261, %v805
    %v807 = vpop.f32.mrb[0].mxu0
    %808 = vmatprep.mubr.f32.mxu0 0.0
    %809 = vmatmul.mubr.f32.gmra.mrb[0].mxu0 %v617
    %v810 = vpop.f32.mrb[0].mxu0
    %v811 = vadd.f32 %v262, %v810
    %v812 = vpop.f32.mrb[0].mxu0
    %813 = vmatprep.mubr.f32.mxu0 0.0
    %814 = vmatmul.mubr.f32.gmra.mrb[0].mxu0 %v620
    %v815 = vpop.f32.mrb[0].mxu0
    %v816 = vadd.f32 %v263, %v815
    %v817 = vpop.f32.mrb[0].mxu0
    %818 = vmatprep.mubr.f32.mxu0 0.0
    %819 = vmatmul.mubr.f32.gmra.mrb[0].mxu0 %v623
    %v820 = vpop.f32.mrb[0].mxu0
    %v821 = vadd.f32 %v264, %v820
    %v822 = vpop.f32.mrb[0].mxu0
    %823 = vmatprep.mubr.f32.mxu0 0.0
    %824 = vmatmul.mubr.f32.gmra.mrb[0].mxu0 %v626
    %v825 = vpop.f32.mrb[0].mxu0
    %v826 = vadd.f32 %v265, %v825
    %v827 = vpop.f32.mrb[0].mxu0
    %828 = vmatprep.mubr.f32.mxu0 0.0
    %829 = vmatmul.mubr.f32.gmra.mrb[0].mxu0 %v629
    %v830 = vpop.f32.mrb[0].mxu0
    %v831 = vadd.f32 %v266, %v830
    %v832 = vpop.f32.mrb[0].mxu0
    %833 = vmatprep.mubr.f32.mxu0 0.0
    %834 = vmatmul.mubr.f32.gmra.mrb[0].mxu0 %v632
    %v835 = vpop.f32.mrb[0].mxu0
    %v836 = vadd.f32 %v267, %v835
    %v837 = vpop.f32.mrb[0].mxu0
    %838 = vmatprep.mubr.f32.mxu0 0.0
    %839 = vmatmul.mubr.f32.gmra.mrb[0].mxu0 %v635
    %v840 = vpop.f32.mrb[0].mxu0
    %v841 = vadd.f32 %v268, %v840
    %v842 = vpop.f32.mrb[0].mxu0
    %843 = vmatprep.mubr.f32.mxu0 0.0
    %844 = vmatmul.mubr.f32.gmra.mrb[0].mxu0 %v638
    %v845 = vpop.f32.mrb[0].mxu0
    %v846 = vadd.f32 %v269, %v845
    %v847 = vpop.f32.mrb[0].mxu0
    %848 = vmatprep.mubr.f32.mxu0 0.0
    %849 = vmatmul.mubr.f32.gmra.mrb[0].mxu0 %v641
    %v850 = vpop.f32.mrb[0].mxu0
    %v851 = vadd.f32 %v270, %v850
    %v852 = vpop.f32.mrb[0].mxu0
    %853 = vmatprep.mubr.f32.mxu0 0.0
    %854 = vmatmul.mubr.f32.gmra.mrb[0].mxu0 %v644
    %v855 = vpop.f32.mrb[0].mxu0
    %v856 = vadd.f32 %v271, %v855
    %v857 = vpop.f32.mrb[0].mxu0
    %858 = vmatprep.mubr.f32.mxu0 0.0
    %859 = vmatmul.mubr.f32.gmra.mrb[0].mxu0 %v647
    %v860 = vpop.f32.mrb[0].mxu0
    %v861 = vadd.f32 %v272, %v860
    %v862 = vpop.f32.mrb[0].mxu0
    %863 = vmatprep.mubr.f32.mxu0 0.0
    %864 = vmatmul.mubr.f32.gmra.mrb[0].mxu0 %v650
    %v865 = vpop.f32.mrb[0].mxu0
    %v866 = vadd.f32 %v273, %v865
    %v867 = vpop.f32.mrb[0].mxu0
    %868 = vmatprep.mubr.f32.mxu0 0.0
    %869 = vmatmul.mubr.f32.gmra.mrb[0].mxu0 %v653
    %v870 = vpop.f32.mrb[0].mxu0
    %v871 = vadd.f32 %v274, %v870
    %v872 = vpop.f32.mrb[0].mxu0
    %873 = vmatprep.mubr.f32.mxu0 0.0
    %874 = vmatmul.mubr.f32.gmra.mrb[0].mxu0 %v656
    %v875 = vpop.f32.mrb[0].mxu0
    %v876 = vadd.f32 %v275, %v875
    %v877 = vpop.f32.mrb[0].mxu0
    %878 = vmatprep.mubr.f32.mxu0 0.0
    %879 = vmatmul.mubr.f32.gmra.mrb[0].mxu0 %v659
    %v880 = vpop.f32.mrb[0].mxu0
    %v881 = vadd.f32 %v276, %v880
    %v882 = vpop.f32.mrb[0].mxu0
    %883 = vmatprep.mubr.f32.mxu0 0.0
    %884 = vmatmul.mubr.f32.gmra.mrb[0].mxu0 %v662
    %v885 = vpop.f32.mrb[0].mxu0
    %v886 = vadd.f32 %v277, %v885
    %v887 = vpop.f32.mrb[0].mxu0
    %888 = vmatprep.mubr.f32.mxu0 0.0
    %889 = vmatmul.mubr.f32.gmra.mrb[0].mxu0 %v665
    %v890 = vpop.f32.mrb[0].mxu0
    %v891 = vadd.f32 %v278, %v890
    %v892 = vpop.f32.mrb[0].mxu0
    %893 = vmatprep.mubr.f32.mxu0 0.0
    %894 = vmatmul.mubr.f32.gmra.mrb[0].mxu0 %v668
    %v895 = vpop.f32.mrb[0].mxu0
    %v896 = vadd.f32 %v279, %v895
    %v897 = vpop.f32.mrb[0].mxu0
    %898 = vmatprep.mubr.f32.mxu0 0.0
    %899 = vmatmul.mubr.f32.gmra.mrb[0].mxu0 %v671
    %v900 = vpop.f32.mrb[0].mxu0
    %v901 = vadd.f32 %v280, %v900
    %v902 = vpop.f32.mrb[0].mxu0
    %903 = vmatprep.mubr.f32.mxu0 0.0
    %904 = vmatmul.mubr.f32.gmra.mrb[0].mxu0 %v674
    %v905 = vpop.f32.mrb[0].mxu0
    %v906 = vadd.f32 %v281, %v905
    %v907 = vpop.f32.mrb[0].mxu0
    %908 = vdwg.mxu0
    %v909 = vsel %vm291, %v751, -inf
    %910 = vmax.xlane.f32.xlu0 %v909
    %v911 = vpop.xlane.xlu0 %910
    %v912 = vsel %vm291, %v756, -inf
    %913 = vmax.xlane.f32.xlu0 %v912
    %v914 = vpop.xlane.xlu0 %913
    %v915 = vsel %vm291, %v761, -inf
    %916 = vmax.xlane.f32.xlu0 %v915
    %v917 = vpop.xlane.xlu0 %916
    %v918 = vsel %vm291, %v766, -inf
    %919 = vmax.xlane.f32.xlu0 %v918
    %v920 = vpop.xlane.xlu0 %919
    %v921 = vsel %vm291, %v771, -inf
    %922 = vmax.xlane.f32.xlu0 %v921
    %v923 = vpop.xlane.xlu0 %922
    %v924 = vsel %vm291, %v776, -inf
    %925 = vmax.xlane.f32.xlu0 %v924
    %v926 = vpop.xlane.xlu0 %925
    %v927 = vsel %vm291, %v781, -inf
    %928 = vmax.xlane.f32.xlu0 %v927
    %v929 = vpop.xlane.xlu0 %928
    %v930 = vsel %vm291, %v786, -inf
    %931 = vmax.xlane.f32.xlu0 %v930
    %v932 = vpop.xlane.xlu0 %931
    %v933 = vsel %vm291, %v791, -inf
    %934 = vmax.xlane.f32.xlu0 %v933
    %v935 = vpop.xlane.xlu0 %934
    %v936 = vsel %vm291, %v796, -inf
    %937 = vmax.xlane.f32.xlu0 %v936
    %v938 = vpop.xlane.xlu0 %937
    %v939 = vsel %vm291, %v801, -inf
    %940 = vmax.xlane.f32.xlu0 %v939
    %v941 = vpop.xlane.xlu0 %940
    %v942 = vsel %vm291, %v806, -inf
    %943 = vmax.xlane.f32.xlu0 %v942
    %v944 = vpop.xlane.xlu0 %943
    %v945 = vsel %vm291, %v811, -inf
    %946 = vmax.xlane.f32.xlu0 %v945
    %v947 = vpop.xlane.xlu0 %946
    %v948 = vsel %vm291, %v816, -inf
    %949 = vmax.xlane.f32.xlu0 %v948
    %v950 = vpop.xlane.xlu0 %949
    %v951 = vsel %vm291, %v821, -inf
    %952 = vmax.xlane.f32.xlu0 %v951
    %v953 = vpop.xlane.xlu0 %952
    %v954 = vsel %vm291, %v826, -inf
    %955 = vmax.xlane.f32.xlu0 %v954
    %v956 = vpop.xlane.xlu0 %955
    %v957 = vsel %vm291, %v831, -inf
    %958 = vmax.xlane.f32.xlu0 %v957
    %v959 = vpop.xlane.xlu0 %958
    %v960 = vsel %vm291, %v836, -inf
    %961 = vmax.xlane.f32.xlu0 %v960
    %v962 = vpop.xlane.xlu0 %961
    %v963 = vsel %vm291, %v841, -inf
    %964 = vmax.xlane.f32.xlu0 %v963
    %v965 = vpop.xlane.xlu0 %964
    %v966 = vsel %vm291, %v846, -inf
    %967 = vmax.xlane.f32.xlu0 %v966
    %v968 = vpop.xlane.xlu0 %967
    %v969 = vsel %vm291, %v851, -inf
    %970 = vmax.xlane.f32.xlu0 %v969
    %v971 = vpop.xlane.xlu0 %970
    %v972 = vsel %vm291, %v856, -inf
    %973 = vmax.xlane.f32.xlu0 %v972
    %v974 = vpop.xlane.xlu0 %973
    %v975 = vsel %vm291, %v861, -inf
    %976 = vmax.xlane.f32.xlu0 %v975
    %v977 = vpop.xlane.xlu0 %976
    %v978 = vsel %vm291, %v866, -inf
    %979 = vmax.xlane.f32.xlu0 %v978
    %v980 = vpop.xlane.xlu0 %979
    %v981 = vsel %vm291, %v871, -inf
    %982 = vmax.xlane.f32.xlu0 %v981
    %v983 = vpop.xlane.xlu0 %982
    %v984 = vsel %vm291, %v876, -inf
    %985 = vmax.xlane.f32.xlu0 %v984
    %v986 = vpop.xlane.xlu0 %985
    %v987 = vsel %vm291, %v881, -inf
    %988 = vmax.xlane.f32.xlu0 %v987
    %v989 = vpop.xlane.xlu0 %988
    %v990 = vsel %vm291, %v886, -inf
    %991 = vmax.xlane.f32.xlu0 %v990
    %v992 = vpop.xlane.xlu0 %991
    %v993 = vsel %vm291, %v891, -inf
    %994 = vmax.xlane.f32.xlu0 %v993
    %v995 = vpop.xlane.xlu0 %994
    %v996 = vsel %vm291, %v896, -inf
    %997 = vmax.xlane.f32.xlu0 %v996
    %v998 = vpop.xlane.xlu0 %997
    %v999 = vsel %vm291, %v901, -inf
    %1000 = vmax.xlane.f32.xlu0 %v999
    %v1001 = vpop.xlane.xlu0 %1000
    %v1002 = vsel %vm291, %v906, -inf
    %1003 = vmax.xlane.f32.xlu0 %v1002
    %v1004 = vpop.xlane.xlu0 %1003
    %v1005 = vsub.f32 %v751, %v911
    %v1006 = vsub.f32 %v756, %v914
    %v1007 = vsub.f32 %v761, %v917
    %v1008 = vsub.f32 %v766, %v920
    %v1009 = vsub.f32 %v771, %v923
    %v1010 = vsub.f32 %v776, %v926
    %v1011 = vsub.f32 %v781, %v929
    %v1012 = vsub.f32 %v786, %v932
    %v1013 = vsub.f32 %v791, %v935
    %v1014 = vsub.f32 %v796, %v938
    %v1015 = vsub.f32 %v801, %v941
    %v1016 = vsub.f32 %v806, %v944
    %v1017 = vsub.f32 %v811, %v947
    %v1018 = vsub.f32 %v816, %v950
    %v1019 = vsub.f32 %v821, %v953
    %v1020 = vsub.f32 %v826, %v956
    %v1021 = vsub.f32 %v831, %v959
    %v1022 = vsub.f32 %v836, %v962
    %v1023 = vsub.f32 %v841, %v965
    %v1024 = vsub.f32 %v846, %v968
    %v1025 = vsub.f32 %v851, %v971
    %v1026 = vsub.f32 %v856, %v974
    %v1027 = vsub.f32 %v861, %v977
    %v1028 = vsub.f32 %v866, %v980
    %v1029 = vsub.f32 %v871, %v983
    %v1030 = vsub.f32 %v876, %v986
    %v1031 = vsub.f32 %v881, %v989
    %v1032 = vsub.f32 %v886, %v992
    %v1033 = vsub.f32 %v891, %v995
    %v1034 = vsub.f32 %v896, %v998
    %v1035 = vsub.f32 %v901, %v1001
    %v1036 = vsub.f32 %v906, %v1004
    %v1037 = vmul.f32 %v1005, 1.442695
    %v1038 = vpow.pop %v1037
    %v1039 = vmul.f32 %v1006, 1.442695
    %v1040 = vpow.pop %v1039
    %v1041 = vmul.f32 %v1007, 1.442695
    %v1042 = vpow.pop %v1041
    %v1043 = vmul.f32 %v1008, 1.442695
    %v1044 = vpow.pop %v1043
    %v1045 = vmul.f32 %v1009, 1.442695
    %v1046 = vpow.pop %v1045
    %v1047 = vmul.f32 %v1010, 1.442695
    %v1048 = vpow.pop %v1047
    %v1049 = vmul.f32 %v1011, 1.442695
    %v1050 = vpow.pop %v1049
    %v1051 = vmul.f32 %v1012, 1.442695
    %v1052 = vpow.pop %v1051
    %v1053 = vmul.f32 %v1013, 1.442695
    %v1054 = vpow.pop %v1053
    %v1055 = vmul.f32 %v1014, 1.442695
    %v1056 = vpow.pop %v1055
    %v1057 = vmul.f32 %v1015, 1.442695
    %v1058 = vpow.pop %v1057
    %v1059 = vmul.f32 %v1016, 1.442695
    %v1060 = vpow.pop %v1059
    %v1061 = vmul.f32 %v1017, 1.442695
    %v1062 = vpow.pop %v1061
    %v1063 = vmul.f32 %v1018, 1.442695
    %v1064 = vpow.pop %v1063
    %v1065 = vmul.f32 %v1019, 1.442695
    %v1066 = vpow.pop %v1065
    %v1067 = vmul.f32 %v1020, 1.442695
    %v1068 = vpow.pop %v1067
    %v1069 = vmul.f32 %v1021, 1.442695
    %v1070 = vpow.pop %v1069
    %v1071 = vmul.f32 %v1022, 1.442695
    %v1072 = vpow.pop %v1071
    %v1073 = vmul.f32 %v1023, 1.442695
    %v1074 = vpow.pop %v1073
    %v1075 = vmul.f32 %v1024, 1.442695
    %v1076 = vpow.pop %v1075
    %v1077 = vmul.f32 %v1025, 1.442695
    %v1078 = vpow.pop %v1077
    %v1079 = vmul.f32 %v1026, 1.442695
    %v1080 = vpow.pop %v1079
    %v1081 = vmul.f32 %v1027, 1.442695
    %v1082 = vpow.pop %v1081
    %v1083 = vmul.f32 %v1028, 1.442695
    %v1084 = vpow.pop %v1083
    %v1085 = vmul.f32 %v1029, 1.442695
    %v1086 = vpow.pop %v1085
    %v1087 = vmul.f32 %v1030, 1.442695
    %v1088 = vpow.pop %v1087
    %v1089 = vmul.f32 %v1031, 1.442695
    %v1090 = vpow.pop %v1089
    %v1091 = vmul.f32 %v1032, 1.442695
    %v1092 = vpow.pop %v1091
    %v1093 = vmul.f32 %v1033, 1.442695
    %v1094 = vpow.pop %v1093
    %v1095 = vmul.f32 %v1034, 1.442695
    %v1096 = vpow.pop %v1095
    %v1097 = vmul.f32 %v1035, 1.442695
    %v1098 = vpow.pop %v1097
    %v1099 = vmul.f32 %v1036, 1.442695
    %v1100 = vpow.pop %v1099
    %v1101 = vsel %vm291, %v1038, 0.0
    %1102 = vadd.xlane.f32.xlu0 %v1101
    %v1103 = vpop.xlane.xlu0 %1102
    %v1104 = vsel %vm291, %v1040, 0.0
    %1105 = vadd.xlane.f32.xlu0 %v1104
    %v1106 = vpop.xlane.xlu0 %1105
    %v1107 = vsel %vm291, %v1042, 0.0
    %1108 = vadd.xlane.f32.xlu0 %v1107
    %v1109 = vpop.xlane.xlu0 %1108
    %v1110 = vsel %vm291, %v1044, 0.0
    %1111 = vadd.xlane.f32.xlu0 %v1110
    %v1112 = vpop.xlane.xlu0 %1111
    %v1113 = vsel %vm291, %v1046, 0.0
    %1114 = vadd.xlane.f32.xlu0 %v1113
    %v1115 = vpop.xlane.xlu0 %1114
    %v1116 = vsel %vm291, %v1048, 0.0
    %1117 = vadd.xlane.f32.xlu0 %v1116
    %v1118 = vpop.xlane.xlu0 %1117
    %v1119 = vsel %vm291, %v1050, 0.0
    %1120 = vadd.xlane.f32.xlu0 %v1119
    %v1121 = vpop.xlane.xlu0 %1120
    %v1122 = vsel %vm291, %v1052, 0.0
    %1123 = vadd.xlane.f32.xlu0 %v1122
    %v1124 = vpop.xlane.xlu0 %1123
    %v1125 = vsel %vm291, %v1054, 0.0
    %1126 = vadd.xlane.f32.xlu0 %v1125
    %v1127 = vpop.xlane.xlu0 %1126
    %v1128 = vsel %vm291, %v1056, 0.0
    %1129 = vadd.xlane.f32.xlu0 %v1128
    %v1130 = vpop.xlane.xlu0 %1129
    %v1131 = vsel %vm291, %v1058, 0.0
    %1132 = vadd.xlane.f32.xlu0 %v1131
    %v1133 = vpop.xlane.xlu0 %1132
    %v1134 = vsel %vm291, %v1060, 0.0
    %1135 = vadd.xlane.f32.xlu0 %v1134
    %v1136 = vpop.xlane.xlu0 %1135
    %v1137 = vsel %vm291, %v1062, 0.0
    %1138 = vadd.xlane.f32.xlu0 %v1137
    %v1139 = vpop.xlane.xlu0 %1138
    %v1140 = vsel %vm291, %v1064, 0.0
    %1141 = vadd.xlane.f32.xlu0 %v1140
    %v1142 = vpop.xlane.xlu0 %1141
    %v1143 = vsel %vm291, %v1066, 0.0
    %1144 = vadd.xlane.f32.xlu0 %v1143
    %v1145 = vpop.xlane.xlu0 %1144
    %v1146 = vsel %vm291, %v1068, 0.0
    %1147 = vadd.xlane.f32.xlu0 %v1146
    %v1148 = vpop.xlane.xlu0 %1147
    %v1149 = vsel %vm291, %v1070, 0.0
    %1150 = vadd.xlane.f32.xlu0 %v1149
    %v1151 = vpop.xlane.xlu0 %1150
    %v1152 = vsel %vm291, %v1072, 0.0
    %1153 = vadd.xlane.f32.xlu0 %v1152
    %v1154 = vpop.xlane.xlu0 %1153
    %v1155 = vsel %vm291, %v1074, 0.0
    %1156 = vadd.xlane.f32.xlu0 %v1155
    %v1157 = vpop.xlane.xlu0 %1156
    %v1158 = vsel %vm291, %v1076, 0.0
    %1159 = vadd.xlane.f32.xlu0 %v1158
    %v1160 = vpop.xlane.xlu0 %1159
    %v1161 = vsel %vm291, %v1078, 0.0
    %1162 = vadd.xlane.f32.xlu0 %v1161
    %v1163 = vpop.xlane.xlu0 %1162
    %v1164 = vsel %vm291, %v1080, 0.0
    %1165 = vadd.xlane.f32.xlu0 %v1164
    %v1166 = vpop.xlane.xlu0 %1165
    %v1167 = vsel %vm291, %v1082, 0.0
    %1168 = vadd.xlane.f32.xlu0 %v1167
    %v1169 = vpop.xlane.xlu0 %1168
    %v1170 = vsel %vm291, %v1084, 0.0
    %1171 = vadd.xlane.f32.xlu0 %v1170
    %v1172 = vpop.xlane.xlu0 %1171
    %v1173 = vsel %vm291, %v1086, 0.0
    %1174 = vadd.xlane.f32.xlu0 %v1173
    %v1175 = vpop.xlane.xlu0 %1174
    %v1176 = vsel %vm291, %v1088, 0.0
    %1177 = vadd.xlane.f32.xlu0 %v1176
    %v1178 = vpop.xlane.xlu0 %1177
    %v1179 = vsel %vm291, %v1090, 0.0
    %1180 = vadd.xlane.f32.xlu0 %v1179
    %v1181 = vpop.xlane.xlu0 %1180
    %v1182 = vsel %vm291, %v1092, 0.0
    %1183 = vadd.xlane.f32.xlu0 %v1182
    %v1184 = vpop.xlane.xlu0 %1183
    %v1185 = vsel %vm291, %v1094, 0.0
    %1186 = vadd.xlane.f32.xlu0 %v1185
    %v1187 = vpop.xlane.xlu0 %1186
    %v1188 = vsel %vm291, %v1096, 0.0
    %1189 = vadd.xlane.f32.xlu0 %v1188
    %v1190 = vpop.xlane.xlu0 %1189
    %v1191 = vsel %vm291, %v1098, 0.0
    %1192 = vadd.xlane.f32.xlu0 %v1191
    %v1193 = vpop.xlane.xlu0 %1192
    %v1194 = vsel %vm291, %v1100, 0.0
    %1195 = vadd.xlane.f32.xlu0 %v1194
    %v1196 = vpop.xlane.xlu0 %1195
    %v1198 = vsel %vm291, %v1038, 0
    %v1201 = vsel %vm291, %v1040, 0
    %v1204 = vsel %vm291, %v1042, 0
    %v1207 = vsel %vm291, %v1044, 0
    %v1210 = vsel %vm291, %v1046, 0
    %v1213 = vsel %vm291, %v1048, 0
    %v1216 = vsel %vm291, %v1050, 0
    %v1219 = vsel %vm291, %v1052, 0
    %v1222 = vsel %vm291, %v1054, 0
    %v1225 = vsel %vm291, %v1056, 0
    %v1228 = vsel %vm291, %v1058, 0
    %v1231 = vsel %vm291, %v1060, 0
    %v1234 = vsel %vm291, %v1062, 0
    %v1237 = vsel %vm291, %v1064, 0
    %v1240 = vsel %vm291, %v1066, 0
    %v1243 = vsel %vm291, %v1068, 0
    %v1246 = vsel %vm291, %v1070, 0
    %v1249 = vsel %vm291, %v1072, 0
    %v1252 = vsel %vm291, %v1074, 0
    %v1255 = vsel %vm291, %v1076, 0
    %v1258 = vsel %vm291, %v1078, 0
    %v1261 = vsel %vm291, %v1080, 0
    %v1264 = vsel %vm291, %v1082, 0
    %v1267 = vsel %vm291, %v1084, 0
    %v1270 = vsel %vm291, %v1086, 0
    %v1273 = vsel %vm291, %v1088, 0
    %v1276 = vsel %vm291, %v1090, 0
    %v1279 = vsel %vm291, %v1092, 0
    %v1282 = vsel %vm291, %v1094, 0
    %v1285 = vsel %vm291, %v1096, 0
    %v1288 = vsel %vm291, %v1098, 0
    %v1291 = vsel %vm291, %v1100, 0
    %1293 = vmatprep.subr.mxu0 0.0
    %1294 = vmatpush1.msra.mxu0 %v512
    %1295 = vmatprep.subr.mxu0 0.0
    %1296 = vmatpush1.msra.mxu0 %v518
    %1297 = vmatprep.subr.mxu0 0.0
    %1298 = vmatpush1.msra.mxu0 %v524
    %1299 = vmatprep.subr.mxu0 0.0
    %1300 = vmatpush1.msra.mxu0 %v530
    %1301 = vmatprep.subr.mxu0 0.0
    %1302 = vmatpush1.msra.mxu0 0.0
    %1303 = vmatprep.subr.mxu0 0.0
    %1304 = vmatpush1.msra.mxu0 0.0
    %1305 = vmatprep.subr.mxu0 0.0
    %1306 = vmatpush1.msra.mxu0 0.0
    %1307 = vmatprep.subr.mxu0 0.0
    %1308 = vmatpush1.msra.mxu0 0.0
    %1309 = vmatprep.subr.mxu0 0.0
    %1310 = vmatpush1.msra.mxu0 0.0
    %1311 = vmatprep.subr.mxu0 0.0
    %1312 = vmatpush1.msra.mxu0 0.0
    %1313 = vmatprep.subr.mxu0 0.0
    %1314 = vmatpush1.msra.mxu0 0.0
    %1315 = vmatprep.subr.mxu0 0.0
    %1316 = vmatpush1.msra.mxu0 0.0
    %1317 = vmatprep.subr.mxu0 0.0
    %1318 = vmatpush1.msra.mxu0 0.0
    %1319 = vmatprep.subr.mxu0 0.0
    %1320 = vmatpush1.msra.mxu0 0.0
    %1321 = vmatprep.subr.mxu0 0.0
    %1322 = vmatpush1.msra.mxu0 0.0
    %1323 = vmatprep.subr.mxu0 0.0
    %1324 = vmatpush1.msra.mxu0 0.0
    %1325 = vmatprep.subr.mxu0 0.0
    %1326 = vmatpush1.msra.mxu0 0.0
    %1327 = vmatprep.subr.mxu0 0.0
    %1328 = vmatpush1.msra.mxu0 0.0
    %1329 = vmatprep.subr.mxu0 0.0
    %1330 = vmatpush1.msra.mxu0 0.0
    %1331 = vmatprep.subr.mxu0 0.0
    %1332 = vmatpush1.msra.mxu0 0.0
    %1333 = vmatprep.subr.mxu0 0.0
    %1334 = vmatpush1.msra.mxu0 0.0
    %1335 = vmatprep.subr.mxu0 0.0
    %1336 = vmatpush1.msra.mxu0 0.0
    %1337 = vmatprep.subr.mxu0 0.0
    %1338 = vmatpush1.msra.mxu0 0.0
    %1339 = vmatprep.subr.mxu0 0.0
    %1340 = vmatpush1.msra.mxu0 0.0
    %1341 = vmatprep.subr.mxu0 0.0
    %1342 = vmatpush1.msra.mxu0 0.0
    %1343 = vmatprep.subr.mxu0 0.0
    %1344 = vmatpush1.msra.mxu0 0.0
    %1345 = vmatprep.subr.mxu0 0.0
    %1346 = vmatpush1.msra.mxu0 0.0
    %1347 = vmatprep.subr.mxu0 0.0
    %1348 = vmatpush1.msra.mxu0 0.0
    %1349 = vmatprep.subr.mxu0 0.0
    %1350 = vmatpush1.msra.mxu0 0.0
    %1351 = vmatprep.subr.mxu0 0.0
    %1352 = vmatpush1.msra.mxu0 0.0
    %1353 = vmatprep.subr.mxu0 0.0
    %1354 = vmatpush1.msra.mxu0 0.0
    %1355 = vmatprep.subr.mxu0 0.0
    %1356 = vmatpush1.msra.mxu0 0.0
    %1357 = vmatprep.mubr.f32.mxu0 0.0
    %1358 = vmatmul.mubr.f32.gmra.mrb[0].mxu0 %v1198
    %v1359 = vpop.f32.mrb[0].mxu0
    %v1360 = vadd.f32 0.0, %v1359
    %v1361 = vpop.f32.mrb[0].mxu0
    %1362 = vmatprep.mubr.f32.mxu0 0.0
    %1363 = vmatmul.mubr.f32.gmra.mrb[0].mxu0 %v1201
    %v1364 = vpop.f32.mrb[0].mxu0
    %v1365 = vadd.f32 0.0, %v1364
    %v1366 = vpop.f32.mrb[0].mxu0
    %1367 = vmatprep.mubr.f32.mxu0 0.0
    %1368 = vmatmul.mubr.f32.gmra.mrb[0].mxu0 %v1204
    %v1369 = vpop.f32.mrb[0].mxu0
    %v1370 = vadd.f32 0.0, %v1369
    %v1371 = vpop.f32.mrb[0].mxu0
    %1372 = vmatprep.mubr.f32.mxu0 0.0
    %1373 = vmatmul.mubr.f32.gmra.mrb[0].mxu0 %v1207
    %v1374 = vpop.f32.mrb[0].mxu0
    %v1375 = vadd.f32 0.0, %v1374
    %v1376 = vpop.f32.mrb[0].mxu0
    %1377 = vmatprep.mubr.f32.mxu0 0.0
    %1378 = vmatmul.mubr.f32.gmra.mrb[0].mxu0 %v1210
    %v1379 = vpop.f32.mrb[0].mxu0
    %v1380 = vadd.f32 0.0, %v1379
    %v1381 = vpop.f32.mrb[0].mxu0
    %1382 = vmatprep.mubr.f32.mxu0 0.0
    %1383 = vmatmul.mubr.f32.gmra.mrb[0].mxu0 %v1213
    %v1384 = vpop.f32.mrb[0].mxu0
    %v1385 = vadd.f32 0.0, %v1384
    %v1386 = vpop.f32.mrb[0].mxu0
    %1387 = vmatprep.mubr.f32.mxu0 0.0
    %1388 = vmatmul.mubr.f32.gmra.mrb[0].mxu0 %v1216
    %v1389 = vpop.f32.mrb[0].mxu0
    %v1390 = vadd.f32 0.0, %v1389
    %v1391 = vpop.f32.mrb[0].mxu0
    %1392 = vmatprep.mubr.f32.mxu0 0.0
    %1393 = vmatmul.mubr.f32.gmra.mrb[0].mxu0 %v1219
    %v1394 = vpop.f32.mrb[0].mxu0
    %v1395 = vadd.f32 0.0, %v1394
    %v1396 = vpop.f32.mrb[0].mxu0
    %1397 = vmatprep.mubr.f32.mxu0 0.0
    %1398 = vmatmul.mubr.f32.gmra.mrb[0].mxu0 %v1222
    %v1399 = vpop.f32.mrb[0].mxu0
    %v1400 = vadd.f32 0.0, %v1399
    %v1401 = vpop.f32.mrb[0].mxu0
    %1402 = vmatprep.mubr.f32.mxu0 0.0
    %1403 = vmatmul.mubr.f32.gmra.mrb[0].mxu0 %v1225
    %v1404 = vpop.f32.mrb[0].mxu0
    %v1405 = vadd.f32 0.0, %v1404
    %v1406 = vpop.f32.mrb[0].mxu0
    %1407 = vmatprep.mubr.f32.mxu0 0.0
    %1408 = vmatmul.mubr.f32.gmra.mrb[0].mxu0 %v1228
    %v1409 = vpop.f32.mrb[0].mxu0
    %v1410 = vadd.f32 0.0, %v1409
    %v1411 = vpop.f32.mrb[0].mxu0
    %1412 = vmatprep.mubr.f32.mxu0 0.0
    %1413 = vmatmul.mubr.f32.gmra.mrb[0].mxu0 %v1231
    %v1414 = vpop.f32.mrb[0].mxu0
    %v1415 = vadd.f32 0.0, %v1414
    %v1416 = vpop.f32.mrb[0].mxu0
    %1417 = vmatprep.mubr.f32.mxu0 0.0
    %1418 = vmatmul.mubr.f32.gmra.mrb[0].mxu0 %v1234
    %v1419 = vpop.f32.mrb[0].mxu0
    %v1420 = vadd.f32 0.0, %v1419
    %v1421 = vpop.f32.mrb[0].mxu0
    %1422 = vmatprep.mubr.f32.mxu0 0.0
    %1423 = vmatmul.mubr.f32.gmra.mrb[0].mxu0 %v1237
    %v1424 = vpop.f32.mrb[0].mxu0
    %v1425 = vadd.f32 0.0, %v1424
    %v1426 = vpop.f32.mrb[0].mxu0
    %1427 = vmatprep.mubr.f32.mxu0 0.0
    %1428 = vmatmul.mubr.f32.gmra.mrb[0].mxu0 %v1240
    %v1429 = vpop.f32.mrb[0].mxu0
    %v1430 = vadd.f32 0.0, %v1429
    %v1431 = vpop.f32.mrb[0].mxu0
    %1432 = vmatprep.mubr.f32.mxu0 0.0
    %1433 = vmatmul.mubr.f32.gmra.mrb[0].mxu0 %v1243
    %v1434 = vpop.f32.mrb[0].mxu0
    %v1435 = vadd.f32 0.0, %v1434
    %v1436 = vpop.f32.mrb[0].mxu0
    %1437 = vmatprep.mubr.f32.mxu0 0.0
    %1438 = vmatmul.mubr.f32.gmra.mrb[0].mxu0 %v1246
    %v1439 = vpop.f32.mrb[0].mxu0
    %v1440 = vadd.f32 0.0, %v1439
    %v1441 = vpop.f32.mrb[0].mxu0
    %1442 = vmatprep.mubr.f32.mxu0 0.0
    %1443 = vmatmul.mubr.f32.gmra.mrb[0].mxu0 %v1249
    %v1444 = vpop.f32.mrb[0].mxu0
    %v1445 = vadd.f32 0.0, %v1444
    %v1446 = vpop.f32.mrb[0].mxu0
    %1447 = vmatprep.mubr.f32.mxu0 0.0
    %1448 = vmatmul.mubr.f32.gmra.mrb[0].mxu0 %v1252
    %v1449 = vpop.f32.mrb[0].mxu0
    %v1450 = vadd.f32 0.0, %v1449
    %v1451 = vpop.f32.mrb[0].mxu0
    %1452 = vmatprep.mubr.f32.mxu0 0.0
    %1453 = vmatmul.mubr.f32.gmra.mrb[0].mxu0 %v1255
    %v1454 = vpop.f32.mrb[0].mxu0
    %v1455 = vadd.f32 0.0, %v1454
    %v1456 = vpop.f32.mrb[0].mxu0
    %1457 = vmatprep.mubr.f32.mxu0 0.0
    %1458 = vmatmul.mubr.f32.gmra.mrb[0].mxu0 %v1258
    %v1459 = vpop.f32.mrb[0].mxu0
    %v1460 = vadd.f32 0.0, %v1459
    %v1461 = vpop.f32.mrb[0].mxu0
    %1462 = vmatprep.mubr.f32.mxu0 0.0
    %1463 = vmatmul.mubr.f32.gmra.mrb[0].mxu0 %v1261
    %v1464 = vpop.f32.mrb[0].mxu0
    %v1465 = vadd.f32 0.0, %v1464
    %v1466 = vpop.f32.mrb[0].mxu0
    %1467 = vmatprep.mubr.f32.mxu0 0.0
    %1468 = vmatmul.mubr.f32.gmra.mrb[0].mxu0 %v1264
    %v1469 = vpop.f32.mrb[0].mxu0
    %v1470 = vadd.f32 0.0, %v1469
    %v1471 = vpop.f32.mrb[0].mxu0
    %1472 = vmatprep.mubr.f32.mxu0 0.0
    %1473 = vmatmul.mubr.f32.gmra.mrb[0].mxu0 %v1267
    %v1474 = vpop.f32.mrb[0].mxu0
    %v1475 = vadd.f32 0.0, %v1474
    %v1476 = vpop.f32.mrb[0].mxu0
    %1477 = vmatprep.mubr.f32.mxu0 0.0
    %1478 = vmatmul.mubr.f32.gmra.mrb[0].mxu0 %v1270
    %v1479 = vpop.f32.mrb[0].mxu0
    %v1480 = vadd.f32 0.0, %v1479
    %v1481 = vpop.f32.mrb[0].mxu0
    %1482 = vmatprep.mubr.f32.mxu0 0.0
    %1483 = vmatmul.mubr.f32.gmra.mrb[0].mxu0 %v1273
    %v1484 = vpop.f32.mrb[0].mxu0
    %v1485 = vadd.f32 0.0, %v1484
    %v1486 = vpop.f32.mrb[0].mxu0
    %1487 = vmatprep.mubr.f32.mxu0 0.0
    %1488 = vmatmul.mubr.f32.gmra.mrb[0].mxu0 %v1276
    %v1489 = vpop.f32.mrb[0].mxu0
    %v1490 = vadd.f32 0.0, %v1489
    %v1491 = vpop.f32.mrb[0].mxu0
    %1492 = vmatprep.mubr.f32.mxu0 0.0
    %1493 = vmatmul.mubr.f32.gmra.mrb[0].mxu0 %v1279
    %v1494 = vpop.f32.mrb[0].mxu0
    %v1495 = vadd.f32 0.0, %v1494
    %v1496 = vpop.f32.mrb[0].mxu0
    %1497 = vmatprep.mubr.f32.mxu0 0.0
    %1498 = vmatmul.mubr.f32.gmra.mrb[0].mxu0 %v1282
    %v1499 = vpop.f32.mrb[0].mxu0
    %v1500 = vadd.f32 0.0, %v1499
    %v1501 = vpop.f32.mrb[0].mxu0
    %1502 = vmatprep.mubr.f32.mxu0 0.0
    %1503 = vmatmul.mubr.f32.gmra.mrb[0].mxu0 %v1285
    %v1504 = vpop.f32.mrb[0].mxu0
    %v1505 = vadd.f32 0.0, %v1504
    %v1506 = vpop.f32.mrb[0].mxu0
    %1507 = vmatprep.mubr.f32.mxu0 0.0
    %1508 = vmatmul.mubr.f32.gmra.mrb[0].mxu0 %v1288
    %v1509 = vpop.f32.mrb[0].mxu0
    %v1510 = vadd.f32 0.0, %v1509
    %v1511 = vpop.f32.mrb[0].mxu0
    %1512 = vmatprep.mubr.f32.mxu0 0.0
    %1513 = vmatmul.mubr.f32.gmra.mrb[0].mxu0 %v1291
    %v1514 = vpop.f32.mrb[0].mxu0
    %v1515 = vadd.f32 0.0, %v1514
    %v1516 = vpop.f32.mrb[0].mxu0
    %1517 = vdwg.mxu0
    %v1518 = vmul.f32 %v1360, %v121
    %v1519 = vmul.f32 %v1365, %v122
    %v1520 = vmul.f32 %v1370, %v123
    %v1521 = vmul.f32 %v1375, %v124
    %v1522 = vmul.f32 %v1380, %v125
    %v1523 = vmul.f32 %v1385, %v126
    %v1524 = vmul.f32 %v1390, %v127
    %v1525 = vmul.f32 %v1395, %v128
    %v1526 = vmul.f32 %v1400, %v129
    %v1527 = vmul.f32 %v1405, %v130
    %v1528 = vmul.f32 %v1410, %v131
    %v1529 = vmul.f32 %v1415, %v132
    %v1530 = vmul.f32 %v1420, %v133
    %v1531 = vmul.f32 %v1425, %v134
    %v1532 = vmul.f32 %v1430, %v135
    %v1533 = vmul.f32 %v1435, %v136
    %v1534 = vmul.f32 %v1440, %v137
    %v1535 = vmul.f32 %v1445, %v138
    %v1536 = vmul.f32 %v1450, %v139
    %v1537 = vmul.f32 %v1455, %v140
    %v1538 = vmul.f32 %v1460, %v141
    %v1539 = vmul.f32 %v1465, %v142
    %v1540 = vmul.f32 %v1470, %v143
    %v1541 = vmul.f32 %v1475, %v144
    %v1542 = vmul.f32 %v1480, %v145
    %v1543 = vmul.f32 %v1485, %v146
    %v1544 = vmul.f32 %v1490, %v147
    %v1545 = vmul.f32 %v1495, %v148
    %v1546 = vmul.f32 %v1500, %v149
    %v1547 = vmul.f32 %v1505, %v150
    %v1548 = vmul.f32 %v1510, %v151
    %v1549 = vmul.f32 %v1515, %v152
    %v1550 = vrcp.pop %v1103
    %v1551 = vrcp.pop %v1106
    %v1552 = vrcp.pop %v1109
    %v1553 = vrcp.pop %v1112
    %v1554 = vrcp.pop %v1115
    %v1555 = vrcp.pop %v1118
    %v1556 = vrcp.pop %v1121
    %v1557 = vrcp.pop %v1124
    %v1558 = vrcp.pop %v1127
    %v1559 = vrcp.pop %v1130
    %v1560 = vrcp.pop %v1133
    %v1561 = vrcp.pop %v1136
    %v1562 = vrcp.pop %v1139
    %v1563 = vrcp.pop %v1142
    %v1564 = vrcp.pop %v1145
    %v1565 = vrcp.pop %v1148
    %v1566 = vrcp.pop %v1151
    %v1567 = vrcp.pop %v1154
    %v1568 = vrcp.pop %v1157
    %v1569 = vrcp.pop %v1160
    %v1570 = vrcp.pop %v1163
    %v1571 = vrcp.pop %v1166
    %v1572 = vrcp.pop %v1169
    %v1573 = vrcp.pop %v1172
    %v1574 = vrcp.pop %v1175
    %v1575 = vrcp.pop %v1178
    %v1576 = vrcp.pop %v1181
    %v1577 = vrcp.pop %v1184
    %v1578 = vrcp.pop %v1187
    %v1579 = vrcp.pop %v1190
    %v1580 = vrcp.pop %v1193
    %v1581 = vrcp.pop %v1196
    %v1582 = vmul.f32 %v1518, %v1550
    %v1583 = vmul.f32 %v1519, %v1551
    %v1584 = vmul.f32 %v1520, %v1552
    %v1585 = vmul.f32 %v1521, %v1553
    %v1586 = vmul.f32 %v1522, %v1554
    %v1587 = vmul.f32 %v1523, %v1555
    %v1588 = vmul.f32 %v1524, %v1556
    %v1589 = vmul.f32 %v1525, %v1557
    %v1590 = vmul.f32 %v1526, %v1558
    %v1591 = vmul.f32 %v1527, %v1559
    %v1592 = vmul.f32 %v1528, %v1560
    %v1593 = vmul.f32 %v1529, %v1561
    %v1594 = vmul.f32 %v1530, %v1562
    %v1595 = vmul.f32 %v1531, %v1563
    %v1596 = vmul.f32 %v1532, %v1564
    %v1597 = vmul.f32 %v1533, %v1565
    %v1598 = vmul.f32 %v1534, %v1566
    %v1599 = vmul.f32 %v1535, %v1567
    %v1600 = vmul.f32 %v1536, %v1568
    %v1601 = vmul.f32 %v1537, %v1569
    %v1602 = vmul.f32 %v1538, %v1570
    %v1603 = vmul.f32 %v1539, %v1571
    %v1604 = vmul.f32 %v1540, %v1572
    %v1605 = vmul.f32 %v1541, %v1573
    %v1606 = vmul.f32 %v1542, %v1574
    %v1607 = vmul.f32 %v1543, %v1575
    %v1608 = vmul.f32 %v1544, %v1576
    %v1609 = vmul.f32 %v1545, %v1577
    %v1610 = vmul.f32 %v1546, %v1578
    %v1611 = vmul.f32 %v1547, %v1579
    %v1612 = vmul.f32 %v1548, %v1580
    %v1613 = vmul.f32 %v1549, %v1581
    %v1614 = vadd.f32 %v1582, %v1586
    %v1615 = vadd.f32 %v1583, %v1587
    %v1616 = vadd.f32 %v1584, %v1588
    %v1617 = vadd.f32 %v1585, %v1589
    %v1618 = vadd.f32 %v1590, %v1594
    %v1619 = vadd.f32 %v1591, %v1595
    %v1620 = vadd.f32 %v1592, %v1596
    %v1621 = vadd.f32 %v1593, %v1597
    %v1622 = vadd.f32 %v1598, %v1602
    %v1623 = vadd.f32 %v1599, %v1603
    %v1624 = vadd.f32 %v1600, %v1604
    %v1625 = vadd.f32 %v1601, %v1605
    %v1626 = vadd.f32 %v1606, %v1610
    %v1627 = vadd.f32 %v1607, %v1611
    %v1628 = vadd.f32 %v1608, %v1612
    %v1629 = vadd.f32 %v1609, %v1613
    %v1630 = vadd.f32 %v1614, %v1618
    %v1631 = vadd.f32 %v1615, %v1619
    %v1632 = vadd.f32 %v1616, %v1620
    %v1633 = vadd.f32 %v1617, %v1621
    %v1634 = vadd.f32 %v1622, %v1626
    %v1635 = vadd.f32 %v1623, %v1627
    %v1636 = vadd.f32 %v1624, %v1628
    %v1637 = vadd.f32 %v1625, %v1629
    %v1638 = vadd.f32 %v1630, %v1634
    %v1639 = vadd.f32 %v1631, %v1635
    %v1640 = vadd.f32 %v1632, %v1636
    %v1641 = vadd.f32 %v1633, %v1637
    %v1642 = vld [vmem:[%s4 + $0x41] ss:$0 sm:$0xff]
    %1651 = vrot.lane.b32.xlu0 %v402, 64
    %v1652 = vpop.permute.xlu0 %1651
    %1653 = vrot.lane.b32.xlu0 %v404, 64
    %v1654 = vpop.permute.xlu0 %1653
    %1655 = vrot.lane.b32.xlu0 %v406, 64
    %v1656 = vpop.permute.xlu0 %1655
    %1657 = vrot.lane.b32.xlu0 %v408, 64
    %v1658 = vpop.permute.xlu0 %1657
    %1659 = vrot.lane.b32.xlu0 %v410, 64
    %v1660 = vpop.permute.xlu0 %1659
    %1661 = vrot.lane.b32.xlu0 %v412, 64
    %v1662 = vpop.permute.xlu0 %1661
    %1663 = vrot.lane.b32.xlu0 %v414, 64
    %v1664 = vpop.permute.xlu0 %1663
    %1665 = vrot.lane.b32.xlu0 %v416, 64
    %v1666 = vpop.permute.xlu0 %1665
    %v1676 = vsel %vm430, %v1638, 0
    %v1679 = vsel %vm430, %v1639, 0
    %v1682 = vsel %vm430, %v1640, 0
    %v1685 = vsel %vm430, %v1641, 0
    %1687 = vmatprep.subr.mxu0 0.0
    %1688 = vmatpush1.msra.mxu0 %v1652
    %1689 = vmatprep.subr.mxu0 0.0
    %1690 = vmatpush1.msra.mxu0 %v1654
    %1691 = vmatprep.subr.mxu0 0.0
    %1692 = vmatpush1.msra.mxu0 %v1656
    %1693 = vmatprep.subr.mxu0 0.0
    %1694 = vmatpush1.msra.mxu0 %v1658
    %1695 = vmatprep.subr.mxu0 0.0
    %1696 = vmatpush1.msra.mxu0 %v1660
    %1697 = vmatprep.subr.mxu0 0.0
    %1698 = vmatpush1.msra.mxu0 %v1662
    %1699 = vmatprep.subr.mxu0 0.0
    %1700 = vmatpush1.msra.mxu0 %v1664
    %1701 = vmatprep.subr.mxu0 0.0
    %1702 = vmatpush1.msra.mxu0 %v1666
    %1703 = vmatprep.subr.mxu0 0.0
    %1704 = vmatpush1.msra.mxu0 0.0
    %1705 = vmatprep.subr.mxu0 0.0
    %1706 = vmatpush1.msra.mxu0 0.0
    %1707 = vmatprep.subr.mxu0 0.0
    %1708 = vmatpush1.msra.mxu0 0.0
    %1709 = vmatprep.subr.mxu0 0.0
    %1710 = vmatpush1.msra.mxu0 0.0
    %1711 = vmatprep.subr.mxu0 0.0
    %1712 = vmatpush1.msra.mxu0 0.0
    %1713 = vmatprep.subr.mxu0 0.0
    %1714 = vmatpush1.msra.mxu0 0.0
    %1715 = vmatprep.subr.mxu0 0.0
    %1716 = vmatpush1.msra.mxu0 0.0
    %1717 = vmatprep.subr.mxu0 0.0
    %1718 = vmatpush1.msra.mxu0 0.0
    %1719 = vmatprep.subr.mxu0 0.0
    %1720 = vmatpush1.msra.mxu0 0.0
    %1721 = vmatprep.subr.mxu0 0.0
    %1722 = vmatpush1.msra.mxu0 0.0
    %1723 = vmatprep.subr.mxu0 0.0
    %1724 = vmatpush1.msra.mxu0 0.0
    %1725 = vmatprep.subr.mxu0 0.0
    %1726 = vmatpush1.msra.mxu0 0.0
    %1727 = vmatprep.subr.mxu0 0.0
    %1728 = vmatpush1.msra.mxu0 0.0
    %1729 = vmatprep.subr.mxu0 0.0
    %1730 = vmatpush1.msra.mxu0 0.0
    %1731 = vmatprep.subr.mxu0 0.0
    %1732 = vmatpush1.msra.mxu0 0.0
    %1733 = vmatprep.subr.mxu0 0.0
    %1734 = vmatpush1.msra.mxu0 0.0
    %1735 = vmatprep.subr.mxu0 0.0
    %1736 = vmatpush1.msra.mxu0 0.0
    %1737 = vmatprep.subr.mxu0 0.0
    %1738 = vmatpush1.msra.mxu0 0.0
    %1739 = vmatprep.subr.mxu0 0.0
    %1740 = vmatpush1.msra.mxu0 0.0
    %1741 = vmatprep.subr.mxu0 0.0
    %1742 = vmatpush1.msra.mxu0 0.0
    %1743 = vmatprep.subr.mxu0 0.0
    %1744 = vmatpush1.msra.mxu0 0.0
    %1745 = vmatprep.subr.mxu0 0.0
    %1746 = vmatpush1.msra.mxu0 0.0
    %1747 = vmatprep.subr.mxu0 0.0
    %1748 = vmatpush1.msra.mxu0 0.0
    %1749 = vmatprep.subr.mxu0 0.0
    %1750 = vmatpush1.msra.mxu0 0.0
    %1751 = vmatprep.mubr.f32.mxu0 0.0
    %1752 = vmatmul.mubr.f32.gmra.mrb[0].mxu0 %v1676
    %v1753 = vpop.f32.mrb[0].mxu0
    %v1754 = vadd.f32 %v1642, %v1753
    %v1755 = vpop.f32.mrb[0].mxu0
    %1756 = vmatprep.mubr.f32.mxu0 0.0
    %1757 = vmatmul.mubr.f32.gmra.mrb[0].mxu0 %v1679
    %v1758 = vpop.f32.mrb[0].mxu0
    %v1759 = vadd.f32 %v1642, %v1758
    %v1760 = vpop.f32.mrb[0].mxu0
    %1761 = vmatprep.mubr.f32.mxu0 0.0
    %1762 = vmatmul.mubr.f32.gmra.mrb[0].mxu0 %v1682
    %v1763 = vpop.f32.mrb[0].mxu0
    %v1764 = vadd.f32 %v1642, %v1763
    %v1765 = vpop.f32.mrb[0].mxu0
    %1766 = vmatprep.mubr.f32.mxu0 0.0
    %1767 = vmatmul.mubr.f32.gmra.mrb[0].mxu0 %v1685
    %v1768 = vpop.f32.mrb[0].mxu0
    %v1769 = vadd.f32 %v1642, %v1768
    %v1770 = vpop.f32.mrb[0].mxu0
    %1771 = vdwg.mxu0
    %v1772 = vadd.f32 %v397, %v1754
    %v1773 = vadd.f32 %v398, %v1759
    %v1774 = vadd.f32 %v399, %v1764
    %v1775 = vadd.f32 %v400, %v1769
    %v1776 = vld [vmem:[%s4 + $0x42] ss:$0 sm:$0xff]
    %v1777 = vld [vmem:[%s4 + $0x43] ss:$0 sm:$0xff]
    %v1778 = vsel %vm430, %v1772, 0.0
    %1779 = vadd.xlane.f32.xlu0 %v1778
    %v1780 = vpop.xlane.xlu0 %1779
    %v1781 = vsel %vm430, %v1773, 0.0
    %1782 = vadd.xlane.f32.xlu0 %v1781
    %v1783 = vpop.xlane.xlu0 %1782
    %v1784 = vsel %vm430, %v1774, 0.0
    %1785 = vadd.xlane.f32.xlu0 %v1784
    %v1786 = vpop.xlane.xlu0 %1785
    %v1787 = vsel %vm430, %v1775, 0.0
    %1788 = vadd.xlane.f32.xlu0 %v1787
    %v1789 = vpop.xlane.xlu0 %1788
    %v1790 = vrcp.pop 64.0
    %v1791 = vmul.f32 %v1780, %v1790
    %v1792 = vmul.f32 %v1783, %v1790
    %v1793 = vmul.f32 %v1786, %v1790
    %v1794 = vmul.f32 %v1789, %v1790
    %v1795 = vmul.f32 %v1772, %v1772
    %v1796 = vmul.f32 %v1773, %v1773
    %v1797 = vmul.f32 %v1774, %v1774
    %v1798 = vmul.f32 %v1775, %v1775
    %v1799 = vsel %vm430, %v1795, 0.0
    %1800 = vadd.xlane.f32.xlu0 %v1799
    %v1801 = vpop.xlane.xlu0 %1800
    %v1802 = vsel %vm430, %v1796, 0.0
    %1803 = vadd.xlane.f32.xlu0 %v1802
    %v1804 = vpop.xlane.xlu0 %1803
    %v1805 = vsel %vm430, %v1797, 0.0
    %1806 = vadd.xlane.f32.xlu0 %v1805
    %v1807 = vpop.xlane.xlu0 %1806
    %v1808 = vsel %vm430, %v1798, 0.0
    %1809 = vadd.xlane.f32.xlu0 %v1808
    %v1810 = vpop.xlane.xlu0 %1809
    %v1811 = vmul.f32 %v1801, %v1790
    %v1812 = vmul.f32 %v1804, %v1790
    %v1813 = vmul.f32 %v1807, %v1790
    %v1814 = vmul.f32 %v1810, %v1790
    %v1815 = vmul.f32 %v1791, %v1791
    %v1816 = vmul.f32 %v1792, %v1792
    %v1817 = vmul.f32 %v1793, %v1793
    %v1818 = vmul.f32 %v1794, %v1794
    %v1819 = vsub.f32 %v1811, %v1815
    %v1820 = vsub.f32 %v1812, %v1816
    %v1821 = vsub.f32 %v1813, %v1817
    %v1822 = vsub.f32 %v1814, %v1818
    %v1823 = vsub.f32 %v1772, %v1791
    %v1824 = vsub.f32 %v1773, %v1792
    %v1825 = vsub.f32 %v1774, %v1793
    %v1826 = vsub.f32 %v1775, %v1794
    %v1827 = vadd.f32 %v1819, 1e-05
    %v1828 = vadd.f32 %v1820, 1e-05
    %v1829 = vadd.f32 %v1821, 1e-05
    %v1830 = vadd.f32 %v1822, 1e-05
    %v1831 = vrsqrt.pop %v1827
    %v1832 = vrsqrt.pop %v1828
    %v1833 = vrsqrt.pop %v1829
    %v1834 = vrsqrt.pop %v1830
    %v1835 = vmul.f32 %v1823, %v1831
    %v1836 = vmul.f32 %v1824, %v1832
    %v1837 = vmul.f32 %v1825, %v1833
    %v1838 = vmul.f32 %v1826, %v1834
    %v1839 = vmul.f32 %v1835, %v1776
    %v1840 = vmul.f32 %v1836, %v1776
    %v1841 = vmul.f32 %v1837, %v1776
    %v1842 = vmul.f32 %v1838, %v1776
    %v1843 = vadd.f32 %v1839, %v1777
    %v1844 = vadd.f32 %v1840, %v1777
    %v1845 = vadd.f32 %v1841, %v1777
    %v1846 = vadd.f32 %v1842, %v1777
    %v1847 = vld [vmem:[%s1 + $0x10] sm:$0xff]
    %v1848 = vld [vmem:[%s1 + $0x28] sm:$0xff]
    %v1849 = vld [vmem:[%s1 + $0x40] sm:$0xff]
    %v1850 = vld [vmem:[%s1 + $0x58] sm:$0xff]
    %v1851 = vld [vmem:[%s1 + $0x70] sm:$0xff]
    %v1852 = vld [vmem:[%s1 + $0x88] sm:$0xff]
    %v1853 = vld [vmem:[%s1 + $0xa0] sm:$0xff]
    %v1854 = vld [vmem:[%s1 + $0xb8] sm:$0xff]
    %v1855 = vld [vmem:[%s4 + $0x57] ss:$0 sm:$0xff]
    %v1857 = vsel %vm430, %v1843, 0
    %v1860 = vsel %vm430, %v1844, 0
    %v1863 = vsel %vm430, %v1845, 0
    %v1866 = vsel %vm430, %v1846, 0
    %1868 = vmatprep.subr.mxu0 0.0
    %1869 = vmatpush1.msra.mxu0 %v1847
    %1870 = vmatprep.subr.mxu0 0.0
    %1871 = vmatpush1.msra.mxu0 %v1848
    %1872 = vmatprep.subr.mxu0 0.0
    %1873 = vmatpush1.msra.mxu0 %v1849
    %1874 = vmatprep.subr.mxu0 0.0
    %1875 = vmatpush1.msra.mxu0 %v1850
    %1876 = vmatprep.subr.mxu0 0.0
    %1877 = vmatpush1.msra.mxu0 %v1851
    %1878 = vmatprep.subr.mxu0 0.0
    %1879 = vmatpush1.msra.mxu0 %v1852
    %1880 = vmatprep.subr.mxu0 0.0
    %1881 = vmatpush1.msra.mxu0 %v1853
    %1882 = vmatprep.subr.mxu0 0.0
    %1883 = vmatpush1.msra.mxu0 %v1854
    %1884 = vmatprep.subr.mxu0 0.0
    %1885 = vmatpush1.msra.mxu0 0.0
    %1886 = vmatprep.subr.mxu0 0.0
    %1887 = vmatpush1.msra.mxu0 0.0
    %1888 = vmatprep.subr.mxu0 0.0
    %1889 = vmatpush1.msra.mxu0 0.0
    %1890 = vmatprep.subr.mxu0 0.0
    %1891 = vmatpush1.msra.mxu0 0.0
    %1892 = vmatprep.subr.mxu0 0.0
    %1893 = vmatpush1.msra.mxu0 0.0
    %1894 = vmatprep.subr.mxu0 0.0
    %1895 = vmatpush1.msra.mxu0 0.0
    %1896 = vmatprep.subr.mxu0 0.0
    %1897 = vmatpush1.msra.mxu0 0.0
    %1898 = vmatprep.subr.mxu0 0.0
    %1899 = vmatpush1.msra.mxu0 0.0
    %1900 = vmatprep.subr.mxu0 0.0
    %1901 = vmatpush1.msra.mxu0 0.0
    %1902 = vmatprep.subr.mxu0 0.0
    %1903 = vmatpush1.msra.mxu0 0.0
    %1904 = vmatprep.subr.mxu0 0.0
    %1905 = vmatpush1.msra.mxu0 0.0
    %1906 = vmatprep.subr.mxu0 0.0
    %1907 = vmatpush1.msra.mxu0 0.0
    %1908 = vmatprep.subr.mxu0 0.0
    %1909 = vmatpush1.msra.mxu0 0.0
    %1910 = vmatprep.subr.mxu0 0.0
    %1911 = vmatpush1.msra.mxu0 0.0
    %1912 = vmatprep.subr.mxu0 0.0
    %1913 = vmatpush1.msra.mxu0 0.0
    %1914 = vmatprep.subr.mxu0 0.0
    %1915 = vmatpush1.msra.mxu0 0.0
    %1916 = vmatprep.subr.mxu0 0.0
    %1917 = vmatpush1.msra.mxu0 0.0
    %1918 = vmatprep.subr.mxu0 0.0
    %1919 = vmatpush1.msra.mxu0 0.0
    %1920 = vmatprep.subr.mxu0 0.0
    %1921 = vmatpush1.msra.mxu0 0.0
    %1922 = vmatprep.subr.mxu0 0.0
    %1923 = vmatpush1.msra.mxu0 0.0
    %1924 = vmatprep.subr.mxu0 0.0
    %1925 = vmatpush1.msra.mxu0 0.0
    %1926 = vmatprep.subr.mxu0 0.0
    %1927 = vmatpush1.msra.mxu0 0.0
    %1928 = vmatprep.subr.mxu0 0.0
    %1929 = vmatpush1.msra.mxu0 0.0
    %1930 = vmatprep.subr.mxu0 0.0
    %1931 = vmatpush1.msra.mxu0 0.0
    %1932 = vmatprep.mubr.f32.mxu0 0.0
    %1933 = vmatmul.mubr.f32.gmra.mrb[0].mxu0 %v1857
    %v1934 = vpop.f32.mrb[0].mxu0
    %v1935 = vadd.f32 %v1855, %v1934
    %v1936 = vpop.f32.mrb[0].mxu0
    %1937 = vmatprep.mubr.f32.mxu0 0.0
    %1938 = vmatmul.mubr.f32.gmra.mrb[0].mxu0 %v1860
    %v1939 = vpop.f32.mrb[0].mxu0
    %v1940 = vadd.f32 %v1855, %v1939
    %v1941 = vpop.f32.mrb[0].mxu0
    %1942 = vmatprep.mubr.f32.mxu0 0.0
    %1943 = vmatmul.mubr.f32.gmra.mrb[0].mxu0 %v1863
    %v1944 = vpop.f32.mrb[0].mxu0
    %v1945 = vadd.f32 %v1855, %v1944
    %v1946 = vpop.f32.mrb[0].mxu0
    %1947 = vmatprep.mubr.f32.mxu0 0.0
    %1948 = vmatmul.mubr.f32.gmra.mrb[0].mxu0 %v1866
    %v1949 = vpop.f32.mrb[0].mxu0
    %v1950 = vadd.f32 %v1855, %v1949
    %v1951 = vpop.f32.mrb[0].mxu0
    %1952 = vdwg.mxu0
    %v1953 = vmax.f32 %v1935, 0.0
    %v1954 = vmax.f32 %v1940, 0.0
    %v1955 = vmax.f32 %v1945, 0.0
    %v1956 = vmax.f32 %v1950, 0.0
    %v1957 = vld [vmem:[%s2] sm:$0xff]
    %v1958 = vld [vmem:[%s2 + $0x8] sm:$0xff]
    %v1959 = vld [vmem:[%s2 + $0x10] sm:$0xff]
    %v1960 = vld [vmem:[%s2 + $0x18] sm:$0xff]
    %v1961 = vld [vmem:[%s2 + $0x20] sm:$0xff]
    %v1962 = vld [vmem:[%s2 + $0x28] sm:$0xff]
    %v1963 = vld [vmem:[%s2 + $0x30] sm:$0xff]
    %v1964 = vld [vmem:[%s2 + $0x38] sm:$0xff]
    %v1965 = vld [vmem:[%s2 + $0x40] sm:$0xff]
    %v1966 = vld [vmem:[%s2 + $0x48] sm:$0xff]
    %v1967 = vld [vmem:[%s2 + $0x50] sm:$0xff]
    %v1968 = vld [vmem:[%s2 + $0x58] sm:$0xff]
    %v1969 = vld [vmem:[%s2 + $0x60] sm:$0xff]
    %v1970 = vld [vmem:[%s2 + $0x68] sm:$0xff]
    %v1971 = vld [vmem:[%s2 + $0x70] sm:$0xff]
    %v1972 = vld [vmem:[%s2 + $0x78] sm:$0xff]
    %v1973 = vld [vmem:[%s4 + $0x46] ss:$0 sm:$0xff]
    %1974 = vmatprep.subr.mxu0 0.0
    %1975 = vmatpush1.msra.mxu0 %v1957
    %1976 = vmatprep.subr.mxu0 0.0
    %1977 = vmatpush1.msra.mxu0 %v1958
    %1978 = vmatprep.subr.mxu0 0.0
    %1979 = vmatpush1.msra.mxu0 %v1959
    %1980 = vmatprep.subr.mxu0 0.0
    %1981 = vmatpush1.msra.mxu0 %v1960
    %1982 = vmatprep.subr.mxu0 0.0
    %1983 = vmatpush1.msra.mxu0 %v1961
    %1984 = vmatprep.subr.mxu0 0.0
    %1985 = vmatpush1.msra.mxu0 %v1962
    %1986 = vmatprep.subr.mxu0 0.0
    %1987 = vmatpush1.msra.mxu0 %v1963
    %1988 = vmatprep.subr.mxu0 0.0
    %1989 = vmatpush1.msra.mxu0 %v1964
    %1990 = vmatprep.subr.mxu0 0.0
    %1991 = vmatpush1.msra.mxu0 %v1965
    %1992 = vmatprep.subr.mxu0 0.0
    %1993 = vmatpush1.msra.mxu0 %v1966
    %1994 = vmatprep.subr.mxu0 0.0
    %1995 = vmatpush1.msra.mxu0 %v1967
    %1996 = vmatprep.subr.mxu0 0.0
    %1997 = vmatpush1.msra.mxu0 %v1968
    %1998 = vmatprep.subr.mxu0 0.0
    %1999 = vmatpush1.msra.mxu0 %v1969
    %2000 = vmatprep.subr.mxu0 0.0
    %2001 = vmatpush1.msra.mxu0 %v1970
    %2002 = vmatprep.subr.mxu0 0.0
    %2003 = vmatpush1.msra.mxu0 %v1971
    %2004 = vmatprep.subr.mxu0 0.0
    %2005 = vmatpush1.msra.mxu0 %v1972
    %2006 = vmatprep.subr.mxu0 0.0
    %2007 = vmatpush1.msra.mxu0 0.0
    %2008 = vmatprep.subr.mxu0 0.0
    %2009 = vmatpush1.msra.mxu0 0.0
    %2010 = vmatprep.subr.mxu0 0.0
    %2011 = vmatpush1.msra.mxu0 0.0
    %2012 = vmatprep.subr.mxu0 0.0
    %2013 = vmatpush1.msra.mxu0 0.0
    %2014 = vmatprep.subr.mxu0 0.0
    %2015 = vmatpush1.msra.mxu0 0.0
    %2016 = vmatprep.subr.mxu0 0.0
    %2017 = vmatpush1.msra.mxu0 0.0
    %2018 = vmatprep.subr.mxu0 0.0
    %2019 = vmatpush1.msra.mxu0 0.0
    %2020 = vmatprep.subr.mxu0 0.0
    %2021 = vmatpush1.msra.mxu0 0.0
    %2022 = vmatprep.subr.mxu0 0.0
    %2023 = vmatpush1.msra.mxu0 0.0
    %2024 = vmatprep.subr.mxu0 0.0
    %2025 = vmatpush1.msra.mxu0 0.0
    %2026 = vmatprep.subr.mxu0 0.0
    %2027 = vmatpush1.msra.mxu0 0.0
    %2028 = vmatprep.subr.mxu0 0.0
    %2029 = vmatpush1.msra.mxu0 0.0
    %2030 = vmatprep.subr.mxu0 0.0
    %2031 = vmatpush1.msra.mxu0 0.0
    %2032 = vmatprep.subr.mxu0 0.0
    %2033 = vmatpush1.msra.mxu0 0.0
    %2034 = vmatprep.subr.mxu0 0.0
    %2035 = vmatpush1.msra.mxu0 0.0
    %2036 = vmatprep.subr.mxu0 0.0
    %2037 = vmatpush1.msra.mxu0 0.0
    %2038 = vmatprep.mubr.f32.mxu0 0.0
    %2039 = vmatmul.mubr.f32.gmra.mrb[0].mxu0 %v1953
    %v2040 = vpop.f32.mrb[0].mxu0
    %v2041 = vadd.f32 %v1973, %v2040
    %v2042 = vpop.f32.mrb[0].mxu0
    %2043 = vmatprep.mubr.f32.mxu0 0.0
    %2044 = vmatmul.mubr.f32.gmra.mrb[0].mxu0 %v1954
    %v2045 = vpop.f32.mrb[0].mxu0
    %v2046 = vadd.f32 %v1973, %v2045
    %v2047 = vpop.f32.mrb[0].mxu0
    %2048 = vmatprep.mubr.f32.mxu0 0.0
    %2049 = vmatmul.mubr.f32.gmra.mrb[0].mxu0 %v1955
    %v2050 = vpop.f32.mrb[0].mxu0
    %v2051 = vadd.f32 %v1973, %v2050
    %v2052 = vpop.f32.mrb[0].mxu0
    %2053 = vmatprep.mubr.f32.mxu0 0.0
    %2054 = vmatmul.mubr.f32.gmra.mrb[0].mxu0 %v1956
    %v2055 = vpop.f32.mrb[0].mxu0
    %v2056 = vadd.f32 %v1973, %v2055
    %v2057 = vpop.f32.mrb[0].mxu0
    %2058 = vdwg.mxu0
    %v2059 = vadd.f32 %v1843, %v2041
    %v2060 = vadd.f32 %v1844, %v2046
    %v2061 = vadd.f32 %v1845, %v2051
    %v2062 = vadd.f32 %v1846, %v2056
    %v2063 = vld [vmem:[%s4 + $0x44] ss:$0 sm:$0xff]
    %v2064 = vld [vmem:[%s4 + $0x45] ss:$0 sm:$0xff]
    %v2065 = vsel %vm430, %v2059, 0.0
    %2066 = vadd.xlane.f32.xlu0 %v2065
    %v2067 = vpop.xlane.xlu0 %2066
    %v2068 = vsel %vm430, %v2060, 0.0
    %2069 = vadd.xlane.f32.xlu0 %v2068
    %v2070 = vpop.xlane.xlu0 %2069
    %v2071 = vsel %vm430, %v2061, 0.0
    %2072 = vadd.xlane.f32.xlu0 %v2071
    %v2073 = vpop.xlane.xlu0 %2072
    %v2074 = vsel %vm430, %v2062, 0.0
    %2075 = vadd.xlane.f32.xlu0 %v2074
    %v2076 = vpop.xlane.xlu0 %2075
    %v2077 = vmul.f32 %v2067, %v1790
    %v2078 = vmul.f32 %v2070, %v1790
    %v2079 = vmul.f32 %v2073, %v1790
    %v2080 = vmul.f32 %v2076, %v1790
    %v2081 = vmul.f32 %v2059, %v2059
    %v2082 = vmul.f32 %v2060, %v2060
    %v2083 = vmul.f32 %v2061, %v2061
    %v2084 = vmul.f32 %v2062, %v2062
    %v2085 = vsel %vm430, %v2081, 0.0
    %2086 = vadd.xlane.f32.xlu0 %v2085
    %v2087 = vpop.xlane.xlu0 %2086
    %v2088 = vsel %vm430, %v2082, 0.0
    %2089 = vadd.xlane.f32.xlu0 %v2088
    %v2090 = vpop.xlane.xlu0 %2089
    %v2091 = vsel %vm430, %v2083, 0.0
    %2092 = vadd.xlane.f32.xlu0 %v2091
    %v2093 = vpop.xlane.xlu0 %2092
    %v2094 = vsel %vm430, %v2084, 0.0
    %2095 = vadd.xlane.f32.xlu0 %v2094
    %v2096 = vpop.xlane.xlu0 %2095
    %v2097 = vmul.f32 %v2087, %v1790
    %v2098 = vmul.f32 %v2090, %v1790
    %v2099 = vmul.f32 %v2093, %v1790
    %v2100 = vmul.f32 %v2096, %v1790
    %v2101 = vmul.f32 %v2077, %v2077
    %v2102 = vmul.f32 %v2078, %v2078
    %v2103 = vmul.f32 %v2079, %v2079
    %v2104 = vmul.f32 %v2080, %v2080
    %v2105 = vsub.f32 %v2097, %v2101
    %v2106 = vsub.f32 %v2098, %v2102
    %v2107 = vsub.f32 %v2099, %v2103
    %v2108 = vsub.f32 %v2100, %v2104
    %v2109 = vsub.f32 %v2059, %v2077
    %v2110 = vsub.f32 %v2060, %v2078
    %v2111 = vsub.f32 %v2061, %v2079
    %v2112 = vsub.f32 %v2062, %v2080
    %v2113 = vadd.f32 %v2105, 1e-05
    %v2114 = vadd.f32 %v2106, 1e-05
    %v2115 = vadd.f32 %v2107, 1e-05
    %v2116 = vadd.f32 %v2108, 1e-05
    %v2117 = vrsqrt.pop %v2113
    %v2118 = vrsqrt.pop %v2114
    %v2119 = vrsqrt.pop %v2115
    %v2120 = vrsqrt.pop %v2116
    %v2121 = vmul.f32 %v2109, %v2117
    %v2122 = vmul.f32 %v2110, %v2118
    %v2123 = vmul.f32 %v2111, %v2119
    %v2124 = vmul.f32 %v2112, %v2120
    %v2125 = vmul.f32 %v2121, %v2063
    %v2126 = vmul.f32 %v2122, %v2063
    %v2127 = vmul.f32 %v2123, %v2063
    %v2128 = vmul.f32 %v2124, %v2063
    %v2129 = vadd.f32 %v2125, %v2064
    %v2130 = vadd.f32 %v2126, %v2064
    %v2131 = vadd.f32 %v2127, %v2064
    %v2132 = vadd.f32 %v2128, %v2064
    %s2133 = scalar_lea.vmem %s1, 192
    %v2134 = vld [vmem:[%s2133] sm:$0xff]
    %v2135 = vld [vmem:[%s2133 + $0x8] sm:$0xff]
    %v2136 = vld [vmem:[%s2133 + $0x18] sm:$0xff]
    %v2137 = vld [vmem:[%s2133 + $0x20] sm:$0xff]
    %v2138 = vld [vmem:[%s2133 + $0x30] sm:$0xff]
    %v2139 = vld [vmem:[%s2133 + $0x38] sm:$0xff]
    %v2140 = vld [vmem:[%s2133 + $0x48] sm:$0xff]
    %v2141 = vld [vmem:[%s2133 + $0x50] sm:$0xff]
    %v2142 = vld [vmem:[%s2133 + $0x60] sm:$0xff]
    %v2143 = vld [vmem:[%s2133 + $0x68] sm:$0xff]
    %v2144 = vld [vmem:[%s2133 + $0x78] sm:$0xff]
    %v2145 = vld [vmem:[%s2133 + $0x80] sm:$0xff]
    %v2146 = vld [vmem:[%s2133 + $0x90] sm:$0xff]
    %v2147 = vld [vmem:[%s2133 + $0x98] sm:$0xff]
    %v2148 = vld [vmem:[%s2133 + $0xa8] sm:$0xff]
    %v2149 = vld [vmem:[%s2133 + $0xb0] sm:$0xff]
    %s2150 = scalar_lea.vmem %s4, 86
    %v2151 = vld [vmem:[%s2150] ss:$8 sm:$0x3]
    %v2153 = vlaneseq
    %v2154 = vshrl.u32 %v2153, 7
    %v2155 = vsub.s32 0, %v2154
    %v2156 = vrot.slane %v2151, %v2155
    %v2157 = vlaneseq
    %v2158 = vshrl.u32 %v2157, 7
    %v2159 = vsub.s32 1, %v2158
    %v2160 = vrot.slane %v2151, %v2159
    %v2164 = vsel %vm430, %v2129, 0
    %v2167 = vsel %vm430, %v2130, 0
    %v2170 = vsel %vm430, %v2131, 0
    %v2173 = vsel %vm430, %v2132, 0
    %2175 = vmatprep.subr.mxu0 %v2135
    %2176 = vmatpush1.msra.mxu0 %v2134
    %2177 = vmatprep.subr.mxu0 %v2137
    %2178 = vmatpush1.msra.mxu0 %v2136
    %2179 = vmatprep.subr.mxu0 %v2139
    %2180 = vmatpush1.msra.mxu0 %v2138
    %2181 = vmatprep.subr.mxu0 %v2141
    %2182 = vmatpush1.msra.mxu0 %v2140
    %2183 = vmatprep.subr.mxu0 %v2143
    %2184 = vmatpush1.msra.mxu0 %v2142
    %2185 = vmatprep.subr.mxu0 %v2145
    %2186 = vmatpush1.msra.mxu0 %v2144
    %2187 = vmatprep.subr.mxu0 %v2147
    %2188 = vmatpush1.msra.mxu0 %v2146
    %2189 = vmatprep.subr.mxu0 %v2149
    %2190 = vmatpush1.msra.mxu0 %v2148
    %2191 = vmatprep.subr.mxu0 0.0
    %2192 = vmatpush1.msra.mxu0 0.0
    %2193 = vmatprep.subr.mxu0 0.0
    %2194 = vmatpush1.msra.mxu0 0.0
    %2195 = vmatprep.subr.mxu0 0.0
    %2196 = vmatpush1.msra.mxu0 0.0
    %2197 = vmatprep.subr.mxu0 0.0
    %2198 = vmatpush1.msra.mxu0 0.0
    %2199 = vmatprep.subr.mxu0 0.0
    %2200 = vmatpush1.msra.mxu0 0.0
    %2201 = vmatprep.subr.mxu0 0.0
    %2202 = vmatpush1.msra.mxu0 0.0
    %2203 = vmatprep.subr.mxu0 0.0
    %2204 = vmatpush1.msra.mxu0 0.0
    %2205 = vmatprep.subr.mxu0 0.0
    %2206 = vmatpush1.msra.mxu0 0.0
    %2207 = vmatprep.subr.mxu0 0.0
    %2208 = vmatpush1.msra.mxu0 0.0
    %2209 = vmatprep.subr.mxu0 0.0
    %2210 = vmatpush1.msra.mxu0 0.0
    %2211 = vmatprep.subr.mxu0 0.0
    %2212 = vmatpush1.msra.mxu0 0.0
    %2213 = vmatprep.subr.mxu0 0.0
    %2214 = vmatpush1.msra.mxu0 0.0
    %2215 = vmatprep.subr.mxu0 0.0
    %2216 = vmatpush1.msra.mxu0 0.0
    %2217 = vmatprep.subr.mxu0 0.0
    %2218 = vmatpush1.msra.mxu0 0.0
    %2219 = vmatprep.subr.mxu0 0.0
    %2220 = vmatpush1.msra.mxu0 0.0
    %2221 = vmatprep.subr.mxu0 0.0
    %2222 = vmatpush1.msra.mxu0 0.0
    %2223 = vmatprep.subr.mxu0 0.0
    %2224 = vmatpush1.msra.mxu0 0.0
    %2225 = vmatprep.subr.mxu0 0.0
    %2226 = vmatpush1.msra.mxu0 0.0
    %2227 = vmatprep.subr.mxu0 0.0
    %2228 = vmatpush1.msra.mxu0 0.0
    %2229 = vmatprep.subr.mxu0 0.0
    %2230 = vmatpush1.msra.mxu0 0.0
    %2231 = vmatprep.subr.mxu0 0.0
    %2232 = vmatpush1.msra.mxu0 0.0
    %2233 = vmatprep.subr.mxu0 0.0
    %2234 = vmatpush1.msra.mxu0 0.0
    %2235 = vmatprep.subr.mxu0 0.0
    %2236 = vmatpush1.msra.mxu0 0.0
    %2237 = vmatprep.subr.mxu0 0.0
    %2238 = vmatpush1.msra.mxu0 0.0
    %2239 = vmatprep.mubr.f32.mxu0 0.0
    %2240 = vmatmul.mubr.f32.gmra.mrb[0].mxu0 %v2164
    %v2241 = vpop.f32.mrb[0].mxu0
    %v2242 = vadd.f32 %v2156, %v2241
    %v2243 = vpop.f32.mrb[0].mxu0
    %v2244 = vadd.f32 %v2160, %v2243
    %2245 = vmatprep.mubr.f32.mxu0 0.0
    %2246 = vmatmul.mubr.f32.gmra.mrb[0].mxu0 %v2167
    %v2247 = vpop.f32.mrb[0].mxu0
    %v2248 = vadd.f32 %v2156, %v2247
    %v2249 = vpop.f32.mrb[0].mxu0
    %v2250 = vadd.f32 %v2160, %v2249
    %2251 = vmatprep.mubr.f32.mxu0 0.0
    %2252 = vmatmul.mubr.f32.gmra.mrb[0].mxu0 %v2170
    %v2253 = vpop.f32.mrb[0].mxu0
    %v2254 = vadd.f32 %v2156, %v2253
    %v2255 = vpop.f32.mrb[0].mxu0
    %v2256 = vadd.f32 %v2160, %v2255
    %2257 = vmatprep.mubr.f32.mxu0 0.0
    %2258 = vmatmul.mubr.f32.gmra.mrb[0].mxu0 %v2173
    %v2259 = vpop.f32.mrb[0].mxu0
    %v2260 = vadd.f32 %v2156, %v2259
    %v2261 = vpop.f32.mrb[0].mxu0
    %v2262 = vadd.f32 %v2160, %v2261
    %2263 = vdwg.mxu0
    %v2264 = vmul.f32 %v2242, 0.35355338
    %v2265 = vmul.f32 %v2248, 0.35355338
    %v2266 = vmul.f32 %v2254, 0.35355338
    %v2267 = vmul.f32 %v2260, 0.35355338
    %v2268 = vmul.f32 %v2264, %v121
    %v2269 = vmul.f32 %v2265, %v122
    %v2270 = vmul.f32 %v2266, %v123
    %v2271 = vmul.f32 %v2267, %v124
    %v2272 = vmul.f32 %v2264, %v125
    %v2273 = vmul.f32 %v2265, %v126
    %v2274 = vmul.f32 %v2266, %v127
    %v2275 = vmul.f32 %v2267, %v128
    %v2276 = vmul.f32 %v2264, %v129
    %v2277 = vmul.f32 %v2265, %v130
    %v2278 = vmul.f32 %v2266, %v131
    %v2279 = vmul.f32 %v2267, %v132
    %v2280 = vmul.f32 %v2264, %v133
    %v2281 = vmul.f32 %v2265, %v134
    %v2282 = vmul.f32 %v2266, %v135
    %v2283 = vmul.f32 %v2267, %v136
    %v2284 = vmul.f32 %v2264, %v137
    %v2285 = vmul.f32 %v2265, %v138
    %v2286 = vmul.f32 %v2266, %v139
    %v2287 = vmul.f32 %v2267, %v140
    %v2288 = vmul.f32 %v2264, %v141
    %v2289 = vmul.f32 %v2265, %v142
    %v2290 = vmul.f32 %v2266, %v143
    %v2291 = vmul.f32 %v2267, %v144
    %v2292 = vmul.f32 %v2264, %v145
    %v2293 = vmul.f32 %v2265, %v146
    %v2294 = vmul.f32 %v2266, %v147
    %v2295 = vmul.f32 %v2267, %v148
    %v2296 = vmul.f32 %v2264, %v149
    %v2297 = vmul.f32 %v2265, %v150
    %v2298 = vmul.f32 %v2266, %v151
    %v2299 = vmul.f32 %v2267, %v152
    %2304 = vrot.lane.b32.xlu0 %v2242, 64
    %v2305 = vpop.permute.xlu0 %2304
    %2306 = vrot.lane.b32.xlu0 %v2248, 64
    %v2307 = vpop.permute.xlu0 %2306
    %2308 = vrot.lane.b32.xlu0 %v2254, 64
    %v2309 = vpop.permute.xlu0 %2308
    %2310 = vrot.lane.b32.xlu0 %v2260, 64
    %v2311 = vpop.permute.xlu0 %2310
    %v2313 = vsel %vm430, %v2268, 0
    %v2316 = vsel %vm430, %v2269, 0
    %v2319 = vsel %vm430, %v2270, 0
    %v2322 = vsel %vm430, %v2271, 0
    %v2325 = vsel %vm430, %v2272, 0
    %v2328 = vsel %vm430, %v2273, 0
    %v2331 = vsel %vm430, %v2274, 0
    %v2334 = vsel %vm430, %v2275, 0
    %v2337 = vsel %vm430, %v2276, 0
    %v2340 = vsel %vm430, %v2277, 0
    %v2343 = vsel %vm430, %v2278, 0
    %v2346 = vsel %vm430, %v2279, 0
    %v2349 = vsel %vm430, %v2280, 0
    %v2352 = vsel %vm430, %v2281, 0
    %v2355 = vsel %vm430, %v2282, 0
    %v2358 = vsel %vm430, %v2283, 0
    %v2361 = vsel %vm430, %v2284, 0
    %v2364 = vsel %vm430, %v2285, 0
    %v2367 = vsel %vm430, %v2286, 0
    %v2370 = vsel %vm430, %v2287, 0
    %v2373 = vsel %vm430, %v2288, 0
    %v2376 = vsel %vm430, %v2289, 0
    %v2379 = vsel %vm430, %v2290, 0
    %v2382 = vsel %vm430, %v2291, 0
    %v2385 = vsel %vm430, %v2292, 0
    %v2388 = vsel %vm430, %v2293, 0
    %v2391 = vsel %vm430, %v2294, 0
    %v2394 = vsel %vm430, %v2295, 0
    %v2397 = vsel %vm430, %v2296, 0
    %v2400 = vsel %vm430, %v2297, 0
    %v2403 = vsel %vm430, %v2298, 0
    %v2406 = vsel %vm430, %v2299, 0
    %v2408 = vsel %vm430, %v2305, 0
    %v2410 = vsel %vm430, %v2307, 0
    %v2412 = vsel %vm430, %v2309, 0
    %v2414 = vsel %vm430, %v2311, 0
    %2416 = vmatprep.subr.mxu0 0.0
    %2417 = vmatpush1.xpose.msra.mxu0 %v2408
    %2418 = vmatprep.subr.mxu0 0.0
    %2419 = vmatpush1.xpose.msra.mxu0 %v2410
    %2420 = vmatprep.subr.mxu0 0.0
    %2421 = vmatpush1.xpose.msra.mxu0 %v2412
    %2422 = vmatprep.subr.mxu0 0.0
    %2423 = vmatpush1.xpose.msra.mxu0 %v2414
    %2424 = vmatprep.subr.mxu0 0.0
    %2425 = vmatpush1.xpose.msra.mxu0 0.0
    %2426 = vmatprep.subr.mxu0 0.0
    %2427 = vmatpush1.xpose.msra.mxu0 0.0
    %2428 = vmatprep.subr.mxu0 0.0
    %2429 = vmatpush1.xpose.msra.mxu0 0.0
    %2430 = vmatprep.subr.mxu0 0.0
    %2431 = vmatpush1.xpose.msra.mxu0 0.0
    %2432 = vmatprep.subr.mxu0 0.0
    %2433 = vmatpush1.xpose.msra.mxu0 0.0
    %2434 = vmatprep.subr.mxu0 0.0
    %2435 = vmatpush1.xpose.msra.mxu0 0.0
    %2436 = vmatprep.subr.mxu0 0.0
    %2437 = vmatpush1.xpose.msra.mxu0 0.0
    %2438 = vmatprep.subr.mxu0 0.0
    %2439 = vmatpush1.xpose.msra.mxu0 0.0
    %2440 = vmatprep.subr.mxu0 0.0
    %2441 = vmatpush1.xpose.msra.mxu0 0.0
    %2442 = vmatprep.subr.mxu0 0.0
    %2443 = vmatpush1.xpose.msra.mxu0 0.0
    %2444 = vmatprep.subr.mxu0 0.0
    %2445 = vmatpush1.xpose.msra.mxu0 0.0
    %2446 = vmatprep.subr.mxu0 0.0
    %2447 = vmatpush1.xpose.msra.mxu0 0.0
    %2448 = vmatprep.subr.mxu0 0.0
    %2449 = vmatpush1.xpose.msra.mxu0 0.0
    %2450 = vmatprep.subr.mxu0 0.0
    %2451 = vmatpush1.xpose.msra.mxu0 0.0
    %2452 = vmatprep.subr.mxu0 0.0
    %2453 = vmatpush1.xpose.msra.mxu0 0.0
    %2454 = vmatprep.subr.mxu0 0.0
    %2455 = vmatpush1.xpose.msra.mxu0 0.0
    %2456 = vmatprep.subr.mxu0 0.0
    %2457 = vmatpush1.xpose.msra.mxu0 0.0
    %2458 = vmatprep.subr.mxu0 0.0
    %2459 = vmatpush1.xpose.msra.mxu0 0.0
    %2460 = vmatprep.subr.mxu0 0.0
    %2461 = vmatpush1.xpose.msra.mxu0 0.0
    %2462 = vmatprep.subr.mxu0 0.0
    %2463 = vmatpush1.xpose.msra.mxu0 0.0
    %2464 = vmatprep.subr.mxu0 0.0
    %2465 = vmatpush1.xpose.msra.mxu0 0.0
    %2466 = vmatprep.subr.mxu0 0.0
    %2467 = vmatpush1.xpose.msra.mxu0 0.0
    %2468 = vmatprep.subr.mxu0 0.0
    %2469 = vmatpush1.xpose.msra.mxu0 0.0
    %2470 = vmatprep.subr.mxu0 0.0
    %2471 = vmatpush1.xpose.msra.mxu0 0.0
    %2472 = vmatprep.subr.mxu0 0.0
    %2473 = vmatpush1.xpose.msra.mxu0 0.0
    %2474 = vmatprep.subr.mxu0 0.0
    %2475 = vmatpush1.xpose.msra.mxu0 0.0
    %2476 = vmatprep.subr.mxu0 0.0
    %2477 = vmatpush1.xpose.msra.mxu0 0.0
    %2478 = vmatprep.subr.mxu0 0.0
    %2479 = vmatpush1.xpose.msra.mxu0 0.0
    %2480 = vmatprep.mubr.f32.mxu0 0.0
    %2481 = vmatmul.mubr.f32.gmra.mrb[0].mxu0 %v2313
    %v2482 = vpop.f32.mrb[0].mxu0
    %v2483 = vadd.f32 %v250, %v2482
    %v2484 = vpop.f32.mrb[0].mxu0
    %2485 = vmatprep.mubr.f32.mxu0 0.0
    %2486 = vmatmul.mubr.f32.gmra.mrb[0].mxu0 %v2316
    %v2487 = vpop.f32.mrb[0].mxu0
    %v2488 = vadd.f32 %v251, %v2487
    %v2489 = vpop.f32.mrb[0].mxu0
    %2490 = vmatprep.mubr.f32.mxu0 0.0
    %2491 = vmatmul.mubr.f32.gmra.mrb[0].mxu0 %v2319
    %v2492 = vpop.f32.mrb[0].mxu0
    %v2493 = vadd.f32 %v252, %v2492
    %v2494 = vpop.f32.mrb[0].mxu0
    %2495 = vmatprep.mubr.f32.mxu0 0.0
    %2496 = vmatmul.mubr.f32.gmra.mrb[0].mxu0 %v2322
    %v2497 = vpop.f32.mrb[0].mxu0
    %v2498 = vadd.f32 %v253, %v2497
    %v2499 = vpop.f32.mrb[0].mxu0
    %2500 = vmatprep.mubr.f32.mxu0 0.0
    %2501 = vmatmul.mubr.f32.gmra.mrb[0].mxu0 %v2325
    %v2502 = vpop.f32.mrb[0].mxu0
    %v2503 = vadd.f32 %v254, %v2502
    %v2504 = vpop.f32.mrb[0].mxu0
    %2505 = vmatprep.mubr.f32.mxu0 0.0
    %2506 = vmatmul.mubr.f32.gmra.mrb[0].mxu0 %v2328
    %v2507 = vpop.f32.mrb[0].mxu0
    %v2508 = vadd.f32 %v255, %v2507
    %v2509 = vpop.f32.mrb[0].mxu0
    %2510 = vmatprep.mubr.f32.mxu0 0.0
    %2511 = vmatmul.mubr.f32.gmra.mrb[0].mxu0 %v2331
    %v2512 = vpop.f32.mrb[0].mxu0
    %v2513 = vadd.f32 %v256, %v2512
    %v2514 = vpop.f32.mrb[0].mxu0
    %2515 = vmatprep.mubr.f32.mxu0 0.0
    %2516 = vmatmul.mubr.f32.gmra.mrb[0].mxu0 %v2334
    %v2517 = vpop.f32.mrb[0].mxu0
    %v2518 = vadd.f32 %v257, %v2517
    %v2519 = vpop.f32.mrb[0].mxu0
    %2520 = vmatprep.mubr.f32.mxu0 0.0
    %2521 = vmatmul.mubr.f32.gmra.mrb[0].mxu0 %v2337
    %v2522 = vpop.f32.mrb[0].mxu0
    %v2523 = vadd.f32 %v258, %v2522
    %v2524 = vpop.f32.mrb[0].mxu0
    %2525 = vmatprep.mubr.f32.mxu0 0.0
    %2526 = vmatmul.mubr.f32.gmra.mrb[0].mxu0 %v2340
    %v2527 = vpop.f32.mrb[0].mxu0
    %v2528 = vadd.f32 %v259, %v2527
    %v2529 = vpop.f32.mrb[0].mxu0
    %2530 = vmatprep.mubr.f32.mxu0 0.0
    %2531 = vmatmul.mubr.f32.gmra.mrb[0].mxu0 %v2343
    %v2532 = vpop.f32.mrb[0].mxu0
    %v2533 = vadd.f32 %v260, %v2532
    %v2534 = vpop.f32.mrb[0].mxu0
    %2535 = vmatprep.mubr.f32.mxu0 0.0
    %2536 = vmatmul.mubr.f32.gmra.mrb[0].mxu0 %v2346
    %v2537 = vpop.f32.mrb[0].mxu0
    %v2538 = vadd.f32 %v261, %v2537
    %v2539 = vpop.f32.mrb[0].mxu0
    %2540 = vmatprep.mubr.f32.mxu0 0.0
    %2541 = vmatmul.mubr.f32.gmra.mrb[0].mxu0 %v2349
    %v2542 = vpop.f32.mrb[0].mxu0
    %v2543 = vadd.f32 %v262, %v2542
    %v2544 = vpop.f32.mrb[0].mxu0
    %2545 = vmatprep.mubr.f32.mxu0 0.0
    %2546 = vmatmul.mubr.f32.gmra.mrb[0].mxu0 %v2352
    %v2547 = vpop.f32.mrb[0].mxu0
    %v2548 = vadd.f32 %v263, %v2547
    %v2549 = vpop.f32.mrb[0].mxu0
    %2550 = vmatprep.mubr.f32.mxu0 0.0
    %2551 = vmatmul.mubr.f32.gmra.mrb[0].mxu0 %v2355
    %v2552 = vpop.f32.mrb[0].mxu0
    %v2553 = vadd.f32 %v264, %v2552
    %v2554 = vpop.f32.mrb[0].mxu0
    %2555 = vmatprep.mubr.f32.mxu0 0.0
    %2556 = vmatmul.mubr.f32.gmra.mrb[0].mxu0 %v2358
    %v2557 = vpop.f32.mrb[0].mxu0
    %v2558 = vadd.f32 %v265, %v2557
    %v2559 = vpop.f32.mrb[0].mxu0
    %2560 = vmatprep.mubr.f32.mxu0 0.0
    %2561 = vmatmul.mubr.f32.gmra.mrb[0].mxu0 %v2361
    %v2562 = vpop.f32.mrb[0].mxu0
    %v2563 = vadd.f32 %v266, %v2562
    %v2564 = vpop.f32.mrb[0].mxu0
    %2565 = vmatprep.mubr.f32.mxu0 0.0
    %2566 = vmatmul.mubr.f32.gmra.mrb[0].mxu0 %v2364
    %v2567 = vpop.f32.mrb[0].mxu0
    %v2568 = vadd.f32 %v267, %v2567
    %v2569 = vpop.f32.mrb[0].mxu0
    %2570 = vmatprep.mubr.f32.mxu0 0.0
    %2571 = vmatmul.mubr.f32.gmra.mrb[0].mxu0 %v2367
    %v2572 = vpop.f32.mrb[0].mxu0
    %v2573 = vadd.f32 %v268, %v2572
    %v2574 = vpop.f32.mrb[0].mxu0
    %2575 = vmatprep.mubr.f32.mxu0 0.0
    %2576 = vmatmul.mubr.f32.gmra.mrb[0].mxu0 %v2370
    %v2577 = vpop.f32.mrb[0].mxu0
    %v2578 = vadd.f32 %v269, %v2577
    %v2579 = vpop.f32.mrb[0].mxu0
    %2580 = vmatprep.mubr.f32.mxu0 0.0
    %2581 = vmatmul.mubr.f32.gmra.mrb[0].mxu0 %v2373
    %v2582 = vpop.f32.mrb[0].mxu0
    %v2583 = vadd.f32 %v270, %v2582
    %v2584 = vpop.f32.mrb[0].mxu0
    %2585 = vmatprep.mubr.f32.mxu0 0.0
    %2586 = vmatmul.mubr.f32.gmra.mrb[0].mxu0 %v2376
    %v2587 = vpop.f32.mrb[0].mxu0
    %v2588 = vadd.f32 %v271, %v2587
    %v2589 = vpop.f32.mrb[0].mxu0
    %2590 = vmatprep.mubr.f32.mxu0 0.0
    %2591 = vmatmul.mubr.f32.gmra.mrb[0].mxu0 %v2379
    %v2592 = vpop.f32.mrb[0].mxu0
    %v2593 = vadd.f32 %v272, %v2592
    %v2594 = vpop.f32.mrb[0].mxu0
    %2595 = vmatprep.mubr.f32.mxu0 0.0
    %2596 = vmatmul.mubr.f32.gmra.mrb[0].mxu0 %v2382
    %v2597 = vpop.f32.mrb[0].mxu0
    %v2598 = vadd.f32 %v273, %v2597
    %v2599 = vpop.f32.mrb[0].mxu0
    %2600 = vmatprep.mubr.f32.mxu0 0.0
    %2601 = vmatmul.mubr.f32.gmra.mrb[0].mxu0 %v2385
    %v2602 = vpop.f32.mrb[0].mxu0
    %v2603 = vadd.f32 %v274, %v2602
    %v2604 = vpop.f32.mrb[0].mxu0
    %2605 = vmatprep.mubr.f32.mxu0 0.0
    %2606 = vmatmul.mubr.f32.gmra.mrb[0].mxu0 %v2388
    %v2607 = vpop.f32.mrb[0].mxu0
    %v2608 = vadd.f32 %v275, %v2607
    %v2609 = vpop.f32.mrb[0].mxu0
    %2610 = vmatprep.mubr.f32.mxu0 0.0
    %2611 = vmatmul.mubr.f32.gmra.mrb[0].mxu0 %v2391
    %v2612 = vpop.f32.mrb[0].mxu0
    %v2613 = vadd.f32 %v276, %v2612
    %v2614 = vpop.f32.mrb[0].mxu0
    %2615 = vmatprep.mubr.f32.mxu0 0.0
    %2616 = vmatmul.mubr.f32.gmra.mrb[0].mxu0 %v2394
    %v2617 = vpop.f32.mrb[0].mxu0
    %v2618 = vadd.f32 %v277, %v2617
    %v2619 = vpop.f32.mrb[0].mxu0
    %2620 = vmatprep.mubr.f32.mxu0 0.0
    %2621 = vmatmul.mubr.f32.gmra.mrb[0].mxu0 %v2397
    %v2622 = vpop.f32.mrb[0].mxu0
    %v2623 = vadd.f32 %v278, %v2622
    %v2624 = vpop.f32.mrb[0].mxu0
    %2625 = vmatprep.mubr.f32.mxu0 0.0
    %2626 = vmatmul.mubr.f32.gmra.mrb[0].mxu0 %v2400
    %v2627 = vpop.f32.mrb[0].mxu0
    %v2628 = vadd.f32 %v279, %v2627
    %v2629 = vpop.f32.mrb[0].mxu0
    %2630 = vmatprep.mubr.f32.mxu0 0.0
    %2631 = vmatmul.mubr.f32.gmra.mrb[0].mxu0 %v2403
    %v2632 = vpop.f32.mrb[0].mxu0
    %v2633 = vadd.f32 %v280, %v2632
    %v2634 = vpop.f32.mrb[0].mxu0
    %2635 = vmatprep.mubr.f32.mxu0 0.0
    %2636 = vmatmul.mubr.f32.gmra.mrb[0].mxu0 %v2406
    %v2637 = vpop.f32.mrb[0].mxu0
    %v2638 = vadd.f32 %v281, %v2637
    %v2639 = vpop.f32.mrb[0].mxu0
    %2640 = vdwg.mxu0
    %v2641 = vsel %vm291, %v2483, -inf
    %2642 = vmax.xlane.f32.xlu0 %v2641
    %v2643 = vpop.xlane.xlu0 %2642
    %v2644 = vsel %vm291, %v2488, -inf
    %2645 = vmax.xlane.f32.xlu0 %v2644
    %v2646 = vpop.xlane.xlu0 %2645
    %v2647 = vsel %vm291, %v2493, -inf
    %2648 = vmax.xlane.f32.xlu0 %v2647
    %v2649 = vpop.xlane.xlu0 %2648
    %v2650 = vsel %vm291, %v2498, -inf
    %2651 = vmax.xlane.f32.xlu0 %v2650
    %v2652 = vpop.xlane.xlu0 %2651
    %v2653 = vsel %vm291, %v2503, -inf
    %2654 = vmax.xlane.f32.xlu0 %v2653
    %v2655 = vpop.xlane.xlu0 %2654
    %v2656 = vsel %vm291, %v2508, -inf
    %2657 = vmax.xlane.f32.xlu0 %v2656
    %v2658 = vpop.xlane.xlu0 %2657
    %v2659 = vsel %vm291, %v2513, -inf
    %2660 = vmax.xlane.f32.xlu0 %v2659
    %v2661 = vpop.xlane.xlu0 %2660
    %v2662 = vsel %vm291, %v2518, -inf
    %2663 = vmax.xlane.f32.xlu0 %v2662
    %v2664 = vpop.xlane.xlu0 %2663
    %v2665 = vsel %vm291, %v2523, -inf
    %2666 = vmax.xlane.f32.xlu0 %v2665
    %v2667 = vpop.xlane.xlu0 %2666
    %v2668 = vsel %vm291, %v2528, -inf
    %2669 = vmax.xlane.f32.xlu0 %v2668
    %v2670 = vpop.xlane.xlu0 %2669
    %v2671 = vsel %vm291, %v2533, -inf
    %2672 = vmax.xlane.f32.xlu0 %v2671
    %v2673 = vpop.xlane.xlu0 %2672
    %v2674 = vsel %vm291, %v2538, -inf
    %2675 = vmax.xlane.f32.xlu0 %v2674
    %v2676 = vpop.xlane.xlu0 %2675
    %v2677 = vsel %vm291, %v2543, -inf
    %2678 = vmax.xlane.f32.xlu0 %v2677
    %v2679 = vpop.xlane.xlu0 %2678
    %v2680 = vsel %vm291, %v2548, -inf
    %2681 = vmax.xlane.f32.xlu0 %v2680
    %v2682 = vpop.xlane.xlu0 %2681
    %v2683 = vsel %vm291, %v2553, -inf
    %2684 = vmax.xlane.f32.xlu0 %v2683
    %v2685 = vpop.xlane.xlu0 %2684
    %v2686 = vsel %vm291, %v2558, -inf
    %2687 = vmax.xlane.f32.xlu0 %v2686
    %v2688 = vpop.xlane.xlu0 %2687
    %v2689 = vsel %vm291, %v2563, -inf
    %2690 = vmax.xlane.f32.xlu0 %v2689
    %v2691 = vpop.xlane.xlu0 %2690
    %v2692 = vsel %vm291, %v2568, -inf
    %2693 = vmax.xlane.f32.xlu0 %v2692
    %v2694 = vpop.xlane.xlu0 %2693
    %v2695 = vsel %vm291, %v2573, -inf
    %2696 = vmax.xlane.f32.xlu0 %v2695
    %v2697 = vpop.xlane.xlu0 %2696
    %v2698 = vsel %vm291, %v2578, -inf
    %2699 = vmax.xlane.f32.xlu0 %v2698
    %v2700 = vpop.xlane.xlu0 %2699
    %v2701 = vsel %vm291, %v2583, -inf
    %2702 = vmax.xlane.f32.xlu0 %v2701
    %v2703 = vpop.xlane.xlu0 %2702
    %v2704 = vsel %vm291, %v2588, -inf
    %2705 = vmax.xlane.f32.xlu0 %v2704
    %v2706 = vpop.xlane.xlu0 %2705
    %v2707 = vsel %vm291, %v2593, -inf
    %2708 = vmax.xlane.f32.xlu0 %v2707
    %v2709 = vpop.xlane.xlu0 %2708
    %v2710 = vsel %vm291, %v2598, -inf
    %2711 = vmax.xlane.f32.xlu0 %v2710
    %v2712 = vpop.xlane.xlu0 %2711
    %v2713 = vsel %vm291, %v2603, -inf
    %2714 = vmax.xlane.f32.xlu0 %v2713
    %v2715 = vpop.xlane.xlu0 %2714
    %v2716 = vsel %vm291, %v2608, -inf
    %2717 = vmax.xlane.f32.xlu0 %v2716
    %v2718 = vpop.xlane.xlu0 %2717
    %v2719 = vsel %vm291, %v2613, -inf
    %2720 = vmax.xlane.f32.xlu0 %v2719
    %v2721 = vpop.xlane.xlu0 %2720
    %v2722 = vsel %vm291, %v2618, -inf
    %2723 = vmax.xlane.f32.xlu0 %v2722
    %v2724 = vpop.xlane.xlu0 %2723
    %v2725 = vsel %vm291, %v2623, -inf
    %2726 = vmax.xlane.f32.xlu0 %v2725
    %v2727 = vpop.xlane.xlu0 %2726
    %v2728 = vsel %vm291, %v2628, -inf
    %2729 = vmax.xlane.f32.xlu0 %v2728
    %v2730 = vpop.xlane.xlu0 %2729
    %v2731 = vsel %vm291, %v2633, -inf
    %2732 = vmax.xlane.f32.xlu0 %v2731
    %v2733 = vpop.xlane.xlu0 %2732
    %v2734 = vsel %vm291, %v2638, -inf
    %2735 = vmax.xlane.f32.xlu0 %v2734
    %v2736 = vpop.xlane.xlu0 %2735
    %v2737 = vsub.f32 %v2483, %v2643
    %v2738 = vsub.f32 %v2488, %v2646
    %v2739 = vsub.f32 %v2493, %v2649
    %v2740 = vsub.f32 %v2498, %v2652
    %v2741 = vsub.f32 %v2503, %v2655
    %v2742 = vsub.f32 %v2508, %v2658
    %v2743 = vsub.f32 %v2513, %v2661
    %v2744 = vsub.f32 %v2518, %v2664
    %v2745 = vsub.f32 %v2523, %v2667
    %v2746 = vsub.f32 %v2528, %v2670
    %v2747 = vsub.f32 %v2533, %v2673
    %v2748 = vsub.f32 %v2538, %v2676
    %v2749 = vsub.f32 %v2543, %v2679
    %v2750 = vsub.f32 %v2548, %v2682
    %v2751 = vsub.f32 %v2553, %v2685
    %v2752 = vsub.f32 %v2558, %v2688
    %v2753 = vsub.f32 %v2563, %v2691
    %v2754 = vsub.f32 %v2568, %v2694
    %v2755 = vsub.f32 %v2573, %v2697
    %v2756 = vsub.f32 %v2578, %v2700
    %v2757 = vsub.f32 %v2583, %v2703
    %v2758 = vsub.f32 %v2588, %v2706
    %v2759 = vsub.f32 %v2593, %v2709
    %v2760 = vsub.f32 %v2598, %v2712
    %v2761 = vsub.f32 %v2603, %v2715
    %v2762 = vsub.f32 %v2608, %v2718
    %v2763 = vsub.f32 %v2613, %v2721
    %v2764 = vsub.f32 %v2618, %v2724
    %v2765 = vsub.f32 %v2623, %v2727
    %v2766 = vsub.f32 %v2628, %v2730
    %v2767 = vsub.f32 %v2633, %v2733
    %v2768 = vsub.f32 %v2638, %v2736
    %v2769 = vmul.f32 %v2737, 1.442695
    %v2770 = vpow.pop %v2769
    %v2771 = vmul.f32 %v2738, 1.442695
    %v2772 = vpow.pop %v2771
    %v2773 = vmul.f32 %v2739, 1.442695
    %v2774 = vpow.pop %v2773
    %v2775 = vmul.f32 %v2740, 1.442695
    %v2776 = vpow.pop %v2775
    %v2777 = vmul.f32 %v2741, 1.442695
    %v2778 = vpow.pop %v2777
    %v2779 = vmul.f32 %v2742, 1.442695
    %v2780 = vpow.pop %v2779
    %v2781 = vmul.f32 %v2743, 1.442695
    %v2782 = vpow.pop %v2781
    %v2783 = vmul.f32 %v2744, 1.442695
    %v2784 = vpow.pop %v2783
    %v2785 = vmul.f32 %v2745, 1.442695
    %v2786 = vpow.pop %v2785
    %v2787 = vmul.f32 %v2746, 1.442695
    %v2788 = vpow.pop %v2787
    %v2789 = vmul.f32 %v2747, 1.442695
    %v2790 = vpow.pop %v2789
    %v2791 = vmul.f32 %v2748, 1.442695
    %v2792 = vpow.pop %v2791
    %v2793 = vmul.f32 %v2749, 1.442695
    %v2794 = vpow.pop %v2793
    %v2795 = vmul.f32 %v2750, 1.442695
    %v2796 = vpow.pop %v2795
    %v2797 = vmul.f32 %v2751, 1.442695
    %v2798 = vpow.pop %v2797
    %v2799 = vmul.f32 %v2752, 1.442695
    %v2800 = vpow.pop %v2799
    %v2801 = vmul.f32 %v2753, 1.442695
    %v2802 = vpow.pop %v2801
    %v2803 = vmul.f32 %v2754, 1.442695
    %v2804 = vpow.pop %v2803
    %v2805 = vmul.f32 %v2755, 1.442695
    %v2806 = vpow.pop %v2805
    %v2807 = vmul.f32 %v2756, 1.442695
    %v2808 = vpow.pop %v2807
    %v2809 = vmul.f32 %v2757, 1.442695
    %v2810 = vpow.pop %v2809
    %v2811 = vmul.f32 %v2758, 1.442695
    %v2812 = vpow.pop %v2811
    %v2813 = vmul.f32 %v2759, 1.442695
    %v2814 = vpow.pop %v2813
    %v2815 = vmul.f32 %v2760, 1.442695
    %v2816 = vpow.pop %v2815
    %v2817 = vmul.f32 %v2761, 1.442695
    %v2818 = vpow.pop %v2817
    %v2819 = vmul.f32 %v2762, 1.442695
    %v2820 = vpow.pop %v2819
    %v2821 = vmul.f32 %v2763, 1.442695
    %v2822 = vpow.pop %v2821
    %v2823 = vmul.f32 %v2764, 1.442695
    %v2824 = vpow.pop %v2823
    %v2825 = vmul.f32 %v2765, 1.442695
    %v2826 = vpow.pop %v2825
    %v2827 = vmul.f32 %v2766, 1.442695
    %v2828 = vpow.pop %v2827
    %v2829 = vmul.f32 %v2767, 1.442695
    %v2830 = vpow.pop %v2829
    %v2831 = vmul.f32 %v2768, 1.442695
    %v2832 = vpow.pop %v2831
    %v2833 = vsel %vm291, %v2770, 0.0
    %2834 = vadd.xlane.f32.xlu0 %v2833
    %v2835 = vpop.xlane.xlu0 %2834
    %v2836 = vsel %vm291, %v2772, 0.0
    %2837 = vadd.xlane.f32.xlu0 %v2836
    %v2838 = vpop.xlane.xlu0 %2837
    %v2839 = vsel %vm291, %v2774, 0.0
    %2840 = vadd.xlane.f32.xlu0 %v2839
    %v2841 = vpop.xlane.xlu0 %2840
    %v2842 = vsel %vm291, %v2776, 0.0
    %2843 = vadd.xlane.f32.xlu0 %v2842
    %v2844 = vpop.xlane.xlu0 %2843
    %v2845 = vsel %vm291, %v2778, 0.0
    %2846 = vadd.xlane.f32.xlu0 %v2845
    %v2847 = vpop.xlane.xlu0 %2846
    %v2848 = vsel %vm291, %v2780, 0.0
    %2849 = vadd.xlane.f32.xlu0 %v2848
    %v2850 = vpop.xlane.xlu0 %2849
    %v2851 = vsel %vm291, %v2782, 0.0
    %2852 = vadd.xlane.f32.xlu0 %v2851
    %v2853 = vpop.xlane.xlu0 %2852
    %v2854 = vsel %vm291, %v2784, 0.0
    %2855 = vadd.xlane.f32.xlu0 %v2854
    %v2856 = vpop.xlane.xlu0 %2855
    %v2857 = vsel %vm291, %v2786, 0.0
    %2858 = vadd.xlane.f32.xlu0 %v2857
    %v2859 = vpop.xlane.xlu0 %2858
    %v2860 = vsel %vm291, %v2788, 0.0
    %2861 = vadd.xlane.f32.xlu0 %v2860
    %v2862 = vpop.xlane.xlu0 %2861
    %v2863 = vsel %vm291, %v2790, 0.0
    %2864 = vadd.xlane.f32.xlu0 %v2863
    %v2865 = vpop.xlane.xlu0 %2864
    %v2866 = vsel %vm291, %v2792, 0.0
    %2867 = vadd.xlane.f32.xlu0 %v2866
    %v2868 = vpop.xlane.xlu0 %2867
    %v2869 = vsel %vm291, %v2794, 0.0
    %2870 = vadd.xlane.f32.xlu0 %v2869
    %v2871 = vpop.xlane.xlu0 %2870
    %v2872 = vsel %vm291, %v2796, 0.0
    %2873 = vadd.xlane.f32.xlu0 %v2872
    %v2874 = vpop.xlane.xlu0 %2873
    %v2875 = vsel %vm291, %v2798, 0.0
    %2876 = vadd.xlane.f32.xlu0 %v2875
    %v2877 = vpop.xlane.xlu0 %2876
    %v2878 = vsel %vm291, %v2800, 0.0
    %2879 = vadd.xlane.f32.xlu0 %v2878
    %v2880 = vpop.xlane.xlu0 %2879
    %v2881 = vsel %vm291, %v2802, 0.0
    %2882 = vadd.xlane.f32.xlu0 %v2881
    %v2883 = vpop.xlane.xlu0 %2882
    %v2884 = vsel %vm291, %v2804, 0.0
    %2885 = vadd.xlane.f32.xlu0 %v2884
    %v2886 = vpop.xlane.xlu0 %2885
    %v2887 = vsel %vm291, %v2806, 0.0
    %2888 = vadd.xlane.f32.xlu0 %v2887
    %v2889 = vpop.xlane.xlu0 %2888
    %v2890 = vsel %vm291, %v2808, 0.0
    %2891 = vadd.xlane.f32.xlu0 %v2890
    %v2892 = vpop.xlane.xlu0 %2891
    %v2893 = vsel %vm291, %v2810, 0.0
    %2894 = vadd.xlane.f32.xlu0 %v2893
    %v2895 = vpop.xlane.xlu0 %2894
    %v2896 = vsel %vm291, %v2812, 0.0
    %2897 = vadd.xlane.f32.xlu0 %v2896
    %v2898 = vpop.xlane.xlu0 %2897
    %v2899 = vsel %vm291, %v2814, 0.0
    %2900 = vadd.xlane.f32.xlu0 %v2899
    %v2901 = vpop.xlane.xlu0 %2900
    %v2902 = vsel %vm291, %v2816, 0.0
    %2903 = vadd.xlane.f32.xlu0 %v2902
    %v2904 = vpop.xlane.xlu0 %2903
    %v2905 = vsel %vm291, %v2818, 0.0
    %2906 = vadd.xlane.f32.xlu0 %v2905
    %v2907 = vpop.xlane.xlu0 %2906
    %v2908 = vsel %vm291, %v2820, 0.0
    %2909 = vadd.xlane.f32.xlu0 %v2908
    %v2910 = vpop.xlane.xlu0 %2909
    %v2911 = vsel %vm291, %v2822, 0.0
    %2912 = vadd.xlane.f32.xlu0 %v2911
    %v2913 = vpop.xlane.xlu0 %2912
    %v2914 = vsel %vm291, %v2824, 0.0
    %2915 = vadd.xlane.f32.xlu0 %v2914
    %v2916 = vpop.xlane.xlu0 %2915
    %v2917 = vsel %vm291, %v2826, 0.0
    %2918 = vadd.xlane.f32.xlu0 %v2917
    %v2919 = vpop.xlane.xlu0 %2918
    %v2920 = vsel %vm291, %v2828, 0.0
    %2921 = vadd.xlane.f32.xlu0 %v2920
    %v2922 = vpop.xlane.xlu0 %2921
    %v2923 = vsel %vm291, %v2830, 0.0
    %2924 = vadd.xlane.f32.xlu0 %v2923
    %v2925 = vpop.xlane.xlu0 %2924
    %v2926 = vsel %vm291, %v2832, 0.0
    %2927 = vadd.xlane.f32.xlu0 %v2926
    %v2928 = vpop.xlane.xlu0 %2927
    %v2930 = vsel %vm291, %v2770, 0
    %v2933 = vsel %vm291, %v2772, 0
    %v2936 = vsel %vm291, %v2774, 0
    %v2939 = vsel %vm291, %v2776, 0
    %v2942 = vsel %vm291, %v2778, 0
    %v2945 = vsel %vm291, %v2780, 0
    %v2948 = vsel %vm291, %v2782, 0
    %v2951 = vsel %vm291, %v2784, 0
    %v2954 = vsel %vm291, %v2786, 0
    %v2957 = vsel %vm291, %v2788, 0
    %v2960 = vsel %vm291, %v2790, 0
    %v2963 = vsel %vm291, %v2792, 0
    %v2966 = vsel %vm291, %v2794, 0
    %v2969 = vsel %vm291, %v2796, 0
    %v2972 = vsel %vm291, %v2798, 0
    %v2975 = vsel %vm291, %v2800, 0
    %v2978 = vsel %vm291, %v2802, 0
    %v2981 = vsel %vm291, %v2804, 0
    %v2984 = vsel %vm291, %v2806, 0
    %v2987 = vsel %vm291, %v2808, 0
    %v2990 = vsel %vm291, %v2810, 0
    %v2993 = vsel %vm291, %v2812, 0
    %v2996 = vsel %vm291, %v2814, 0
    %v2999 = vsel %vm291, %v2816, 0
    %v3002 = vsel %vm291, %v2818, 0
    %v3005 = vsel %vm291, %v2820, 0
    %v3008 = vsel %vm291, %v2822, 0
    %v3011 = vsel %vm291, %v2824, 0
    %v3014 = vsel %vm291, %v2826, 0
    %v3017 = vsel %vm291, %v2828, 0
    %v3020 = vsel %vm291, %v2830, 0
    %v3023 = vsel %vm291, %v2832, 0
    %3025 = vmatprep.subr.mxu0 0.0
    %3026 = vmatpush1.msra.mxu0 %v2244
    %3027 = vmatprep.subr.mxu0 0.0
    %3028 = vmatpush1.msra.mxu0 %v2250
    %3029 = vmatprep.subr.mxu0 0.0
    %3030 = vmatpush1.msra.mxu0 %v2256
    %3031 = vmatprep.subr.mxu0 0.0
    %3032 = vmatpush1.msra.mxu0 %v2262
    %3033 = vmatprep.subr.mxu0 0.0
    %3034 = vmatpush1.msra.mxu0 0.0
    %3035 = vmatprep.subr.mxu0 0.0
    %3036 = vmatpush1.msra.mxu0 0.0
    %3037 = vmatprep.subr.mxu0 0.0
    %3038 = vmatpush1.msra.mxu0 0.0
    %3039 = vmatprep.subr.mxu0 0.0
    %3040 = vmatpush1.msra.mxu0 0.0
    %3041 = vmatprep.subr.mxu0 0.0
    %3042 = vmatpush1.msra.mxu0 0.0
    %3043 = vmatprep.subr.mxu0 0.0
    %3044 = vmatpush1.msra.mxu0 0.0
    %3045 = vmatprep.subr.mxu0 0.0
    %3046 = vmatpush1.msra.mxu0 0.0
    %3047 = vmatprep.subr.mxu0 0.0
    %3048 = vmatpush1.msra.mxu0 0.0
    %3049 = vmatprep.subr.mxu0 0.0
    %3050 = vmatpush1.msra.mxu0 0.0
    %3051 = vmatprep.subr.mxu0 0.0
    %3052 = vmatpush1.msra.mxu0 0.0
    %3053 = vmatprep.subr.mxu0 0.0
    %3054 = vmatpush1.msra.mxu0 0.0
    %3055 = vmatprep.subr.mxu0 0.0
    %3056 = vmatpush1.msra.mxu0 0.0
    %3057 = vmatprep.subr.mxu0 0.0
    %3058 = vmatpush1.msra.mxu0 0.0
    %3059 = vmatprep.subr.mxu0 0.0
    %3060 = vmatpush1.msra.mxu0 0.0
    %3061 = vmatprep.subr.mxu0 0.0
    %3062 = vmatpush1.msra.mxu0 0.0
    %3063 = vmatprep.subr.mxu0 0.0
    %3064 = vmatpush1.msra.mxu0 0.0
    %3065 = vmatprep.subr.mxu0 0.0
    %3066 = vmatpush1.msra.mxu0 0.0
    %3067 = vmatprep.subr.mxu0 0.0
    %3068 = vmatpush1.msra.mxu0 0.0
    %3069 = vmatprep.subr.mxu0 0.0
    %3070 = vmatpush1.msra.mxu0 0.0
    %3071 = vmatprep.subr.mxu0 0.0
    %3072 = vmatpush1.msra.mxu0 0.0
    %3073 = vmatprep.subr.mxu0 0.0
    %3074 = vmatpush1.msra.mxu0 0.0
    %3075 = vmatprep.subr.mxu0 0.0
    %3076 = vmatpush1.msra.mxu0 0.0
    %3077 = vmatprep.subr.mxu0 0.0
    %3078 = vmatpush1.msra.mxu0 0.0
    %3079 = vmatprep.subr.mxu0 0.0
    %3080 = vmatpush1.msra.mxu0 0.0
    %3081 = vmatprep.subr.mxu0 0.0
    %3082 = vmatpush1.msra.mxu0 0.0
    %3083 = vmatprep.subr.mxu0 0.0
    %3084 = vmatpush1.msra.mxu0 0.0
    %3085 = vmatprep.subr.mxu0 0.0
    %3086 = vmatpush1.msra.mxu0 0.0
    %3087 = vmatprep.subr.mxu0 0.0
    %3088 = vmatpush1.msra.mxu0 0.0
    %3089 = vmatprep.mubr.f32.mxu0 0.0
    %3090 = vmatmul.mubr.f32.gmra.mrb[0].mxu0 %v2930
    %v3091 = vpop.f32.mrb[0].mxu0
    %v3092 = vadd.f32 0.0, %v3091
    %v3093 = vpop.f32.mrb[0].mxu0
    %3094 = vmatprep.mubr.f32.mxu0 0.0
    %3095 = vmatmul.mubr.f32.gmra.mrb[0].mxu0 %v2933
    %v3096 = vpop.f32.mrb[0].mxu0
    %v3097 = vadd.f32 0.0, %v3096
    %v3098 = vpop.f32.mrb[0].mxu0
    %3099 = vmatprep.mubr.f32.mxu0 0.0
    %3100 = vmatmul.mubr.f32.gmra.mrb[0].mxu0 %v2936
    %v3101 = vpop.f32.mrb[0].mxu0
    %v3102 = vadd.f32 0.0, %v3101
    %v3103 = vpop.f32.mrb[0].mxu0
    %3104 = vmatprep.mubr.f32.mxu0 0.0
    %3105 = vmatmul.mubr.f32.gmra.mrb[0].mxu0 %v2939
    %v3106 = vpop.f32.mrb[0].mxu0
    %v3107 = vadd.f32 0.0, %v3106
    %v3108 = vpop.f32.mrb[0].mxu0
    %3109 = vmatprep.mubr.f32.mxu0 0.0
    %3110 = vmatmul.mubr.f32.gmra.mrb[0].mxu0 %v2942
    %v3111 = vpop.f32.mrb[0].mxu0
    %v3112 = vadd.f32 0.0, %v3111
    %v3113 = vpop.f32.mrb[0].mxu0
    %3114 = vmatprep.mubr.f32.mxu0 0.0
    %3115 = vmatmul.mubr.f32.gmra.mrb[0].mxu0 %v2945
    %v3116 = vpop.f32.mrb[0].mxu0
    %v3117 = vadd.f32 0.0, %v3116
    %v3118 = vpop.f32.mrb[0].mxu0
    %3119 = vmatprep.mubr.f32.mxu0 0.0
    %3120 = vmatmul.mubr.f32.gmra.mrb[0].mxu0 %v2948
    %v3121 = vpop.f32.mrb[0].mxu0
    %v3122 = vadd.f32 0.0, %v3121
    %v3123 = vpop.f32.mrb[0].mxu0
    %3124 = vmatprep.mubr.f32.mxu0 0.0
    %3125 = vmatmul.mubr.f32.gmra.mrb[0].mxu0 %v2951
    %v3126 = vpop.f32.mrb[0].mxu0
    %v3127 = vadd.f32 0.0, %v3126
    %v3128 = vpop.f32.mrb[0].mxu0
    %3129 = vmatprep.mubr.f32.mxu0 0.0
    %3130 = vmatmul.mubr.f32.gmra.mrb[0].mxu0 %v2954
    %v3131 = vpop.f32.mrb[0].mxu0
    %v3132 = vadd.f32 0.0, %v3131
    %v3133 = vpop.f32.mrb[0].mxu0
    %3134 = vmatprep.mubr.f32.mxu0 0.0
    %3135 = vmatmul.mubr.f32.gmra.mrb[0].mxu0 %v2957
    %v3136 = vpop.f32.mrb[0].mxu0
    %v3137 = vadd.f32 0.0, %v3136
    %v3138 = vpop.f32.mrb[0].mxu0
    %3139 = vmatprep.mubr.f32.mxu0 0.0
    %3140 = vmatmul.mubr.f32.gmra.mrb[0].mxu0 %v2960
    %v3141 = vpop.f32.mrb[0].mxu0
    %v3142 = vadd.f32 0.0, %v3141
    %v3143 = vpop.f32.mrb[0].mxu0
    %3144 = vmatprep.mubr.f32.mxu0 0.0
    %3145 = vmatmul.mubr.f32.gmra.mrb[0].mxu0 %v2963
    %v3146 = vpop.f32.mrb[0].mxu0
    %v3147 = vadd.f32 0.0, %v3146
    %v3148 = vpop.f32.mrb[0].mxu0
    %3149 = vmatprep.mubr.f32.mxu0 0.0
    %3150 = vmatmul.mubr.f32.gmra.mrb[0].mxu0 %v2966
    %v3151 = vpop.f32.mrb[0].mxu0
    %v3152 = vadd.f32 0.0, %v3151
    %v3153 = vpop.f32.mrb[0].mxu0
    %3154 = vmatprep.mubr.f32.mxu0 0.0
    %3155 = vmatmul.mubr.f32.gmra.mrb[0].mxu0 %v2969
    %v3156 = vpop.f32.mrb[0].mxu0
    %v3157 = vadd.f32 0.0, %v3156
    %v3158 = vpop.f32.mrb[0].mxu0
    %3159 = vmatprep.mubr.f32.mxu0 0.0
    %3160 = vmatmul.mubr.f32.gmra.mrb[0].mxu0 %v2972
    %v3161 = vpop.f32.mrb[0].mxu0
    %v3162 = vadd.f32 0.0, %v3161
    %v3163 = vpop.f32.mrb[0].mxu0
    %3164 = vmatprep.mubr.f32.mxu0 0.0
    %3165 = vmatmul.mubr.f32.gmra.mrb[0].mxu0 %v2975
    %v3166 = vpop.f32.mrb[0].mxu0
    %v3167 = vadd.f32 0.0, %v3166
    %v3168 = vpop.f32.mrb[0].mxu0
    %3169 = vmatprep.mubr.f32.mxu0 0.0
    %3170 = vmatmul.mubr.f32.gmra.mrb[0].mxu0 %v2978
    %v3171 = vpop.f32.mrb[0].mxu0
    %v3172 = vadd.f32 0.0, %v3171
    %v3173 = vpop.f32.mrb[0].mxu0
    %3174 = vmatprep.mubr.f32.mxu0 0.0
    %3175 = vmatmul.mubr.f32.gmra.mrb[0].mxu0 %v2981
    %v3176 = vpop.f32.mrb[0].mxu0
    %v3177 = vadd.f32 0.0, %v3176
    %v3178 = vpop.f32.mrb[0].mxu0
    %3179 = vmatprep.mubr.f32.mxu0 0.0
    %3180 = vmatmul.mubr.f32.gmra.mrb[0].mxu0 %v2984
    %v3181 = vpop.f32.mrb[0].mxu0
    %v3182 = vadd.f32 0.0, %v3181
    %v3183 = vpop.f32.mrb[0].mxu0
    %3184 = vmatprep.mubr.f32.mxu0 0.0
    %3185 = vmatmul.mubr.f32.gmra.mrb[0].mxu0 %v2987
    %v3186 = vpop.f32.mrb[0].mxu0
    %v3187 = vadd.f32 0.0, %v3186
    %v3188 = vpop.f32.mrb[0].mxu0
    %3189 = vmatprep.mubr.f32.mxu0 0.0
    %3190 = vmatmul.mubr.f32.gmra.mrb[0].mxu0 %v2990
    %v3191 = vpop.f32.mrb[0].mxu0
    %v3192 = vadd.f32 0.0, %v3191
    %v3193 = vpop.f32.mrb[0].mxu0
    %3194 = vmatprep.mubr.f32.mxu0 0.0
    %3195 = vmatmul.mubr.f32.gmra.mrb[0].mxu0 %v2993
    %v3196 = vpop.f32.mrb[0].mxu0
    %v3197 = vadd.f32 0.0, %v3196
    %v3198 = vpop.f32.mrb[0].mxu0
    %3199 = vmatprep.mubr.f32.mxu0 0.0
    %3200 = vmatmul.mubr.f32.gmra.mrb[0].mxu0 %v2996
    %v3201 = vpop.f32.mrb[0].mxu0
    %v3202 = vadd.f32 0.0, %v3201
    %v3203 = vpop.f32.mrb[0].mxu0
    %3204 = vmatprep.mubr.f32.mxu0 0.0
    %3205 = vmatmul.mubr.f32.gmra.mrb[0].mxu0 %v2999
    %v3206 = vpop.f32.mrb[0].mxu0
    %v3207 = vadd.f32 0.0, %v3206
    %v3208 = vpop.f32.mrb[0].mxu0
    %3209 = vmatprep.mubr.f32.mxu0 0.0
    %3210 = vmatmul.mubr.f32.gmra.mrb[0].mxu0 %v3002
    %v3211 = vpop.f32.mrb[0].mxu0
    %v3212 = vadd.f32 0.0, %v3211
    %v3213 = vpop.f32.mrb[0].mxu0
    %3214 = vmatprep.mubr.f32.mxu0 0.0
    %3215 = vmatmul.mubr.f32.gmra.mrb[0].mxu0 %v3005
    %v3216 = vpop.f32.mrb[0].mxu0
    %v3217 = vadd.f32 0.0, %v3216
    %v3218 = vpop.f32.mrb[0].mxu0
    %3219 = vmatprep.mubr.f32.mxu0 0.0
    %3220 = vmatmul.mubr.f32.gmra.mrb[0].mxu0 %v3008
    %v3221 = vpop.f32.mrb[0].mxu0
    %v3222 = vadd.f32 0.0, %v3221
    %v3223 = vpop.f32.mrb[0].mxu0
    %3224 = vmatprep.mubr.f32.mxu0 0.0
    %3225 = vmatmul.mubr.f32.gmra.mrb[0].mxu0 %v3011
    %v3226 = vpop.f32.mrb[0].mxu0
    %v3227 = vadd.f32 0.0, %v3226
    %v3228 = vpop.f32.mrb[0].mxu0
    %3229 = vmatprep.mubr.f32.mxu0 0.0
    %3230 = vmatmul.mubr.f32.gmra.mrb[0].mxu0 %v3014
    %v3231 = vpop.f32.mrb[0].mxu0
    %v3232 = vadd.f32 0.0, %v3231
    %v3233 = vpop.f32.mrb[0].mxu0
    %3234 = vmatprep.mubr.f32.mxu0 0.0
    %3235 = vmatmul.mubr.f32.gmra.mrb[0].mxu0 %v3017
    %v3236 = vpop.f32.mrb[0].mxu0
    %v3237 = vadd.f32 0.0, %v3236
    %v3238 = vpop.f32.mrb[0].mxu0
    %3239 = vmatprep.mubr.f32.mxu0 0.0
    %3240 = vmatmul.mubr.f32.gmra.mrb[0].mxu0 %v3020
    %v3241 = vpop.f32.mrb[0].mxu0
    %v3242 = vadd.f32 0.0, %v3241
    %v3243 = vpop.f32.mrb[0].mxu0
    %3244 = vmatprep.mubr.f32.mxu0 0.0
    %3245 = vmatmul.mubr.f32.gmra.mrb[0].mxu0 %v3023
    %v3246 = vpop.f32.mrb[0].mxu0
    %v3247 = vadd.f32 0.0, %v3246
    %v3248 = vpop.f32.mrb[0].mxu0
    %3249 = vdwg.mxu0
    %v3250 = vmul.f32 %v3092, %v121
    %v3251 = vmul.f32 %v3097, %v122
    %v3252 = vmul.f32 %v3102, %v123
    %v3253 = vmul.f32 %v3107, %v124
    %v3254 = vmul.f32 %v3112, %v125
    %v3255 = vmul.f32 %v3117, %v126
    %v3256 = vmul.f32 %v3122, %v127
    %v3257 = vmul.f32 %v3127, %v128
    %v3258 = vmul.f32 %v3132, %v129
    %v3259 = vmul.f32 %v3137, %v130
    %v3260 = vmul.f32 %v3142, %v131
    %v3261 = vmul.f32 %v3147, %v132
    %v3262 = vmul.f32 %v3152, %v133
    %v3263 = vmul.f32 %v3157, %v134
    %v3264 = vmul.f32 %v3162, %v135
    %v3265 = vmul.f32 %v3167, %v136
    %v3266 = vmul.f32 %v3172, %v137
    %v3267 = vmul.f32 %v3177, %v138
    %v3268 = vmul.f32 %v3182, %v139
    %v3269 = vmul.f32 %v3187, %v140
    %v3270 = vmul.f32 %v3192, %v141
    %v3271 = vmul.f32 %v3197, %v142
    %v3272 = vmul.f32 %v3202, %v143
    %v3273 = vmul.f32 %v3207, %v144
    %v3274 = vmul.f32 %v3212, %v145
    %v3275 = vmul.f32 %v3217, %v146
    %v3276 = vmul.f32 %v3222, %v147
    %v3277 = vmul.f32 %v3227, %v148
    %v3278 = vmul.f32 %v3232, %v149
    %v3279 = vmul.f32 %v3237, %v150
    %v3280 = vmul.f32 %v3242, %v151
    %v3281 = vmul.f32 %v3247, %v152
    %v3282 = vrcp.pop %v2835
    %v3283 = vrcp.pop %v2838
    %v3284 = vrcp.pop %v2841
    %v3285 = vrcp.pop %v2844
    %v3286 = vrcp.pop %v2847
    %v3287 = vrcp.pop %v2850
    %v3288 = vrcp.pop %v2853
    %v3289 = vrcp.pop %v2856
    %v3290 = vrcp.pop %v2859
    %v3291 = vrcp.pop %v2862
    %v3292 = vrcp.pop %v2865
    %v3293 = vrcp.pop %v2868
    %v3294 = vrcp.pop %v2871
    %v3295 = vrcp.pop %v2874
    %v3296 = vrcp.pop %v2877
    %v3297 = vrcp.pop %v2880
    %v3298 = vrcp.pop %v2883
    %v3299 = vrcp.pop %v2886
    %v3300 = vrcp.pop %v2889
    %v3301 = vrcp.pop %v2892
    %v3302 = vrcp.pop %v2895
    %v3303 = vrcp.pop %v2898
    %v3304 = vrcp.pop %v2901
    %v3305 = vrcp.pop %v2904
    %v3306 = vrcp.pop %v2907
    %v3307 = vrcp.pop %v2910
    %v3308 = vrcp.pop %v2913
    %v3309 = vrcp.pop %v2916
    %v3310 = vrcp.pop %v2919
    %v3311 = vrcp.pop %v2922
    %v3312 = vrcp.pop %v2925
    %v3313 = vrcp.pop %v2928
    %v3314 = vmul.f32 %v3250, %v3282
    %v3315 = vmul.f32 %v3251, %v3283
    %v3316 = vmul.f32 %v3252, %v3284
    %v3317 = vmul.f32 %v3253, %v3285
    %v3318 = vmul.f32 %v3254, %v3286
    %v3319 = vmul.f32 %v3255, %v3287
    %v3320 = vmul.f32 %v3256, %v3288
    %v3321 = vmul.f32 %v3257, %v3289
    %v3322 = vmul.f32 %v3258, %v3290
    %v3323 = vmul.f32 %v3259, %v3291
    %v3324 = vmul.f32 %v3260, %v3292
    %v3325 = vmul.f32 %v3261, %v3293
    %v3326 = vmul.f32 %v3262, %v3294
    %v3327 = vmul.f32 %v3263, %v3295
    %v3328 = vmul.f32 %v3264, %v3296
    %v3329 = vmul.f32 %v3265, %v3297
    %v3330 = vmul.f32 %v3266, %v3298
    %v3331 = vmul.f32 %v3267, %v3299
    %v3332 = vmul.f32 %v3268, %v3300
    %v3333 = vmul.f32 %v3269, %v3301
    %v3334 = vmul.f32 %v3270, %v3302
    %v3335 = vmul.f32 %v3271, %v3303
    %v3336 = vmul.f32 %v3272, %v3304
    %v3337 = vmul.f32 %v3273, %v3305
    %v3338 = vmul.f32 %v3274, %v3306
    %v3339 = vmul.f32 %v3275, %v3307
    %v3340 = vmul.f32 %v3276, %v3308
    %v3341 = vmul.f32 %v3277, %v3309
    %v3342 = vmul.f32 %v3278, %v3310
    %v3343 = vmul.f32 %v3279, %v3311
    %v3344 = vmul.f32 %v3280, %v3312
    %v3345 = vmul.f32 %v3281, %v3313
    %v3346 = vadd.f32 %v3314, %v3318
    %v3347 = vadd.f32 %v3315, %v3319
    %v3348 = vadd.f32 %v3316, %v3320
    %v3349 = vadd.f32 %v3317, %v3321
    %v3350 = vadd.f32 %v3322, %v3326
    %v3351 = vadd.f32 %v3323, %v3327
    %v3352 = vadd.f32 %v3324, %v3328
    %v3353 = vadd.f32 %v3325, %v3329
    %v3354 = vadd.f32 %v3330, %v3334
    %v3355 = vadd.f32 %v3331, %v3335
    %v3356 = vadd.f32 %v3332, %v3336
    %v3357 = vadd.f32 %v3333, %v3337
    %v3358 = vadd.f32 %v3338, %v3342
    %v3359 = vadd.f32 %v3339, %v3343
    %v3360 = vadd.f32 %v3340, %v3344
    %v3361 = vadd.f32 %v3341, %v3345
    %v3362 = vadd.f32 %v3346, %v3350
    %v3363 = vadd.f32 %v3347, %v3351
    %v3364 = vadd.f32 %v3348, %v3352
    %v3365 = vadd.f32 %v3349, %v3353
    %v3366 = vadd.f32 %v3354, %v3358
    %v3367 = vadd.f32 %v3355, %v3359
    %v3368 = vadd.f32 %v3356, %v3360
    %v3369 = vadd.f32 %v3357, %v3361
    %v3370 = vadd.f32 %v3362, %v3366
    %v3371 = vadd.f32 %v3363, %v3367
    %v3372 = vadd.f32 %v3364, %v3368
    %v3373 = vadd.f32 %v3365, %v3369
    %v3374 = vld [vmem:[%s4 + $0x47] ss:$0 sm:$0xff]
    %3383 = vrot.lane.b32.xlu0 %v2135, 64
    %v3384 = vpop.permute.xlu0 %3383
    %3385 = vrot.lane.b32.xlu0 %v2137, 64
    %v3386 = vpop.permute.xlu0 %3385
    %3387 = vrot.lane.b32.xlu0 %v2139, 64
    %v3388 = vpop.permute.xlu0 %3387
    %3389 = vrot.lane.b32.xlu0 %v2141, 64
    %v3390 = vpop.permute.xlu0 %3389
    %3391 = vrot.lane.b32.xlu0 %v2143, 64
    %v3392 = vpop.permute.xlu0 %3391
    %3393 = vrot.lane.b32.xlu0 %v2145, 64
    %v3394 = vpop.permute.xlu0 %3393
    %3395 = vrot.lane.b32.xlu0 %v2147, 64
    %v3396 = vpop.permute.xlu0 %3395
    %3397 = vrot.lane.b32.xlu0 %v2149, 64
    %v3398 = vpop.permute.xlu0 %3397
    %v3408 = vsel %vm430, %v3370, 0
    %v3411 = vsel %vm430, %v3371, 0
    %v3414 = vsel %vm430, %v3372, 0
    %v3417 = vsel %vm430, %v3373, 0
    %3419 = vmatprep.subr.mxu0 0.0
    %3420 = vmatpush1.msra.mxu0 %v3384
    %3421 = vmatprep.subr.mxu0 0.0
    %3422 = vmatpush1.msra.mxu0 %v3386
    %3423 = vmatprep.subr.mxu0 0.0
    %3424 = vmatpush1.msra.mxu0 %v3388
    %3425 = vmatprep.subr.mxu0 0.0
    %3426 = vmatpush1.msra.mxu0 %v3390
    %3427 = vmatprep.subr.mxu0 0.0
    %3428 = vmatpush1.msra.mxu0 %v3392
    %3429 = vmatprep.subr.mxu0 0.0
    %3430 = vmatpush1.msra.mxu0 %v3394
    %3431 = vmatprep.subr.mxu0 0.0
    %3432 = vmatpush1.msra.mxu0 %v3396
    %3433 = vmatprep.subr.mxu0 0.0
    %3434 = vmatpush1.msra.mxu0 %v3398
    %3435 = vmatprep.subr.mxu0 0.0
    %3436 = vmatpush1.msra.mxu0 0.0
    %3437 = vmatprep.subr.mxu0 0.0
    %3438 = vmatpush1.msra.mxu0 0.0
    %3439 = vmatprep.subr.mxu0 0.0
    %3440 = vmatpush1.msra.mxu0 0.0
    %3441 = vmatprep.subr.mxu0 0.0
    %3442 = vmatpush1.msra.mxu0 0.0
    %3443 = vmatprep.subr.mxu0 0.0
    %3444 = vmatpush1.msra.mxu0 0.0
    %3445 = vmatprep.subr.mxu0 0.0
    %3446 = vmatpush1.msra.mxu0 0.0
    %3447 = vmatprep.subr.mxu0 0.0
    %3448 = vmatpush1.msra.mxu0 0.0
    %3449 = vmatprep.subr.mxu0 0.0
    %3450 = vmatpush1.msra.mxu0 0.0
    %3451 = vmatprep.subr.mxu0 0.0
    %3452 = vmatpush1.msra.mxu0 0.0
    %3453 = vmatprep.subr.mxu0 0.0
    %3454 = vmatpush1.msra.mxu0 0.0
    %3455 = vmatprep.subr.mxu0 0.0
    %3456 = vmatpush1.msra.mxu0 0.0
    %3457 = vmatprep.subr.mxu0 0.0
    %3458 = vmatpush1.msra.mxu0 0.0
    %3459 = vmatprep.subr.mxu0 0.0
    %3460 = vmatpush1.msra.mxu0 0.0
    %3461 = vmatprep.subr.mxu0 0.0
    %3462 = vmatpush1.msra.mxu0 0.0
    %3463 = vmatprep.subr.mxu0 0.0
    %3464 = vmatpush1.msra.mxu0 0.0
    %3465 = vmatprep.subr.mxu0 0.0
    %3466 = vmatpush1.msra.mxu0 0.0
    %3467 = vmatprep.subr.mxu0 0.0
    %3468 = vmatpush1.msra.mxu0 0.0
    %3469 = vmatprep.subr.mxu0 0.0
    %3470 = vmatpush1.msra.mxu0 0.0
    %3471 = vmatprep.subr.mxu0 0.0
    %3472 = vmatpush1.msra.mxu0 0.0
    %3473 = vmatprep.subr.mxu0 0.0
    %3474 = vmatpush1.msra.mxu0 0.0
    %3475 = vmatprep.subr.mxu0 0.0
    %3476 = vmatpush1.msra.mxu0 0.0
    %3477 = vmatprep.subr.mxu0 0.0
    %3478 = vmatpush1.msra.mxu0 0.0
    %3479 = vmatprep.subr.mxu0 0.0
    %3480 = vmatpush1.msra.mxu0 0.0
    %3481 = vmatprep.subr.mxu0 0.0
    %3482 = vmatpush1.msra.mxu0 0.0
    %3483 = vmatprep.mubr.f32.mxu0 0.0
    %3484 = vmatmul.mubr.f32.gmra.mrb[0].mxu0 %v3408
    %v3485 = vpop.f32.mrb[0].mxu0
    %v3486 = vadd.f32 %v3374, %v3485
    %v3487 = vpop.f32.mrb[0].mxu0
    %3488 = vmatprep.mubr.f32.mxu0 0.0
    %3489 = vmatmul.mubr.f32.gmra.mrb[0].mxu0 %v3411
    %v3490 = vpop.f32.mrb[0].mxu0
    %v3491 = vadd.f32 %v3374, %v3490
    %v3492 = vpop.f32.mrb[0].mxu0
    %3493 = vmatprep.mubr.f32.mxu0 0.0
    %3494 = vmatmul.mubr.f32.gmra.mrb[0].mxu0 %v3414
    %v3495 = vpop.f32.mrb[0].mxu0
    %v3496 = vadd.f32 %v3374, %v3495
    %v3497 = vpop.f32.mrb[0].mxu0
    %3498 = vmatprep.mubr.f32.mxu0 0.0
    %3499 = vmatmul.mubr.f32.gmra.mrb[0].mxu0 %v3417
    %v3500 = vpop.f32.mrb[0].mxu0
    %v3501 = vadd.f32 %v3374, %v3500
    %v3502 = vpop.f32.mrb[0].mxu0
    %3503 = vdwg.mxu0
    %v3504 = vadd.f32 %v2129, %v3486
    %v3505 = vadd.f32 %v2130, %v3491
    %v3506 = vadd.f32 %v2131, %v3496
    %v3507 = vadd.f32 %v2132, %v3501
    %v3508 = vld [vmem:[%s4 + $0x50] ss:$0 sm:$0xff]
    %v3509 = vld [vmem:[%s4 + $0x51] ss:$0 sm:$0xff]
    %v3510 = vsel %vm430, %v3504, 0.0
    %3511 = vadd.xlane.f32.xlu0 %v3510
    %v3512 = vpop.xlane.xlu0 %3511
    %v3513 = vsel %vm430, %v3505, 0.0
    %3514 = vadd.xlane.f32.xlu0 %v3513
    %v3515 = vpop.xlane.xlu0 %3514
    %v3516 = vsel %vm430, %v3506, 0.0
    %3517 = vadd.xlane.f32.xlu0 %v3516
    %v3518 = vpop.xlane.xlu0 %3517
    %v3519 = vsel %vm430, %v3507, 0.0
    %3520 = vadd.xlane.f32.xlu0 %v3519
    %v3521 = vpop.xlane.xlu0 %3520
    %v3522 = vmul.f32 %v3512, %v1790
    %v3523 = vmul.f32 %v3515, %v1790
    %v3524 = vmul.f32 %v3518, %v1790
    %v3525 = vmul.f32 %v3521, %v1790
    %v3526 = vmul.f32 %v3504, %v3504
    %v3527 = vmul.f32 %v3505, %v3505
    %v3528 = vmul.f32 %v3506, %v3506
    %v3529 = vmul.f32 %v3507, %v3507
    %v3530 = vsel %vm430, %v3526, 0.0
    %3531 = vadd.xlane.f32.xlu0 %v3530
    %v3532 = vpop.xlane.xlu0 %3531
    %v3533 = vsel %vm430, %v3527, 0.0
    %3534 = vadd.xlane.f32.xlu0 %v3533
    %v3535 = vpop.xlane.xlu0 %3534
    %v3536 = vsel %vm430, %v3528, 0.0
    %3537 = vadd.xlane.f32.xlu0 %v3536
    %v3538 = vpop.xlane.xlu0 %3537
    %v3539 = vsel %vm430, %v3529, 0.0
    %3540 = vadd.xlane.f32.xlu0 %v3539
    %v3541 = vpop.xlane.xlu0 %3540
    %v3542 = vmul.f32 %v3532, %v1790
    %v3543 = vmul.f32 %v3535, %v1790
    %v3544 = vmul.f32 %v3538, %v1790
    %v3545 = vmul.f32 %v3541, %v1790
    %v3546 = vmul.f32 %v3522, %v3522
    %v3547 = vmul.f32 %v3523, %v3523
    %v3548 = vmul.f32 %v3524, %v3524
    %v3549 = vmul.f32 %v3525, %v3525
    %v3550 = vsub.f32 %v3542, %v3546
    %v3551 = vsub.f32 %v3543, %v3547
    %v3552 = vsub.f32 %v3544, %v3548
    %v3553 = vsub.f32 %v3545, %v3549
    %v3554 = vsub.f32 %v3504, %v3522
    %v3555 = vsub.f32 %v3505, %v3523
    %v3556 = vsub.f32 %v3506, %v3524
    %v3557 = vsub.f32 %v3507, %v3525
    %v3558 = vadd.f32 %v3550, 1e-05
    %v3559 = vadd.f32 %v3551, 1e-05
    %v3560 = vadd.f32 %v3552, 1e-05
    %v3561 = vadd.f32 %v3553, 1e-05
    %v3562 = vrsqrt.pop %v3558
    %v3563 = vrsqrt.pop %v3559
    %v3564 = vrsqrt.pop %v3560
    %v3565 = vrsqrt.pop %v3561
    %v3566 = vmul.f32 %v3554, %v3562
    %v3567 = vmul.f32 %v3555, %v3563
    %v3568 = vmul.f32 %v3556, %v3564
    %v3569 = vmul.f32 %v3557, %v3565
    %v3570 = vmul.f32 %v3566, %v3508
    %v3571 = vmul.f32 %v3567, %v3508
    %v3572 = vmul.f32 %v3568, %v3508
    %v3573 = vmul.f32 %v3569, %v3508
    %v3574 = vadd.f32 %v3570, %v3509
    %v3575 = vadd.f32 %v3571, %v3509
    %v3576 = vadd.f32 %v3572, %v3509
    %v3577 = vadd.f32 %v3573, %v3509
    %v3578 = vld [vmem:[%s2133 + $0x10] sm:$0xff]
    %v3579 = vld [vmem:[%s2133 + $0x28] sm:$0xff]
    %v3580 = vld [vmem:[%s2133 + $0x40] sm:$0xff]
    %v3581 = vld [vmem:[%s2133 + $0x58] sm:$0xff]
    %v3582 = vld [vmem:[%s2133 + $0x70] sm:$0xff]
    %v3583 = vld [vmem:[%s2133 + $0x88] sm:$0xff]
    %v3584 = vld [vmem:[%s2133 + $0xa0] sm:$0xff]
    %v3585 = vld [vmem:[%s2133 + $0xb8] sm:$0xff]
    %v3586 = vld [vmem:[%s4 + $0x60] ss:$0 sm:$0xff]
    %v3588 = vsel %vm430, %v3574, 0
    %v3591 = vsel %vm430, %v3575, 0
    %v3594 = vsel %vm430, %v3576, 0
    %v3597 = vsel %vm430, %v3577, 0
    %3599 = vmatprep.subr.mxu0 0.0
    %3600 = vmatpush1.msra.mxu0 %v3578
    %3601 = vmatprep.subr.mxu0 0.0
    %3602 = vmatpush1.msra.mxu0 %v3579
    %3603 = vmatprep.subr.mxu0 0.0
    %3604 = vmatpush1.msra.mxu0 %v3580
    %3605 = vmatprep.subr.mxu0 0.0
    %3606 = vmatpush1.msra.mxu0 %v3581
    %3607 = vmatprep.subr.mxu0 0.0
    %3608 = vmatpush1.msra.mxu0 %v3582
    %3609 = vmatprep.subr.mxu0 0.0
    %3610 = vmatpush1.msra.mxu0 %v3583
    %3611 = vmatprep.subr.mxu0 0.0
    %3612 = vmatpush1.msra.mxu0 %v3584
    %3613 = vmatprep.subr.mxu0 0.0
    %3614 = vmatpush1.msra.mxu0 %v3585
    %3615 = vmatprep.subr.mxu0 0.0
    %3616 = vmatpush1.msra.mxu0 0.0
    %3617 = vmatprep.subr.mxu0 0.0
    %3618 = vmatpush1.msra.mxu0 0.0
    %3619 = vmatprep.subr.mxu0 0.0
    %3620 = vmatpush1.msra.mxu0 0.0
    %3621 = vmatprep.subr.mxu0 0.0
    %3622 = vmatpush1.msra.mxu0 0.0
    %3623 = vmatprep.subr.mxu0 0.0
    %3624 = vmatpush1.msra.mxu0 0.0
    %3625 = vmatprep.subr.mxu0 0.0
    %3626 = vmatpush1.msra.mxu0 0.0
    %3627 = vmatprep.subr.mxu0 0.0
    %3628 = vmatpush1.msra.mxu0 0.0
    %3629 = vmatprep.subr.mxu0 0.0
    %3630 = vmatpush1.msra.mxu0 0.0
    %3631 = vmatprep.subr.mxu0 0.0
    %3632 = vmatpush1.msra.mxu0 0.0
    %3633 = vmatprep.subr.mxu0 0.0
    %3634 = vmatpush1.msra.mxu0 0.0
    %3635 = vmatprep.subr.mxu0 0.0
    %3636 = vmatpush1.msra.mxu0 0.0
    %3637 = vmatprep.subr.mxu0 0.0
    %3638 = vmatpush1.msra.mxu0 0.0
    %3639 = vmatprep.subr.mxu0 0.0
    %3640 = vmatpush1.msra.mxu0 0.0
    %3641 = vmatprep.subr.mxu0 0.0
    %3642 = vmatpush1.msra.mxu0 0.0
    %3643 = vmatprep.subr.mxu0 0.0
    %3644 = vmatpush1.msra.mxu0 0.0
    %3645 = vmatprep.subr.mxu0 0.0
    %3646 = vmatpush1.msra.mxu0 0.0
    %3647 = vmatprep.subr.mxu0 0.0
    %3648 = vmatpush1.msra.mxu0 0.0
    %3649 = vmatprep.subr.mxu0 0.0
    %3650 = vmatpush1.msra.mxu0 0.0
    %3651 = vmatprep.subr.mxu0 0.0
    %3652 = vmatpush1.msra.mxu0 0.0
    %3653 = vmatprep.subr.mxu0 0.0
    %3654 = vmatpush1.msra.mxu0 0.0
    %3655 = vmatprep.subr.mxu0 0.0
    %3656 = vmatpush1.msra.mxu0 0.0
    %3657 = vmatprep.subr.mxu0 0.0
    %3658 = vmatpush1.msra.mxu0 0.0
    %3659 = vmatprep.subr.mxu0 0.0
    %3660 = vmatpush1.msra.mxu0 0.0
    %3661 = vmatprep.subr.mxu0 0.0
    %3662 = vmatpush1.msra.mxu0 0.0
    %3663 = vmatprep.mubr.f32.mxu0 0.0
    %3664 = vmatmul.mubr.f32.gmra.mrb[0].mxu0 %v3588
    %v3665 = vpop.f32.mrb[0].mxu0
    %v3666 = vadd.f32 %v3586, %v3665
    %v3667 = vpop.f32.mrb[0].mxu0
    %3668 = vmatprep.mubr.f32.mxu0 0.0
    %3669 = vmatmul.mubr.f32.gmra.mrb[0].mxu0 %v3591
    %v3670 = vpop.f32.mrb[0].mxu0
    %v3671 = vadd.f32 %v3586, %v3670
    %v3672 = vpop.f32.mrb[0].mxu0
    %3673 = vmatprep.mubr.f32.mxu0 0.0
    %3674 = vmatmul.mubr.f32.gmra.mrb[0].mxu0 %v3594
    %v3675 = vpop.f32.mrb[0].mxu0
    %v3676 = vadd.f32 %v3586, %v3675
    %v3677 = vpop.f32.mrb[0].mxu0
    %3678 = vmatprep.mubr.f32.mxu0 0.0
    %3679 = vmatmul.mubr.f32.gmra.mrb[0].mxu0 %v3597
    %v3680 = vpop.f32.mrb[0].mxu0
    %v3681 = vadd.f32 %v3586, %v3680
    %v3682 = vpop.f32.mrb[0].mxu0
    %3683 = vdwg.mxu0
    %v3684 = vmax.f32 %v3666, 0.0
    %v3685 = vmax.f32 %v3671, 0.0
    %v3686 = vmax.f32 %v3676, 0.0
    %v3687 = vmax.f32 %v3681, 0.0
    %s3688 = scalar_lea.vmem %s2, 128
    %v3689 = vld [vmem:[%s3688] sm:$0xff]
    %v3690 = vld [vmem:[%s3688 + $0x8] sm:$0xff]
    %v3691 = vld [vmem:[%s3688 + $0x10] sm:$0xff]
    %v3692 = vld [vmem:[%s3688 + $0x18] sm:$0xff]
    %v3693 = vld [vmem:[%s3688 + $0x20] sm:$0xff]
    %v3694 = vld [vmem:[%s3688 + $0x28] sm:$0xff]
    %v3695 = vld [vmem:[%s3688 + $0x30] sm:$0xff]
    %v3696 = vld [vmem:[%s3688 + $0x38] sm:$0xff]
    %v3697 = vld [vmem:[%s3688 + $0x40] sm:$0xff]
    %v3698 = vld [vmem:[%s3688 + $0x48] sm:$0xff]
    %v3699 = vld [vmem:[%s3688 + $0x50] sm:$0xff]
    %v3700 = vld [vmem:[%s3688 + $0x58] sm:$0xff]
    %v3701 = vld [vmem:[%s3688 + $0x60] sm:$0xff]
    %v3702 = vld [vmem:[%s3688 + $0x68] sm:$0xff]
    %v3703 = vld [vmem:[%s3688 + $0x70] sm:$0xff]
    %v3704 = vld [vmem:[%s3688 + $0x78] sm:$0xff]
    %v3705 = vld [vmem:[%s4 + $0x54] ss:$0 sm:$0xff]
    %3706 = vmatprep.subr.mxu0 0.0
    %3707 = vmatpush1.msra.mxu0 %v3689
    %3708 = vmatprep.subr.mxu0 0.0
    %3709 = vmatpush1.msra.mxu0 %v3690
    %3710 = vmatprep.subr.mxu0 0.0
    %3711 = vmatpush1.msra.mxu0 %v3691
    %3712 = vmatprep.subr.mxu0 0.0
    %3713 = vmatpush1.msra.mxu0 %v3692
    %3714 = vmatprep.subr.mxu0 0.0
    %3715 = vmatpush1.msra.mxu0 %v3693
    %3716 = vmatprep.subr.mxu0 0.0
    %3717 = vmatpush1.msra.mxu0 %v3694
    %3718 = vmatprep.subr.mxu0 0.0
    %3719 = vmatpush1.msra.mxu0 %v3695
    %3720 = vmatprep.subr.mxu0 0.0
    %3721 = vmatpush1.msra.mxu0 %v3696
    %3722 = vmatprep.subr.mxu0 0.0
    %3723 = vmatpush1.msra.mxu0 %v3697
    %3724 = vmatprep.subr.mxu0 0.0
    %3725 = vmatpush1.msra.mxu0 %v3698
    %3726 = vmatprep.subr.mxu0 0.0
    %3727 = vmatpush1.msra.mxu0 %v3699
    %3728 = vmatprep.subr.mxu0 0.0
    %3729 = vmatpush1.msra.mxu0 %v3700
    %3730 = vmatprep.subr.mxu0 0.0
    %3731 = vmatpush1.msra.mxu0 %v3701
    %3732 = vmatprep.subr.mxu0 0.0
    %3733 = vmatpush1.msra.mxu0 %v3702
    %3734 = vmatprep.subr.mxu0 0.0
    %3735 = vmatpush1.msra.mxu0 %v3703
    %3736 = vmatprep.subr.mxu0 0.0
    %3737 = vmatpush1.msra.mxu0 %v3704
    %3738 = vmatprep.subr.mxu0 0.0
    %3739 = vmatpush1.msra.mxu0 0.0
    %3740 = vmatprep.subr.mxu0 0.0
    %3741 = vmatpush1.msra.mxu0 0.0
    %3742 = vmatprep.subr.mxu0 0.0
    %3743 = vmatpush1.msra.mxu0 0.0
    %3744 = vmatprep.subr.mxu0 0.0
    %3745 = vmatpush1.msra.mxu0 0.0
    %3746 = vmatprep.subr.mxu0 0.0
    %3747 = vmatpush1.msra.mxu0 0.0
    %3748 = vmatprep.subr.mxu0 0.0
    %3749 = vmatpush1.msra.mxu0 0.0
    %3750 = vmatprep.subr.mxu0 0.0
    %3751 = vmatpush1.msra.mxu0 0.0
    %3752 = vmatprep.subr.mxu0 0.0
    %3753 = vmatpush1.msra.mxu0 0.0
    %3754 = vmatprep.subr.mxu0 0.0
    %3755 = vmatpush1.msra.mxu0 0.0
    %3756 = vmatprep.subr.mxu0 0.0
    %3757 = vmatpush1.msra.mxu0 0.0
    %3758 = vmatprep.subr.mxu0 0.0
    %3759 = vmatpush1.msra.mxu0 0.0
    %3760 = vmatprep.subr.mxu0 0.0
    %3761 = vmatpush1.msra.mxu0 0.0
    %3762 = vmatprep.subr.mxu0 0.0
    %3763 = vmatpush1.msra.mxu0 0.0
    %3764 = vmatprep.subr.mxu0 0.0
    %3765 = vmatpush1.msra.mxu0 0.0
    %3766 = vmatprep.subr.mxu0 0.0
    %3767 = vmatpush1.msra.mxu0 0.0
    %3768 = vmatprep.subr.mxu0 0.0
    %3769 = vmatpush1.msra.mxu0 0.0
    %3770 = vmatprep.mubr.f32.mxu0 0.0
    %3771 = vmatmul.mubr.f32.gmra.mrb[0].mxu0 %v3684
    %v3772 = vpop.f32.mrb[0].mxu0
    %v3773 = vadd.f32 %v3705, %v3772
    %v3774 = vpop.f32.mrb[0].mxu0
    %3775 = vmatprep.mubr.f32.mxu0 0.0
    %3776 = vmatmul.mubr.f32.gmra.mrb[0].mxu0 %v3685
    %v3777 = vpop.f32.mrb[0].mxu0
    %v3778 = vadd.f32 %v3705, %v3777
    %v3779 = vpop.f32.mrb[0].mxu0
    %3780 = vmatprep.mubr.f32.mxu0 0.0
    %3781 = vmatmul.mubr.f32.gmra.mrb[0].mxu0 %v3686
    %v3782 = vpop.f32.mrb[0].mxu0
    %v3783 = vadd.f32 %v3705, %v3782
    %v3784 = vpop.f32.mrb[0].mxu0
    %3785 = vmatprep.mubr.f32.mxu0 0.0
    %3786 = vmatmul.mubr.f32.gmra.mrb[0].mxu0 %v3687
    %v3787 = vpop.f32.mrb[0].mxu0
    %v3788 = vadd.f32 %v3705, %v3787
    %v3789 = vpop.f32.mrb[0].mxu0
    %3790 = vdwg.mxu0
    %v3791 = vadd.f32 %v3574, %v3773
    %v3792 = vadd.f32 %v3575, %v3778
    %v3793 = vadd.f32 %v3576, %v3783
    %v3794 = vadd.f32 %v3577, %v3788
    %v3795 = vld [vmem:[%s4 + $0x52] ss:$0 sm:$0xff]
    %v3796 = vld [vmem:[%s4 + $0x53] ss:$0 sm:$0xff]
    %v3797 = vsel %vm430, %v3791, 0.0
    %3798 = vadd.xlane.f32.xlu0 %v3797
    %v3799 = vpop.xlane.xlu0 %3798
    %v3800 = vsel %vm430, %v3792, 0.0
    %3801 = vadd.xlane.f32.xlu0 %v3800
    %v3802 = vpop.xlane.xlu0 %3801
    %v3803 = vsel %vm430, %v3793, 0.0
    %3804 = vadd.xlane.f32.xlu0 %v3803
    %v3805 = vpop.xlane.xlu0 %3804
    %v3806 = vsel %vm430, %v3794, 0.0
    %3807 = vadd.xlane.f32.xlu0 %v3806
    %v3808 = vpop.xlane.xlu0 %3807
    %v3809 = vmul.f32 %v3799, %v1790
    %v3810 = vmul.f32 %v3802, %v1790
    %v3811 = vmul.f32 %v3805, %v1790
    %v3812 = vmul.f32 %v3808, %v1790
    %v3813 = vmul.f32 %v3791, %v3791
    %v3814 = vmul.f32 %v3792, %v3792
    %v3815 = vmul.f32 %v3793, %v3793
    %v3816 = vmul.f32 %v3794, %v3794
    %v3817 = vsel %vm430, %v3813, 0.0
    %3818 = vadd.xlane.f32.xlu0 %v3817
    %v3819 = vpop.xlane.xlu0 %3818
    %v3820 = vsel %vm430, %v3814, 0.0
    %3821 = vadd.xlane.f32.xlu0 %v3820
    %v3822 = vpop.xlane.xlu0 %3821
    %v3823 = vsel %vm430, %v3815, 0.0
    %3824 = vadd.xlane.f32.xlu0 %v3823
    %v3825 = vpop.xlane.xlu0 %3824
    %v3826 = vsel %vm430, %v3816, 0.0
    %3827 = vadd.xlane.f32.xlu0 %v3826
    %v3828 = vpop.xlane.xlu0 %3827
    %v3829 = vmul.f32 %v3819, %v1790
    %v3830 = vmul.f32 %v3822, %v1790
    %v3831 = vmul.f32 %v3825, %v1790
    %v3832 = vmul.f32 %v3828, %v1790
    %v3833 = vmul.f32 %v3809, %v3809
    %v3834 = vmul.f32 %v3810, %v3810
    %v3835 = vmul.f32 %v3811, %v3811
    %v3836 = vmul.f32 %v3812, %v3812
    %v3837 = vsub.f32 %v3829, %v3833
    %v3838 = vsub.f32 %v3830, %v3834
    %v3839 = vsub.f32 %v3831, %v3835
    %v3840 = vsub.f32 %v3832, %v3836
    %v3841 = vsub.f32 %v3791, %v3809
    %v3842 = vsub.f32 %v3792, %v3810
    %v3843 = vsub.f32 %v3793, %v3811
    %v3844 = vsub.f32 %v3794, %v3812
    %v3845 = vadd.f32 %v3837, 1e-05
    %v3846 = vadd.f32 %v3838, 1e-05
    %v3847 = vadd.f32 %v3839, 1e-05
    %v3848 = vadd.f32 %v3840, 1e-05
    %v3849 = vrsqrt.pop %v3845
    %v3850 = vrsqrt.pop %v3846
    %v3851 = vrsqrt.pop %v3847
    %v3852 = vrsqrt.pop %v3848
    %v3853 = vmul.f32 %v3841, %v3849
    %v3854 = vmul.f32 %v3842, %v3850
    %v3855 = vmul.f32 %v3843, %v3851
    %v3856 = vmul.f32 %v3844, %v3852
    %v3857 = vmul.f32 %v3853, %v3795
    %v3858 = vmul.f32 %v3854, %v3795
    %v3859 = vmul.f32 %v3855, %v3795
    %v3860 = vmul.f32 %v3856, %v3795
    %v3861 = vadd.f32 %v3857, %v3796
    %v3862 = vadd.f32 %v3858, %v3796
    %v3863 = vadd.f32 %v3859, %v3796
    %v3864 = vadd.f32 %v3860, %v3796
    %v3865 = vld [vmem:[%s3 + $0x20] sm:$0xff]
    %v3866 = vld [vmem:[%s3 + $0x28] sm:$0xff]
    %v3867 = vld [vmem:[%s3 + $0x30] sm:$0xff]
    %v3868 = vld [vmem:[%s3 + $0x38] sm:$0xff]
    %v3869 = vld [vmem:[%s3 + $0x40] sm:$0xff]
    %v3870 = vld [vmem:[%s3 + $0x48] sm:$0xff]
    %v3871 = vld [vmem:[%s3 + $0x50] sm:$0xff]
    %v3872 = vld [vmem:[%s3 + $0x58] sm:$0xff]
    %v3873 = vld [vmem:[%s4 + $0x61] ss:$0 sm:$0xff]
    %v3875 = vsel %vm430, %v3861, 0
    %v3878 = vsel %vm430, %v3862, 0
    %v3881 = vsel %vm430, %v3863, 0
    %v3884 = vsel %vm430, %v3864, 0
    %3886 = vmatprep.subr.mxu0 0.0
    %3887 = vmatpush1.msra.mxu0 %v3865
    %3888 = vmatprep.subr.mxu0 0.0
    %3889 = vmatpush1.msra.mxu0 %v3866
    %3890 = vmatprep.subr.mxu0 0.0
    %3891 = vmatpush1.msra.mxu0 %v3867
    %3892 = vmatprep.subr.mxu0 0.0
    %3893 = vmatpush1.msra.mxu0 %v3868
    %3894 = vmatprep.subr.mxu0 0.0
    %3895 = vmatpush1.msra.mxu0 %v3869
    %3896 = vmatprep.subr.mxu0 0.0
    %3897 = vmatpush1.msra.mxu0 %v3870
    %3898 = vmatprep.subr.mxu0 0.0
    %3899 = vmatpush1.msra.mxu0 %v3871
    %3900 = vmatprep.subr.mxu0 0.0
    %3901 = vmatpush1.msra.mxu0 %v3872
    %3902 = vmatprep.subr.mxu0 0.0
    %3903 = vmatpush1.msra.mxu0 0.0
    %3904 = vmatprep.subr.mxu0 0.0
    %3905 = vmatpush1.msra.mxu0 0.0
    %3906 = vmatprep.subr.mxu0 0.0
    %3907 = vmatpush1.msra.mxu0 0.0
    %3908 = vmatprep.subr.mxu0 0.0
    %3909 = vmatpush1.msra.mxu0 0.0
    %3910 = vmatprep.subr.mxu0 0.0
    %3911 = vmatpush1.msra.mxu0 0.0
    %3912 = vmatprep.subr.mxu0 0.0
    %3913 = vmatpush1.msra.mxu0 0.0
    %3914 = vmatprep.subr.mxu0 0.0
    %3915 = vmatpush1.msra.mxu0 0.0
    %3916 = vmatprep.subr.mxu0 0.0
    %3917 = vmatpush1.msra.mxu0 0.0
    %3918 = vmatprep.subr.mxu0 0.0
    %3919 = vmatpush1.msra.mxu0 0.0
    %3920 = vmatprep.subr.mxu0 0.0
    %3921 = vmatpush1.msra.mxu0 0.0
    %3922 = vmatprep.subr.mxu0 0.0
    %3923 = vmatpush1.msra.mxu0 0.0
    %3924 = vmatprep.subr.mxu0 0.0
    %3925 = vmatpush1.msra.mxu0 0.0
    %3926 = vmatprep.subr.mxu0 0.0
    %3927 = vmatpush1.msra.mxu0 0.0
    %3928 = vmatprep.subr.mxu0 0.0
    %3929 = vmatpush1.msra.mxu0 0.0
    %3930 = vmatprep.subr.mxu0 0.0
    %3931 = vmatpush1.msra.mxu0 0.0
    %3932 = vmatprep.subr.mxu0 0.0
    %3933 = vmatpush1.msra.mxu0 0.0
    %3934 = vmatprep.subr.mxu0 0.0
    %3935 = vmatpush1.msra.mxu0 0.0
    %3936 = vmatprep.subr.mxu0 0.0
    %3937 = vmatpush1.msra.mxu0 0.0
    %3938 = vmatprep.subr.mxu0 0.0
    %3939 = vmatpush1.msra.mxu0 0.0
    %3940 = vmatprep.subr.mxu0 0.0
    %3941 = vmatpush1.msra.mxu0 0.0
    %3942 = vmatprep.subr.mxu0 0.0
    %3943 = vmatpush1.msra.mxu0 0.0
    %3944 = vmatprep.subr.mxu0 0.0
    %3945 = vmatpush1.msra.mxu0 0.0
    %3946 = vmatprep.subr.mxu0 0.0
    %3947 = vmatpush1.msra.mxu0 0.0
    %3948 = vmatprep.subr.mxu0 0.0
    %3949 = vmatpush1.msra.mxu0 0.0
    %3950 = vmatprep.mubr.f32.mxu0 0.0
    %3951 = vmatmul.mubr.f32.gmra.mrb[0].mxu0 %v3875
    %v3952 = vpop.f32.mrb[0].mxu0
    %v3953 = vadd.f32 %v3873, %v3952
    %v3954 = vpop.f32.mrb[0].mxu0
    %3955 = vmatprep.mubr.f32.mxu0 0.0
    %3956 = vmatmul.mubr.f32.gmra.mrb[0].mxu0 %v3878
    %v3957 = vpop.f32.mrb[0].mxu0
    %v3958 = vadd.f32 %v3873, %v3957
    %v3959 = vpop.f32.mrb[0].mxu0
    %3960 = vmatprep.mubr.f32.mxu0 0.0
    %3961 = vmatmul.mubr.f32.gmra.mrb[0].mxu0 %v3881
    %v3962 = vpop.f32.mrb[0].mxu0
    %v3963 = vadd.f32 %v3873, %v3962
    %v3964 = vpop.f32.mrb[0].mxu0
    %3965 = vmatprep.mubr.f32.mxu0 0.0
    %3966 = vmatmul.mubr.f32.gmra.mrb[0].mxu0 %v3884
    %v3967 = vpop.f32.mrb[0].mxu0
    %v3968 = vadd.f32 %v3873, %v3967
    %v3969 = vpop.f32.mrb[0].mxu0
    %3970 = vdwg.mxu0
    %3971 = vst [vmem:[#allocation2] sm:$0xff] %v3953
    %3972 = vst [vmem:[#allocation2 + $0x8] sm:$0xff] %v3958
    %3973 = vst [vmem:[#allocation2 + $0x10] sm:$0xff] %v3963
    %3974 = vst [vmem:[#allocation2 + $0x18] sm:$0xff] %v3968
    // Predicated region
    $region22: #{transformer_forward.1} parent=1 // pred_check
      _
    $region23: #{transformer_forward.1} parent=1 // pred_check_branch
      %3976 = sbr.rel (0) target = $region25
    $region24: #{transformer_forward.1} parent=1 // pred_region
      %s3978 = ssub.s32 512, 512
      %3979 = vsyncadd [#allocation3], %s3978
      %s3980 = sshll.u32 [#allocation2], 4
      %s3981 = int_to_ptr.vmem [resolvable:$true] %s3980
      %3986 = dma.vmem_to_hbm [thread:$0]  %s3981, 512, %s5, [#allocation3], 128, 128, 8
    $region25: #{transformer_forward.1} parent=1 // pred_fallthru
      _
    // Predicated region
    $region26: #{transformer_forward.1} parent=1 // pred_check
      _
    $region27: #{transformer_forward.1} parent=1 // pred_check_branch
      %3988 = sbr.rel (0) target = $region29
    $region28: #{transformer_forward.1} parent=1 // pred_region
      %3989 = dma.done [#allocation3], 512
    $region29: #{transformer_forward.1} parent=1 // pred_fallthru
      _
    %3990 = vsyncpa [#allocation3], 1

</llo_original>
